<compile_context>
chip_gen: v7x
topology: tpu7x:2x2x1
jax: 0.10.0
libtpu: 0.0.40
codegen_flags: <defaults>
</compile_context>

<pallas_src>
import functools

import jax
import jax.numpy as jnp
import numpy as np
from jax import lax
from jax.experimental import pallas as pl
from jax.experimental.pallas import tpu as pltpu


# Branch dilation schedules of the reference module.
_BRANCH_DILS = ((1, 2, 4), (2, 4, 8), (2, 4, 8), (2, 4, 8))
_PMAX = 8   # max dilation == max vertical 'same' padding of any 3x3 conv


# ----------------------------------------------------------------------------
# Fused Pallas kernel: a block of Nb batch images through the full ASPP.
# Layout: activations are (Nb*H, W*C) f32 ("lane-fused"); 3x3 convs are single
# K=3*W*C4 matmuls against banded weights (kx taps + horizontal padding folded
# in, BN scale folded into columns).
# ----------------------------------------------------------------------------
def _aspp_fused_kernel(x_ref, bd1_ref, b1_ref, bdc_ref, bc_ref, bd2_ref,
                       b2_ref, out_ref, pad_ref, *, Nb, H, WC4):
  M = Nb * H
  x = x_ref[...].reshape(M, x_ref.shape[-1])                 # (M, W*Cin) f32

  # conv1 (1x1): block-diagonal matmul (scale folded into columns) + bias.
  img = jnp.dot(x.astype(jnp.bfloat16), bd1_ref[...],
                preferred_element_type=jnp.float32) + b1_ref[...]

  # Zero only the top / bottom halo rows once; the interior is rewritten per
  # conv.  All columns are full width (128-lane aligned), no horizontal halo.
  pad_ref[:, :_PMAX, :] = jnp.zeros((Nb, _PMAX, WC4), jnp.float32)
  pad_ref[:, _PMAX + H:, :] = jnp.zeros((Nb, _PMAX, WC4), jnp.float32)

  def conv3x3_bn_relu(act, layer, dil):
    # act: (M, WC4) f32.  Vertical 'same' padding via the halo scratch; the
    # three kx taps + horizontal padding + BN scale live in the banded weight.
    pad_ref[:, _PMAX:_PMAX + H, :] = act.reshape(Nb, H, WC4)
    up = pad_ref[:, _PMAX - dil:_PMAX - dil + H, :].reshape(M, WC4)   # y - dil
    dn = pad_ref[:, _PMAX + dil:_PMAX + dil + H, :].reshape(M, WC4)   # y + dil
    # One MXU matmul per conv layer, contraction depth K = 3*WC4.
    lhs = jnp.concatenate([up.astype(jnp.bfloat16),
                           act.astype(jnp.bfloat16),
                           dn.astype(jnp.bfloat16)], axis=-1)          # (M, 3*WC4)
    acc = jnp.dot(lhs, bdc_ref[layer], preferred_element_type=jnp.float32)
    # Folded BN (eval mode): scale already in the weights -> bias + ReLU only.
    return jnp.maximum(acc + bc_ref[layer:layer + 1, :], 0.0)

  # Four context branches, summed on the fly.
  s = jnp.zeros((M, WC4), jnp.float32)
  layer = 0
  for branch_dils in _BRANCH_DILS:
    act = img
    for d in branch_dils:
      act = conv3x3_bn_relu(act, layer, d)
      layer += 1
    s = s + act

  # conv2 (1x1) + residual add; dropout(p=0.5) is the identity at inference.
  part1 = jnp.dot(s.astype(jnp.bfloat16), bd2_ref[...],
                  preferred_element_type=jnp.float32) + b2_ref[...]
  out = x + part1
  out_ref[...] = out.reshape(Nb, H, out_ref.shape[-1]).astype(out_ref.dtype)


# ----------------------------------------------------------------------------
# Host-side weight packing: banded / block-diagonal lane-fused weights (bf16),
# BN scale folded into weight columns, biases tiled across W (f32).
# ----------------------------------------------------------------------------
def _pack_aspp_weights(params, W):
  def tile_vec(v):
    return np.tile(np.asarray(v, np.float32), W)

  def block_diag_1x1(p):
    # (Cin, Cout) -> (W*Cin, W*Cout), output-channel scale folded into columns.
    w = np.asarray(p["w"][0], np.float32) * np.asarray(p["scale"],
                                                       np.float32)[None, :]
    return np.kron(np.eye(W, dtype=np.float32), w)

  def banded_3x3(p, dil):
    # (9, C4, C4) -> (3*W*C4, W*C4): per-ky W-block-banded matrix with the
    # three dilated kx off-diagonals; blocks falling outside [0, W) dropped
    # (== horizontal 'same' zero padding).  BN scale folded into columns.
    w9 = np.asarray(p["w"], np.float32)
    w9 = w9 * np.asarray(p["scale"], np.float32)[None, None, :]
    C4 = w9.shape[-1]
    out = np.zeros((3, W * C4, W * C4), np.float32)
    for ky in range(3):
      for kx in range(3):
        off = (kx - 1) * dil
        for x in range(W):
          xs = x + off
          if 0 <= xs < W:
            out[ky, xs * C4:(xs + 1) * C4, x * C4:(x + 1) * C4] = w9[ky * 3 + kx]
    return out.reshape(3 * W * C4, W * C4)

  bd1 = block_diag_1x1(params["conv1"])                      # (W*Cin, W*C4)
  b1 = tile_vec(params["conv1"]["bias"])[None, :]            # (1, W*C4)
  bd2 = block_diag_1x1(params["conv2"])                      # (W*C4, W*Cout)
  b2 = tile_vec(params["conv2"]["bias"])[None, :]            # (1, W*Cout)

  bdc, bc = [], []
  for name, dils in zip(("ctx1", "ctx2", "ctx3", "ctx4"), _BRANCH_DILS):
    for p, d in zip(params[name], dils):
      bdc.append(banded_3x3(p, d))
      bc.append(tile_vec(p["bias"]))
  bdc = np.stack(bdc)                                        # (12, 3*WC4, WC4)
  bc = np.stack(bc)                                          # (12, WC4)

  return (jnp.asarray(bd1, jnp.bfloat16), jnp.asarray(b1, jnp.float32),
          jnp.asarray(bdc, jnp.bfloat16), jnp.asarray(bc, jnp.float32),
          jnp.asarray(bd2, jnp.bfloat16), jnp.asarray(b2, jnp.float32))


# ----------------------------------------------------------------------------
# Wrapper
# ----------------------------------------------------------------------------
def aspp_pallas(x_nhwc, params, *, batch_block=None):
  N, H, W, Cin = x_nhwc.shape
  C4 = params["conv1"]["w"].shape[-1]
  Cout = params["conv2"]["w"].shape[-1]
  assert Cout == Cin, "residual x + part1 requires depth == in_channel"
  WC4, WCin, WCout = W * C4, W * Cin, W * Cout
  # Lane-fused layout requirements (review concern): pad W*C up to 128 outside
  # this wrapper if violated.
  assert WC4 % 128 == 0 and WCin % 128 == 0, "W*C must be a multiple of 128"
  assert H % 8 == 0, "H must be a multiple of 8 (sublane tiling)"

  # Batch blocking: raise the matmul M dimension (target Nb*H >= 128).
  if batch_block is None:
    batch_block = max(1, min(N, -(-128 // H)))
    while N % batch_block:
      batch_block -= 1
  Nb = batch_block
  assert N % Nb == 0

  bd1, b1, bdc, bc, bd2, b2 = _pack_aspp_weights(params, W)

  x_f = x_nhwc.reshape(N, H, WCin)        # lane-dense view (same memory layout)

  # VMEM budget from actual buffer math (2x for auto double-buffering) with
  # headroom; capped below v7x's 64 MiB/TC physical VMEM.
  w_bytes = sum(int(a.size) * a.dtype.itemsize for a in (bd1, b1, bdc, bc, bd2, b2))
  io_bytes = (Nb * H * WCin + Nb * H * WCout) * 4
  scratch_bytes = Nb * (H + 2 * _PMAX) * WC4 * 4
  need = 2 * (w_bytes + io_bytes) + scratch_bytes
  vmem_limit = int(min(max(2 * need, 16 * 1024 * 1024), 48 * 1024 * 1024))

  kern = functools.partial(_aspp_fused_kernel, Nb=Nb, H=H, WC4=WC4)
  out_f = pl.pallas_call(
      kern,
      out_shape=jax.ShapeDtypeStruct((N, H, WCout), x_nhwc.dtype),
      grid=(N // Nb,),
      in_specs=[
          pl.BlockSpec((Nb, H, WCin), lambda n: (n, 0, 0)),
          pl.BlockSpec(bd1.shape, lambda n: (0, 0)),
          pl.BlockSpec(b1.shape, lambda n: (0, 0)),
          pl.BlockSpec(bdc.shape, lambda n: (0, 0, 0)),
          pl.BlockSpec(bc.shape, lambda n: (0, 0)),
          pl.BlockSpec(bd2.shape, lambda n: (0, 0)),
          pl.BlockSpec(b2.shape, lambda n: (0, 0)),
      ],
      out_specs=pl.BlockSpec((Nb, H, WCout), lambda n: (n, 0, 0)),
      scratch_shapes=[pltpu.VMEM((Nb, H + 2 * _PMAX, WC4), jnp.float32)],
      compiler_params=pltpu.CompilerParams(
          dimension_semantics=("parallel",),   # batch-block axis; on v7x the
          vmem_limit_bytes=vmem_limit),        # two TCs split these steps
  )(x_f, bd1, b1, bdc, bc, bd2, b2)
  return out_f.reshape(N, H, W, Cout)


# ----------------------------------------------------------------------------
# Pure-JAX reference (correctness check only; full f32)
# ----------------------------------------------------------------------------
def conv2d_ref(x, w, scale, bias, *, K, dil, relu):
  Cin = x.shape[-1]
  Cout = w.shape[-1]
  wk = w.reshape(K, K, Cin, Cout)
  pad = dil * (K - 1) // 2
  y = lax.conv_general_dilated(
      x, wk, window_strides=(1, 1),
      padding=[(pad, pad), (pad, pad)],
      rhs_dilation=(dil, dil),
      dimension_numbers=("NHWC", "HWIO", "NHWC"))
  y = y * scale + bias
  if relu:
    y = jnp.maximum(y, 0.0)
  return y


def aspp_ref(x, params):
  img = conv2d_ref(x, params["conv1"]["w"], params["conv1"]["scale"],
                   params["conv1"]["bias"], K=1, dil=1, relu=False)

  def branch(plist, dils):
    h = img
    for p, d in zip(plist, dils):
      h = conv2d_ref(h, p["w"], p["scale"], p["bias"], K=3, dil=d, relu=True)
    return h

  s = branch(params["ctx1"], _BRANCH_DILS[0])
  s = s + branch(params["ctx2"], _BRANCH_DILS[1])
  s = s + branch(params["ctx3"], _BRANCH_DILS[2])
  s = s + branch(params["ctx4"], _BRANCH_DILS[3])

  part1 = conv2d_ref(s, params["conv2"]["w"], params["conv2"]["scale"],
                     params["conv2"]["bias"], K=1, dil=1, relu=False)
  return x + part1   # dropout(p=0.5) is identity at inference


# ----------------------------------------------------------------------------
# Deterministic parameter construction (synthetic; no checkpoint)
# ----------------------------------------------------------------------------
def make_conv_params(key, cin, cout, K, with_bn):
  k1, k2, k3, k4, k5, k6 = jax.random.split(key, 6)
  w = jax.random.normal(k1, (K * K, cin, cout), jnp.float32) * (
      0.5 / (K * (cin ** 0.5)))
  b = 0.1 * jax.random.normal(k2, (cout,), jnp.float32)
  if with_bn:
    gamma = 1.0 + 0.1 * jax.random.normal(k3, (cout,), jnp.float32)
    beta = 0.1 * jax.random.normal(k4, (cout,), jnp.float32)
    mean = 0.1 * jax.random.normal(k5, (cout,), jnp.float32)
    var = 1.0 + 0.1 * jnp.abs(jax.random.normal(k6, (cout,), jnp.float32))
    eps = 1e-5
    scale = gamma / jnp.sqrt(var + eps)
    bias = beta + scale * (b - mean)
  else:
    scale = jnp.ones((cout,), jnp.float32)
    bias = b
  return {"w": w, "scale": scale, "bias": bias}


def make_params(key, in_channel, depth):
  c4 = in_channel // 4
  keys = iter(jax.random.split(key, 16))
  params = {
      "conv1": make_conv_params(next(keys), in_channel, c4, 1, with_bn=False),
      "conv2": make_conv_params(next(keys), c4, depth, 1, with_bn=False),
  }
  for name in ("ctx1", "ctx2", "ctx3", "ctx4"):
    params[name] = [make_conv_params(next(keys), c4, c4, 3, with_bn=True)
                    for _ in range(3)]
  return params


# ----------------------------------------------------------------------------
if __name__ == "__main__":
  in_channel, depth = 32, 32   # depth must equal in_channel for x + part1
  N, H, W = 2, 16, 16          # W * (in_channel//4) = 128 lane-dense

  key = jax.random.PRNGKey(0)
  kx, kp = jax.random.split(key)
  x_nchw = jax.random.normal(kx, (N, in_channel, H, W), jnp.float32)
  params = make_params(kp, in_channel, depth)

  x = jnp.transpose(x_nchw, (0, 2, 3, 1))  # NCHW -> NHWC

  out_nhwc = aspp_pallas(x, params)
  out_nchw = jnp.transpose(out_nhwc, (0, 3, 1, 2))
  jax.block_until_ready(out_nchw)

  # Tolerance is at bf16-operand-rounding level (kernel matmuls use bf16
  # operands with f32 accumulation; reference is full f32).
  ref_nhwc = aspp_ref(x, params)
  np.testing.assert_allclose(np.asarray(out_nhwc), np.asarray(ref_nhwc),
                             rtol=3e-2, atol=3e-2)
  print("KERNEL_OK")
</pallas_src>

<mosaic_0001>
module attributes {stable_mosaic.version = 11 : i64} {
  func.func @_aspp_fused_kernel(%arg0: i32, %arg1: memref<2x16x512xf32, #tpu.memory_space<vmem>>, %arg2: memref<512x128xbf16, #tpu.memory_space<vmem>>, %arg3: memref<1x128xf32, #tpu.memory_space<vmem>>, %arg4: memref<12x384x128xbf16, #tpu.memory_space<vmem>>, %arg5: memref<12x128xf32, #tpu.memory_space<vmem>>, %arg6: memref<128x512xbf16, #tpu.memory_space<vmem>>, %arg7: memref<1x512xf32, #tpu.memory_space<vmem>>, %arg8: memref<2x16x512xf32, #tpu.memory_space<vmem>>, %arg9: memref<2x32x128xf32, #tpu.memory_space<vmem>>) attributes {dimension_semantics = [#tpu.dimension_semantics<parallel>], iteration_bounds = array<i64: 1>, scalar_prefetch = 0 : i64, scratch_operands = 1 : i64, tpu.core_type = #tpu.core_type<tc>, window_params = [{transform_indices = @transform_0, window_bounds = array<i64: 2, 16, 512>}, {pipeline_mode = #tpu.pipeline_mode<synchronous>, transform_indices = @transform_1, window_bounds = array<i64: 512, 128>}, {pipeline_mode = #tpu.pipeline_mode<synchronous>, transform_indices = @transform_2, window_bounds = array<i64: 1, 128>}, {pipeline_mode = #tpu.pipeline_mode<synchronous>, transform_indices = @transform_3, window_bounds = array<i64: 12, 384, 128>}, {pipeline_mode = #tpu.pipeline_mode<synchronous>, transform_indices = @transform_4, window_bounds = array<i64: 12, 128>}, {pipeline_mode = #tpu.pipeline_mode<synchronous>, transform_indices = @transform_5, window_bounds = array<i64: 128, 512>}, {pipeline_mode = #tpu.pipeline_mode<synchronous>, transform_indices = @transform_6, window_bounds = array<i64: 1, 512>}, {transform_indices = @transform_7, window_bounds = array<i64: 2, 16, 512>}]} {
    %c0 = arith.constant 0 : index
    %c0_0 = arith.constant 0 : index
    %c0_1 = arith.constant 0 : index
    %0 = vector.load %arg1[%c0, %c0_0, %c0_1] : memref<2x16x512xf32, #tpu.memory_space<vmem>>, vector<2x16x512xf32>
    %1 = vector.shape_cast %0 : vector<2x16x512xf32> to vector<32x512xf32>
    %2 = arith.truncf %1 : vector<32x512xf32> to vector<32x512xbf16>
    %c0_2 = arith.constant 0 : index
    %c0_3 = arith.constant 0 : index
    %3 = vector.load %arg2[%c0_2, %c0_3] : memref<512x128xbf16, #tpu.memory_space<vmem>>, vector<512x128xbf16>
    %cst = arith.constant dense<0.000000e+00> : vector<32x128xf32>
    %4 = tpu.matmul %2, %3, %cst {dimension_numbers = #tpu.dot_dimension_numbers<[1], [0], [0], [1], [0, 0, 1, 1], [], []>} : vector<32x512xbf16>, vector<512x128xbf16>, vector<32x128xf32> -> vector<32x128xf32>
    %c0_4 = arith.constant 0 : index
    %c0_5 = arith.constant 0 : index
    %5 = vector.load %arg3[%c0_4, %c0_5] : memref<1x128xf32, #tpu.memory_space<vmem>>, vector<1x128xf32>
    %6 = vector.broadcast %5 : vector<1x128xf32> to vector<32x128xf32>
    %7 = arith.addf %4, %6 : vector<32x128xf32>
    %cst_6 = arith.constant 0.000000e+00 : f32
    %8 = vector.broadcast %cst_6 : f32 to vector<2x8x128xf32>
    %c0_7 = arith.constant 0 : index
    %c0_8 = arith.constant 0 : index
    %c0_9 = arith.constant 0 : index
    %9 = vector.load %arg9[%c0_7, %c0_8, %c0_9] : memref<2x32x128xf32, #tpu.memory_space<vmem>>, vector<2x8x128xf32>
    tpu.vector_store %arg9[%c0_7, %c0_8, %c0_9], %8 {strides = array<i32>} : memref<2x32x128xf32, #tpu.memory_space<vmem>>, vector<2x8x128xf32>,
    %cst_10 = arith.constant 0.000000e+00 : f32
    %10 = vector.broadcast %cst_10 : f32 to vector<2x8x128xf32>
    %c0_11 = arith.constant 0 : index
    %c24 = arith.constant 24 : index
    %c0_12 = arith.constant 0 : index
    %11 = vector.load %arg9[%c0_11, %c24, %c0_12] : memref<2x32x128xf32, #tpu.memory_space<vmem>>, vector<2x8x128xf32>
    tpu.vector_store %arg9[%c0_11, %c24, %c0_12], %10 {strides = array<i32>} : memref<2x32x128xf32, #tpu.memory_space<vmem>>, vector<2x8x128xf32>,
    %cst_13 = arith.constant 0.000000e+00 : f32
    %12 = vector.broadcast %cst_13 : f32 to vector<32x128xf32>
    %13 = vector.shape_cast %7 : vector<32x128xf32> to vector<2x16x128xf32>
    %c0_14 = arith.constant 0 : index
    %c8 = arith.constant 8 : index
    %c0_15 = arith.constant 0 : index
    %14 = vector.load %arg9[%c0_14, %c8, %c0_15] : memref<2x32x128xf32, #tpu.memory_space<vmem>>, vector<2x16x128xf32>
    tpu.vector_store %arg9[%c0_14, %c8, %c0_15], %13 {strides = array<i32>} : memref<2x32x128xf32, #tpu.memory_space<vmem>>, vector<2x16x128xf32>,
    %c0_16 = arith.constant 0 : index
    %c7 = arith.constant 7 : index
    %c0_17 = arith.constant 0 : index
    %15 = vector.load %arg9[%c0_16, %c7, %c0_17] : memref<2x32x128xf32, #tpu.memory_space<vmem>>, vector<2x16x128xf32>
    %16 = vector.shape_cast %15 : vector<2x16x128xf32> to vector<32x128xf32>
    %c0_18 = arith.constant 0 : index
    %c9 = arith.constant 9 : index
    %c0_19 = arith.constant 0 : index
    %17 = vector.load %arg9[%c0_18, %c9, %c0_19] : memref<2x32x128xf32, #tpu.memory_space<vmem>>, vector<2x16x128xf32>
    %18 = vector.shape_cast %17 : vector<2x16x128xf32> to vector<32x128xf32>
    %19 = arith.truncf %16 : vector<32x128xf32> to vector<32x128xbf16>
    %20 = arith.truncf %7 : vector<32x128xf32> to vector<32x128xbf16>
    %21 = arith.truncf %18 : vector<32x128xf32> to vector<32x128xbf16>
    %22 = tpu.concatenate %19, %20, %21 in 1 : vector<32x128xbf16>, vector<32x128xbf16>, vector<32x128xbf16> -> vector<32x384xbf16>
    %c0_20 = arith.constant 0 : index
    %c0_21 = arith.constant 0 : index
    %c0_22 = arith.constant 0 : index
    %23 = vector.load %arg4[%c0_20, %c0_21, %c0_22] : memref<12x384x128xbf16, #tpu.memory_space<vmem>>, vector<1x384x128xbf16>
    %24 = vector.shape_cast %23 : vector<1x384x128xbf16> to vector<384x128xbf16>
    %cst_23 = arith.constant dense<0.000000e+00> : vector<32x128xf32>
    %25 = tpu.matmul %22, %24, %cst_23 {dimension_numbers = #tpu.dot_dimension_numbers<[1], [0], [0], [1], [0, 0, 1, 1], [], []>} : vector<32x384xbf16>, vector<384x128xbf16>, vector<32x128xf32> -> vector<32x128xf32>
    %c0_24 = arith.constant 0 : index
    %c0_25 = arith.constant 0 : index
    %26 = vector.load %arg5[%c0_24, %c0_25] : memref<12x128xf32, #tpu.memory_space<vmem>>, vector<1x128xf32>
    %27 = vector.broadcast %26 : vector<1x128xf32> to vector<32x128xf32>
    %28 = arith.addf %25, %27 : vector<32x128xf32>
    %cst_26 = arith.constant 0.000000e+00 : f32
    %29 = vector.broadcast %cst_26 : f32 to vector<32x128xf32>
    %30 = arith.maximumf %28, %29 : vector<32x128xf32>
    %31 = vector.shape_cast %30 : vector<32x128xf32> to vector<2x16x128xf32>
    %c0_27 = arith.constant 0 : index
    %c8_28 = arith.constant 8 : index
    %c0_29 = arith.constant 0 : index
    %32 = vector.load %arg9[%c0_27, %c8_28, %c0_29] : memref<2x32x128xf32, #tpu.memory_space<vmem>>, vector<2x16x128xf32>
    tpu.vector_store %arg9[%c0_27, %c8_28, %c0_29], %31 {strides = array<i32>} : memref<2x32x128xf32, #tpu.memory_space<vmem>>, vector<2x16x128xf32>,
    %c0_30 = arith.constant 0 : index
    %c6 = arith.constant 6 : index
    %c0_31 = arith.constant 0 : index
    %33 = vector.load %arg9[%c0_30, %c6, %c0_31] : memref<2x32x128xf32, #tpu.memory_space<vmem>>, vector<2x16x128xf32>
    %34 = vector.shape_cast %33 : vector<2x16x128xf32> to vector<32x128xf32>
    %c0_32 = arith.constant 0 : index
    %c10 = arith.constant 10 : index
    %c0_33 = arith.constant 0 : index
    %35 = vector.load %arg9[%c0_32, %c10, %c0_33] : memref<2x32x128xf32, #tpu.memory_space<vmem>>, vector<2x16x128xf32>
    %36 = vector.shape_cast %35 : vector<2x16x128xf32> to vector<32x128xf32>
    %37 = arith.truncf %34 : vector<32x128xf32> to vector<32x128xbf16>
    %38 = arith.truncf %30 : vector<32x128xf32> to vector<32x128xbf16>
    %39 = arith.truncf %36 : vector<32x128xf32> to vector<32x128xbf16>
    %40 = tpu.concatenate %37, %38, %39 in 1 : vector<32x128xbf16>, vector<32x128xbf16>, vector<32x128xbf16> -> vector<32x384xbf16>
    %c1 = arith.constant 1 : index
    %c0_34 = arith.constant 0 : index
    %c0_35 = arith.constant 0 : index
    %41 = vector.load %arg4[%c1, %c0_34, %c0_35] : memref<12x384x128xbf16, #tpu.memory_space<vmem>>, vector<1x384x128xbf16>
    %42 = vector.shape_cast %41 : vector<1x384x128xbf16> to vector<384x128xbf16>
    %cst_36 = arith.constant dense<0.000000e+00> : vector<32x128xf32>
    %43 = tpu.matmul %40, %42, %cst_36 {dimension_numbers = #tpu.dot_dimension_numbers<[1], [0], [0], [1], [0, 0, 1, 1], [], []>} : vector<32x384xbf16>, vector<384x128xbf16>, vector<32x128xf32> -> vector<32x128xf32>
    %c1_37 = arith.constant 1 : index
    %c0_38 = arith.constant 0 : index
    %44 = vector.load %arg5[%c1_37, %c0_38] : memref<12x128xf32, #tpu.memory_space<vmem>>, vector<1x128xf32>
    %45 = vector.broadcast %44 : vector<1x128xf32> to vector<32x128xf32>
    %46 = arith.addf %43, %45 : vector<32x128xf32>
    %cst_39 = arith.constant 0.000000e+00 : f32
    %47 = vector.broadcast %cst_39 : f32 to vector<32x128xf32>
    %48 = arith.maximumf %46, %47 : vector<32x128xf32>
    %49 = vector.shape_cast %48 : vector<32x128xf32> to vector<2x16x128xf32>
    %c0_40 = arith.constant 0 : index
    %c8_41 = arith.constant 8 : index
    %c0_42 = arith.constant 0 : index
    %50 = vector.load %arg9[%c0_40, %c8_41, %c0_42] : memref<2x32x128xf32, #tpu.memory_space<vmem>>, vector<2x16x128xf32>
    tpu.vector_store %arg9[%c0_40, %c8_41, %c0_42], %49 {strides = array<i32>} : memref<2x32x128xf32, #tpu.memory_space<vmem>>, vector<2x16x128xf32>,
    %c0_43 = arith.constant 0 : index
    %c4 = arith.constant 4 : index
    %c0_44 = arith.constant 0 : index
    %51 = vector.load %arg9[%c0_43, %c4, %c0_44] : memref<2x32x128xf32, #tpu.memory_space<vmem>>, vector<2x16x128xf32>
    %52 = vector.shape_cast %51 : vector<2x16x128xf32> to vector<32x128xf32>
    %c0_45 = arith.constant 0 : index
    %c12 = arith.constant 12 : index
    %c0_46 = arith.constant 0 : index
    %53 = vector.load %arg9[%c0_45, %c12, %c0_46] : memref<2x32x128xf32, #tpu.memory_space<vmem>>, vector<2x16x128xf32>
    %54 = vector.shape_cast %53 : vector<2x16x128xf32> to vector<32x128xf32>
    %55 = arith.truncf %52 : vector<32x128xf32> to vector<32x128xbf16>
    %56 = arith.truncf %48 : vector<32x128xf32> to vector<32x128xbf16>
    %57 = arith.truncf %54 : vector<32x128xf32> to vector<32x128xbf16>
    %58 = tpu.concatenate %55, %56, %57 in 1 : vector<32x128xbf16>, vector<32x128xbf16>, vector<32x128xbf16> -> vector<32x384xbf16>
    %c2 = arith.constant 2 : index
    %c0_47 = arith.constant 0 : index
    %c0_48 = arith.constant 0 : index
    %59 = vector.load %arg4[%c2, %c0_47, %c0_48] : memref<12x384x128xbf16, #tpu.memory_space<vmem>>, vector<1x384x128xbf16>
    %60 = vector.shape_cast %59 : vector<1x384x128xbf16> to vector<384x128xbf16>
    %cst_49 = arith.constant dense<0.000000e+00> : vector<32x128xf32>
    %61 = tpu.matmul %58, %60, %cst_49 {dimension_numbers = #tpu.dot_dimension_numbers<[1], [0], [0], [1], [0, 0, 1, 1], [], []>} : vector<32x384xbf16>, vector<384x128xbf16>, vector<32x128xf32> -> vector<32x128xf32>
    %c2_50 = arith.constant 2 : index
    %c0_51 = arith.constant 0 : index
    %62 = vector.load %arg5[%c2_50, %c0_51] : memref<12x128xf32, #tpu.memory_space<vmem>>, vector<1x128xf32>
    %63 = vector.broadcast %62 : vector<1x128xf32> to vector<32x128xf32>
    %64 = arith.addf %61, %63 : vector<32x128xf32>
    %cst_52 = arith.constant 0.000000e+00 : f32
    %65 = vector.broadcast %cst_52 : f32 to vector<32x128xf32>
    %66 = arith.maximumf %64, %65 : vector<32x128xf32>
    %67 = arith.addf %12, %66 : vector<32x128xf32>
    %68 = vector.shape_cast %7 : vector<32x128xf32> to vector<2x16x128xf32>
    %c0_53 = arith.constant 0 : index
    %c8_54 = arith.constant 8 : index
    %c0_55 = arith.constant 0 : index
    %69 = vector.load %arg9[%c0_53, %c8_54, %c0_55] : memref<2x32x128xf32, #tpu.memory_space<vmem>>, vector<2x16x128xf32>
    tpu.vector_store %arg9[%c0_53, %c8_54, %c0_55], %68 {strides = array<i32>} : memref<2x32x128xf32, #tpu.memory_space<vmem>>, vector<2x16x128xf32>,
    %c0_56 = arith.constant 0 : index
    %c6_57 = arith.constant 6 : index
    %c0_58 = arith.constant 0 : index
    %70 = vector.load %arg9[%c0_56, %c6_57, %c0_58] : memref<2x32x128xf32, #tpu.memory_space<vmem>>, vector<2x16x128xf32>
    %71 = vector.shape_cast %70 : vector<2x16x128xf32> to vector<32x128xf32>
    %c0_59 = arith.constant 0 : index
    %c10_60 = arith.constant 10 : index
    %c0_61 = arith.constant 0 : index
    %72 = vector.load %arg9[%c0_59, %c10_60, %c0_61] : memref<2x32x128xf32, #tpu.memory_space<vmem>>, vector<2x16x128xf32>
    %73 = vector.shape_cast %72 : vector<2x16x128xf32> to vector<32x128xf32>
    %74 = arith.truncf %71 : vector<32x128xf32> to vector<32x128xbf16>
    %75 = arith.truncf %7 : vector<32x128xf32> to vector<32x128xbf16>
    %76 = arith.truncf %73 : vector<32x128xf32> to vector<32x128xbf16>
    %77 = tpu.concatenate %74, %75, %76 in 1 : vector<32x128xbf16>, vector<32x128xbf16>, vector<32x128xbf16> -> vector<32x384xbf16>
    %c3 = arith.constant 3 : index
    %c0_62 = arith.constant 0 : index
    %c0_63 = arith.constant 0 : index
    %78 = vector.load %arg4[%c3, %c0_62, %c0_63] : memref<12x384x128xbf16, #tpu.memory_space<vmem>>, vector<1x384x128xbf16>
    %79 = vector.shape_cast %78 : vector<1x384x128xbf16> to vector<384x128xbf16>
    %cst_64 = arith.constant dense<0.000000e+00> : vector<32x128xf32>
    %80 = tpu.matmul %77, %79, %cst_64 {dimension_numbers = #tpu.dot_dimension_numbers<[1], [0], [0], [1], [0, 0, 1, 1], [], []>} : vector<32x384xbf16>, vector<384x128xbf16>, vector<32x128xf32> -> vector<32x128xf32>
    %c3_65 = arith.constant 3 : index
    %c0_66 = arith.constant 0 : index
    %81 = vector.load %arg5[%c3_65, %c0_66] : memref<12x128xf32, #tpu.memory_space<vmem>>, vector<1x128xf32>
    %82 = vector.broadcast %81 : vector<1x128xf32> to vector<32x128xf32>
    %83 = arith.addf %80, %82 : vector<32x128xf32>
    %cst_67 = arith.constant 0.000000e+00 : f32
    %84 = vector.broadcast %cst_67 : f32 to vector<32x128xf32>
    %85 = arith.maximumf %83, %84 : vector<32x128xf32>
    %86 = vector.shape_cast %85 : vector<32x128xf32> to vector<2x16x128xf32>
    %c0_68 = arith.constant 0 : index
    %c8_69 = arith.constant 8 : index
    %c0_70 = arith.constant 0 : index
    %87 = vector.load %arg9[%c0_68, %c8_69, %c0_70] : memref<2x32x128xf32, #tpu.memory_space<vmem>>, vector<2x16x128xf32>
    tpu.vector_store %arg9[%c0_68, %c8_69, %c0_70], %86 {strides = array<i32>} : memref<2x32x128xf32, #tpu.memory_space<vmem>>, vector<2x16x128xf32>,
    %c0_71 = arith.constant 0 : index
    %c4_72 = arith.constant 4 : index
    %c0_73 = arith.constant 0 : index
    %88 = vector.load %arg9[%c0_71, %c4_72, %c0_73] : memref<2x32x128xf32, #tpu.memory_space<vmem>>, vector<2x16x128xf32>
    %89 = vector.shape_cast %88 : vector<2x16x128xf32> to vector<32x128xf32>
    %c0_74 = arith.constant 0 : index
    %c12_75 = arith.constant 12 : index
    %c0_76 = arith.constant 0 : index
    %90 = vector.load %arg9[%c0_74, %c12_75, %c0_76] : memref<2x32x128xf32, #tpu.memory_space<vmem>>, vector<2x16x128xf32>
    %91 = vector.shape_cast %90 : vector<2x16x128xf32> to vector<32x128xf32>
    %92 = arith.truncf %89 : vector<32x128xf32> to vector<32x128xbf16>
    %93 = arith.truncf %85 : vector<32x128xf32> to vector<32x128xbf16>
    %94 = arith.truncf %91 : vector<32x128xf32> to vector<32x128xbf16>
    %95 = tpu.concatenate %92, %93, %94 in 1 : vector<32x128xbf16>, vector<32x128xbf16>, vector<32x128xbf16> -> vector<32x384xbf16>
    %c4_77 = arith.constant 4 : index
    %c0_78 = arith.constant 0 : index
    %c0_79 = arith.constant 0 : index
    %96 = vector.load %arg4[%c4_77, %c0_78, %c0_79] : memref<12x384x128xbf16, #tpu.memory_space<vmem>>, vector<1x384x128xbf16>
    %97 = vector.shape_cast %96 : vector<1x384x128xbf16> to vector<384x128xbf16>
    %cst_80 = arith.constant dense<0.000000e+00> : vector<32x128xf32>
    %98 = tpu.matmul %95, %97, %cst_80 {dimension_numbers = #tpu.dot_dimension_numbers<[1], [0], [0], [1], [0, 0, 1, 1], [], []>} : vector<32x384xbf16>, vector<384x128xbf16>, vector<32x128xf32> -> vector<32x128xf32>
    %c4_81 = arith.constant 4 : index
    %c0_82 = arith.constant 0 : index
    %99 = vector.load %arg5[%c4_81, %c0_82] : memref<12x128xf32, #tpu.memory_space<vmem>>, vector<1x128xf32>
    %100 = vector.broadcast %99 : vector<1x128xf32> to vector<32x128xf32>
    %101 = arith.addf %98, %100 : vector<32x128xf32>
    %cst_83 = arith.constant 0.000000e+00 : f32
    %102 = vector.broadcast %cst_83 : f32 to vector<32x128xf32>
    %103 = arith.maximumf %101, %102 : vector<32x128xf32>
    %104 = vector.shape_cast %103 : vector<32x128xf32> to vector<2x16x128xf32>
    %c0_84 = arith.constant 0 : index
    %c8_85 = arith.constant 8 : index
    %c0_86 = arith.constant 0 : index
    %105 = vector.load %arg9[%c0_84, %c8_85, %c0_86] : memref<2x32x128xf32, #tpu.memory_space<vmem>>, vector<2x16x128xf32>
    tpu.vector_store %arg9[%c0_84, %c8_85, %c0_86], %104 {strides = array<i32>} : memref<2x32x128xf32, #tpu.memory_space<vmem>>, vector<2x16x128xf32>,
    %c0_87 = arith.constant 0 : index
    %c0_88 = arith.constant 0 : index
    %c0_89 = arith.constant 0 : index
    %106 = vector.load %arg9[%c0_87, %c0_88, %c0_89] : memref<2x32x128xf32, #tpu.memory_space<vmem>>, vector<2x16x128xf32>
    %107 = vector.shape_cast %106 : vector<2x16x128xf32> to vector<32x128xf32>
    %c0_90 = arith.constant 0 : index
    %c16 = arith.constant 16 : index
    %c0_91 = arith.constant 0 : index
    %108 = vector.load %arg9[%c0_90, %c16, %c0_91] : memref<2x32x128xf32, #tpu.memory_space<vmem>>, vector<2x16x128xf32>
    %109 = vector.shape_cast %108 : vector<2x16x128xf32> to vector<32x128xf32>
    %110 = arith.truncf %107 : vector<32x128xf32> to vector<32x128xbf16>
    %111 = arith.truncf %103 : vector<32x128xf32> to vector<32x128xbf16>
    %112 = arith.truncf %109 : vector<32x128xf32> to vector<32x128xbf16>
    %113 = tpu.concatenate %110, %111, %112 in 1 : vector<32x128xbf16>, vector<32x128xbf16>, vector<32x128xbf16> -> vector<32x384xbf16>
    %c5 = arith.constant 5 : index
    %c0_92 = arith.constant 0 : index
    %c0_93 = arith.constant 0 : index
    %114 = vector.load %arg4[%c5, %c0_92, %c0_93] : memref<12x384x128xbf16, #tpu.memory_space<vmem>>, vector<1x384x128xbf16>
    %115 = vector.shape_cast %114 : vector<1x384x128xbf16> to vector<384x128xbf16>
    %cst_94 = arith.constant dense<0.000000e+00> : vector<32x128xf32>
    %116 = tpu.matmul %113, %115, %cst_94 {dimension_numbers = #tpu.dot_dimension_numbers<[1], [0], [0], [1], [0, 0, 1, 1], [], []>} : vector<32x384xbf16>, vector<384x128xbf16>, vector<32x128xf32> -> vector<32x128xf32>
    %c5_95 = arith.constant 5 : index
    %c0_96 = arith.constant 0 : index
    %117 = vector.load %arg5[%c5_95, %c0_96] : memref<12x128xf32, #tpu.memory_space<vmem>>, vector<1x128xf32>
    %118 = vector.broadcast %117 : vector<1x128xf32> to vector<32x128xf32>
    %119 = arith.addf %116, %118 : vector<32x128xf32>
    %cst_97 = arith.constant 0.000000e+00 : f32
    %120 = vector.broadcast %cst_97 : f32 to vector<32x128xf32>
    %121 = arith.maximumf %119, %120 : vector<32x128xf32>
    %122 = arith.addf %67, %121 : vector<32x128xf32>
    %123 = vector.shape_cast %7 : vector<32x128xf32> to vector<2x16x128xf32>
    %c0_98 = arith.constant 0 : index
    %c8_99 = arith.constant 8 : index
    %c0_100 = arith.constant 0 : index
    %124 = vector.load %arg9[%c0_98, %c8_99, %c0_100] : memref<2x32x128xf32, #tpu.memory_space<vmem>>, vector<2x16x128xf32>
    tpu.vector_store %arg9[%c0_98, %c8_99, %c0_100], %123 {strides = array<i32>} : memref<2x32x128xf32, #tpu.memory_space<vmem>>, vector<2x16x128xf32>,
    %c0_101 = arith.constant 0 : index
    %c6_102 = arith.constant 6 : index
    %c0_103 = arith.constant 0 : index
    %125 = vector.load %arg9[%c0_101, %c6_102, %c0_103] : memref<2x32x128xf32, #tpu.memory_space<vmem>>, vector<2x16x128xf32>
    %126 = vector.shape_cast %125 : vector<2x16x128xf32> to vector<32x128xf32>
    %c0_104 = arith.constant 0 : index
    %c10_105 = arith.constant 10 : index
    %c0_106 = arith.constant 0 : index
    %127 = vector.load %arg9[%c0_104, %c10_105, %c0_106] : memref<2x32x128xf32, #tpu.memory_space<vmem>>, vector<2x16x128xf32>
    %128 = vector.shape_cast %127 : vector<2x16x128xf32> to vector<32x128xf32>
    %129 = arith.truncf %126 : vector<32x128xf32> to vector<32x128xbf16>
    %130 = arith.truncf %7 : vector<32x128xf32> to vector<32x128xbf16>
    %131 = arith.truncf %128 : vector<32x128xf32> to vector<32x128xbf16>
    %132 = tpu.concatenate %129, %130, %131 in 1 : vector<32x128xbf16>, vector<32x128xbf16>, vector<32x128xbf16> -> vector<32x384xbf16>
    %c6_107 = arith.constant 6 : index
    %c0_108 = arith.constant 0 : index
    %c0_109 = arith.constant 0 : index
    %133 = vector.load %arg4[%c6_107, %c0_108, %c0_109] : memref<12x384x128xbf16, #tpu.memory_space<vmem>>, vector<1x384x128xbf16>
    %134 = vector.shape_cast %133 : vector<1x384x128xbf16> to vector<384x128xbf16>
    %cst_110 = arith.constant dense<0.000000e+00> : vector<32x128xf32>
    %135 = tpu.matmul %132, %134, %cst_110 {dimension_numbers = #tpu.dot_dimension_numbers<[1], [0], [0], [1], [0, 0, 1, 1], [], []>} : vector<32x384xbf16>, vector<384x128xbf16>, vector<32x128xf32> -> vector<32x128xf32>
    %c6_111 = arith.constant 6 : index
    %c0_112 = arith.constant 0 : index
    %136 = vector.load %arg5[%c6_111, %c0_112] : memref<12x128xf32, #tpu.memory_space<vmem>>, vector<1x128xf32>
    %137 = vector.broadcast %136 : vector<1x128xf32> to vector<32x128xf32>
    %138 = arith.addf %135, %137 : vector<32x128xf32>
    %cst_113 = arith.constant 0.000000e+00 : f32
    %139 = vector.broadcast %cst_113 : f32 to vector<32x128xf32>
    %140 = arith.maximumf %138, %139 : vector<32x128xf32>
    %141 = vector.shape_cast %140 : vector<32x128xf32> to vector<2x16x128xf32>
    %c0_114 = arith.constant 0 : index
    %c8_115 = arith.constant 8 : index
    %c0_116 = arith.constant 0 : index
    %142 = vector.load %arg9[%c0_114, %c8_115, %c0_116] : memref<2x32x128xf32, #tpu.memory_space<vmem>>, vector<2x16x128xf32>
    tpu.vector_store %arg9[%c0_114, %c8_115, %c0_116], %141 {strides = array<i32>} : memref<2x32x128xf32, #tpu.memory_space<vmem>>, vector<2x16x128xf32>,
    %c0_117 = arith.constant 0 : index
    %c4_118 = arith.constant 4 : index
    %c0_119 = arith.constant 0 : index
    %143 = vector.load %arg9[%c0_117, %c4_118, %c0_119] : memref<2x32x128xf32, #tpu.memory_space<vmem>>, vector<2x16x128xf32>
    %144 = vector.shape_cast %143 : vector<2x16x128xf32> to vector<32x128xf32>
    %c0_120 = arith.constant 0 : index
    %c12_121 = arith.constant 12 : index
    %c0_122 = arith.constant 0 : index
    %145 = vector.load %arg9[%c0_120, %c12_121, %c0_122] : memref<2x32x128xf32, #tpu.memory_space<vmem>>, vector<2x16x128xf32>
    %146 = vector.shape_cast %145 : vector<2x16x128xf32> to vector<32x128xf32>
    %147 = arith.truncf %144 : vector<32x128xf32> to vector<32x128xbf16>
    %148 = arith.truncf %140 : vector<32x128xf32> to vector<32x128xbf16>
    %149 = arith.truncf %146 : vector<32x128xf32> to vector<32x128xbf16>
    %150 = tpu.concatenate %147, %148, %149 in 1 : vector<32x128xbf16>, vector<32x128xbf16>, vector<32x128xbf16> -> vector<32x384xbf16>
    %c7_123 = arith.constant 7 : index
    %c0_124 = arith.constant 0 : index
    %c0_125 = arith.constant 0 : index
    %151 = vector.load %arg4[%c7_123, %c0_124, %c0_125] : memref<12x384x128xbf16, #tpu.memory_space<vmem>>, vector<1x384x128xbf16>
    %152 = vector.shape_cast %151 : vector<1x384x128xbf16> to vector<384x128xbf16>
    %cst_126 = arith.constant dense<0.000000e+00> : vector<32x128xf32>
    %153 = tpu.matmul %150, %152, %cst_126 {dimension_numbers = #tpu.dot_dimension_numbers<[1], [0], [0], [1], [0, 0, 1, 1], [], []>} : vector<32x384xbf16>, vector<384x128xbf16>, vector<32x128xf32> -> vector<32x128xf32>
    %c7_127 = arith.constant 7 : index
    %c0_128 = arith.constant 0 : index
    %154 = vector.load %arg5[%c7_127, %c0_128] : memref<12x128xf32, #tpu.memory_space<vmem>>, vector<1x128xf32>
    %155 = vector.broadcast %154 : vector<1x128xf32> to vector<32x128xf32>
    %156 = arith.addf %153, %155 : vector<32x128xf32>
    %cst_129 = arith.constant 0.000000e+00 : f32
    %157 = vector.broadcast %cst_129 : f32 to vector<32x128xf32>
    %158 = arith.maximumf %156, %157 : vector<32x128xf32>
    %159 = vector.shape_cast %158 : vector<32x128xf32> to vector<2x16x128xf32>
    %c0_130 = arith.constant 0 : index
    %c8_131 = arith.constant 8 : index
    %c0_132 = arith.constant 0 : index
    %160 = vector.load %arg9[%c0_130, %c8_131, %c0_132] : memref<2x32x128xf32, #tpu.memory_space<vmem>>, vector<2x16x128xf32>
    tpu.vector_store %arg9[%c0_130, %c8_131, %c0_132], %159 {strides = array<i32>} : memref<2x32x128xf32, #tpu.memory_space<vmem>>, vector<2x16x128xf32>,
    %c0_133 = arith.constant 0 : index
    %c0_134 = arith.constant 0 : index
    %c0_135 = arith.constant 0 : index
    %161 = vector.load %arg9[%c0_133, %c0_134, %c0_135] : memref<2x32x128xf32, #tpu.memory_space<vmem>>, vector<2x16x128xf32>
    %162 = vector.shape_cast %161 : vector<2x16x128xf32> to vector<32x128xf32>
    %c0_136 = arith.constant 0 : index
    %c16_137 = arith.constant 16 : index
    %c0_138 = arith.constant 0 : index
    %163 = vector.load %arg9[%c0_136, %c16_137, %c0_138] : memref<2x32x128xf32, #tpu.memory_space<vmem>>, vector<2x16x128xf32>
    %164 = vector.shape_cast %163 : vector<2x16x128xf32> to vector<32x128xf32>
    %165 = arith.truncf %162 : vector<32x128xf32> to vector<32x128xbf16>
    %166 = arith.truncf %158 : vector<32x128xf32> to vector<32x128xbf16>
    %167 = arith.truncf %164 : vector<32x128xf32> to vector<32x128xbf16>
    %168 = tpu.concatenate %165, %166, %167 in 1 : vector<32x128xbf16>, vector<32x128xbf16>, vector<32x128xbf16> -> vector<32x384xbf16>
    %c8_139 = arith.constant 8 : index
    %c0_140 = arith.constant 0 : index
    %c0_141 = arith.constant 0 : index
    %169 = vector.load %arg4[%c8_139, %c0_140, %c0_141] : memref<12x384x128xbf16, #tpu.memory_space<vmem>>, vector<1x384x128xbf16>
    %170 = vector.shape_cast %169 : vector<1x384x128xbf16> to vector<384x128xbf16>
    %cst_142 = arith.constant dense<0.000000e+00> : vector<32x128xf32>
    %171 = tpu.matmul %168, %170, %cst_142 {dimension_numbers = #tpu.dot_dimension_numbers<[1], [0], [0], [1], [0, 0, 1, 1], [], []>} : vector<32x384xbf16>, vector<384x128xbf16>, vector<32x128xf32> -> vector<32x128xf32>
    %c8_143 = arith.constant 8 : index
    %c0_144 = arith.constant 0 : index
    %172 = vector.load %arg5[%c8_143, %c0_144] : memref<12x128xf32, #tpu.memory_space<vmem>>, vector<1x128xf32>
    %173 = vector.broadcast %172 : vector<1x128xf32> to vector<32x128xf32>
    %174 = arith.addf %171, %173 : vector<32x128xf32>
    %cst_145 = arith.constant 0.000000e+00 : f32
    %175 = vector.broadcast %cst_145 : f32 to vector<32x128xf32>
    %176 = arith.maximumf %174, %175 : vector<32x128xf32>
    %177 = arith.addf %122, %176 : vector<32x128xf32>
    %178 = vector.shape_cast %7 : vector<32x128xf32> to vector<2x16x128xf32>
    %c0_146 = arith.constant 0 : index
    %c8_147 = arith.constant 8 : index
    %c0_148 = arith.constant 0 : index
    %179 = vector.load %arg9[%c0_146, %c8_147, %c0_148] : memref<2x32x128xf32, #tpu.memory_space<vmem>>, vector<2x16x128xf32>
    tpu.vector_store %arg9[%c0_146, %c8_147, %c0_148], %178 {strides = array<i32>} : memref<2x32x128xf32, #tpu.memory_space<vmem>>, vector<2x16x128xf32>,
    %c0_149 = arith.constant 0 : index
    %c6_150 = arith.constant 6 : index
    %c0_151 = arith.constant 0 : index
    %180 = vector.load %arg9[%c0_149, %c6_150, %c0_151] : memref<2x32x128xf32, #tpu.memory_space<vmem>>, vector<2x16x128xf32>
    %181 = vector.shape_cast %180 : vector<2x16x128xf32> to vector<32x128xf32>
    %c0_152 = arith.constant 0 : index
    %c10_153 = arith.constant 10 : index
    %c0_154 = arith.constant 0 : index
    %182 = vector.load %arg9[%c0_152, %c10_153, %c0_154] : memref<2x32x128xf32, #tpu.memory_space<vmem>>, vector<2x16x128xf32>
    %183 = vector.shape_cast %182 : vector<2x16x128xf32> to vector<32x128xf32>
    %184 = arith.truncf %181 : vector<32x128xf32> to vector<32x128xbf16>
    %185 = arith.truncf %7 : vector<32x128xf32> to vector<32x128xbf16>
    %186 = arith.truncf %183 : vector<32x128xf32> to vector<32x128xbf16>
    %187 = tpu.concatenate %184, %185, %186 in 1 : vector<32x128xbf16>, vector<32x128xbf16>, vector<32x128xbf16> -> vector<32x384xbf16>
    %c9_155 = arith.constant 9 : index
    %c0_156 = arith.constant 0 : index
    %c0_157 = arith.constant 0 : index
    %188 = vector.load %arg4[%c9_155, %c0_156, %c0_157] : memref<12x384x128xbf16, #tpu.memory_space<vmem>>, vector<1x384x128xbf16>
    %189 = vector.shape_cast %188 : vector<1x384x128xbf16> to vector<384x128xbf16>
    %cst_158 = arith.constant dense<0.000000e+00> : vector<32x128xf32>
    %190 = tpu.matmul %187, %189, %cst_158 {dimension_numbers = #tpu.dot_dimension_numbers<[1], [0], [0], [1], [0, 0, 1, 1], [], []>} : vector<32x384xbf16>, vector<384x128xbf16>, vector<32x128xf32> -> vector<32x128xf32>
    %c9_159 = arith.constant 9 : index
    %c0_160 = arith.constant 0 : index
    %191 = vector.load %arg5[%c9_159, %c0_160] : memref<12x128xf32, #tpu.memory_space<vmem>>, vector<1x128xf32>
    %192 = vector.broadcast %191 : vector<1x128xf32> to vector<32x128xf32>
    %193 = arith.addf %190, %192 : vector<32x128xf32>
    %cst_161 = arith.constant 0.000000e+00 : f32
    %194 = vector.broadcast %cst_161 : f32 to vector<32x128xf32>
    %195 = arith.maximumf %193, %194 : vector<32x128xf32>
    %196 = vector.shape_cast %195 : vector<32x128xf32> to vector<2x16x128xf32>
    %c0_162 = arith.constant 0 : index
    %c8_163 = arith.constant 8 : index
    %c0_164 = arith.constant 0 : index
    %197 = vector.load %arg9[%c0_162, %c8_163, %c0_164] : memref<2x32x128xf32, #tpu.memory_space<vmem>>, vector<2x16x128xf32>
    tpu.vector_store %arg9[%c0_162, %c8_163, %c0_164], %196 {strides = array<i32>} : memref<2x32x128xf32, #tpu.memory_space<vmem>>, vector<2x16x128xf32>,
    %c0_165 = arith.constant 0 : index
    %c4_166 = arith.constant 4 : index
    %c0_167 = arith.constant 0 : index
    %198 = vector.load %arg9[%c0_165, %c4_166, %c0_167] : memref<2x32x128xf32, #tpu.memory_space<vmem>>, vector<2x16x128xf32>
    %199 = vector.shape_cast %198 : vector<2x16x128xf32> to vector<32x128xf32>
    %c0_168 = arith.constant 0 : index
    %c12_169 = arith.constant 12 : index
    %c0_170 = arith.constant 0 : index
    %200 = vector.load %arg9[%c0_168, %c12_169, %c0_170] : memref<2x32x128xf32, #tpu.memory_space<vmem>>, vector<2x16x128xf32>
    %201 = vector.shape_cast %200 : vector<2x16x128xf32> to vector<32x128xf32>
    %202 = arith.truncf %199 : vector<32x128xf32> to vector<32x128xbf16>
    %203 = arith.truncf %195 : vector<32x128xf32> to vector<32x128xbf16>
    %204 = arith.truncf %201 : vector<32x128xf32> to vector<32x128xbf16>
    %205 = tpu.concatenate %202, %203, %204 in 1 : vector<32x128xbf16>, vector<32x128xbf16>, vector<32x128xbf16> -> vector<32x384xbf16>
    %c10_171 = arith.constant 10 : index
    %c0_172 = arith.constant 0 : index
    %c0_173 = arith.constant 0 : index
    %206 = vector.load %arg4[%c10_171, %c0_172, %c0_173] : memref<12x384x128xbf16, #tpu.memory_space<vmem>>, vector<1x384x128xbf16>
    %207 = vector.shape_cast %206 : vector<1x384x128xbf16> to vector<384x128xbf16>
    %cst_174 = arith.constant dense<0.000000e+00> : vector<32x128xf32>
    %208 = tpu.matmul %205, %207, %cst_174 {dimension_numbers = #tpu.dot_dimension_numbers<[1], [0], [0], [1], [0, 0, 1, 1], [], []>} : vector<32x384xbf16>, vector<384x128xbf16>, vector<32x128xf32> -> vector<32x128xf32>
    %c10_175 = arith.constant 10 : index
    %c0_176 = arith.constant 0 : index
    %209 = vector.load %arg5[%c10_175, %c0_176] : memref<12x128xf32, #tpu.memory_space<vmem>>, vector<1x128xf32>
    %210 = vector.broadcast %209 : vector<1x128xf32> to vector<32x128xf32>
    %211 = arith.addf %208, %210 : vector<32x128xf32>
    %cst_177 = arith.constant 0.000000e+00 : f32
    %212 = vector.broadcast %cst_177 : f32 to vector<32x128xf32>
    %213 = arith.maximumf %211, %212 : vector<32x128xf32>
    %214 = vector.shape_cast %213 : vector<32x128xf32> to vector<2x16x128xf32>
    %c0_178 = arith.constant 0 : index
    %c8_179 = arith.constant 8 : index
    %c0_180 = arith.constant 0 : index
    %215 = vector.load %arg9[%c0_178, %c8_179, %c0_180] : memref<2x32x128xf32, #tpu.memory_space<vmem>>, vector<2x16x128xf32>
    tpu.vector_store %arg9[%c0_178, %c8_179, %c0_180], %214 {strides = array<i32>} : memref<2x32x128xf32, #tpu.memory_space<vmem>>, vector<2x16x128xf32>,
    %c0_181 = arith.constant 0 : index
    %c0_182 = arith.constant 0 : index
    %c0_183 = arith.constant 0 : index
    %216 = vector.load %arg9[%c0_181, %c0_182, %c0_183] : memref<2x32x128xf32, #tpu.memory_space<vmem>>, vector<2x16x128xf32>
    %217 = vector.shape_cast %216 : vector<2x16x128xf32> to vector<32x128xf32>
    %c0_184 = arith.constant 0 : index
    %c16_185 = arith.constant 16 : index
    %c0_186 = arith.constant 0 : index
    %218 = vector.load %arg9[%c0_184, %c16_185, %c0_186] : memref<2x32x128xf32, #tpu.memory_space<vmem>>, vector<2x16x128xf32>
    %219 = vector.shape_cast %218 : vector<2x16x128xf32> to vector<32x128xf32>
    %220 = arith.truncf %217 : vector<32x128xf32> to vector<32x128xbf16>
    %221 = arith.truncf %213 : vector<32x128xf32> to vector<32x128xbf16>
    %222 = arith.truncf %219 : vector<32x128xf32> to vector<32x128xbf16>
    %223 = tpu.concatenate %220, %221, %222 in 1 : vector<32x128xbf16>, vector<32x128xbf16>, vector<32x128xbf16> -> vector<32x384xbf16>
    %c11 = arith.constant 11 : index
    %c0_187 = arith.constant 0 : index
    %c0_188 = arith.constant 0 : index
    %224 = vector.load %arg4[%c11, %c0_187, %c0_188] : memref<12x384x128xbf16, #tpu.memory_space<vmem>>, vector<1x384x128xbf16>
    %225 = vector.shape_cast %224 : vector<1x384x128xbf16> to vector<384x128xbf16>
    %cst_189 = arith.constant dense<0.000000e+00> : vector<32x128xf32>
    %226 = tpu.matmul %223, %225, %cst_189 {dimension_numbers = #tpu.dot_dimension_numbers<[1], [0], [0], [1], [0, 0, 1, 1], [], []>} : vector<32x384xbf16>, vector<384x128xbf16>, vector<32x128xf32> -> vector<32x128xf32>
    %c11_190 = arith.constant 11 : index
    %c0_191 = arith.constant 0 : index
    %227 = vector.load %arg5[%c11_190, %c0_191] : memref<12x128xf32, #tpu.memory_space<vmem>>, vector<1x128xf32>
    %228 = vector.broadcast %227 : vector<1x128xf32> to vector<32x128xf32>
    %229 = arith.addf %226, %228 : vector<32x128xf32>
    %cst_192 = arith.constant 0.000000e+00 : f32
    %230 = vector.broadcast %cst_192 : f32 to vector<32x128xf32>
    %231 = arith.maximumf %229, %230 : vector<32x128xf32>
    %232 = arith.addf %177, %231 : vector<32x128xf32>
    %233 = arith.truncf %232 : vector<32x128xf32> to vector<32x128xbf16>
    %c0_193 = arith.constant 0 : index
    %c0_194 = arith.constant 0 : index
    %234 = vector.load %arg6[%c0_193, %c0_194] : memref<128x512xbf16, #tpu.memory_space<vmem>>, vector<128x512xbf16>
    %cst_195 = arith.constant dense<0.000000e+00> : vector<32x512xf32>
    %235 = tpu.matmul %233, %234, %cst_195 {dimension_numbers = #tpu.dot_dimension_numbers<[1], [0], [0], [1], [0, 0, 1, 1], [], []>} : vector<32x128xbf16>, vector<128x512xbf16>, vector<32x512xf32> -> vector<32x512xf32>
    %c0_196 = arith.constant 0 : index
    %c0_197 = arith.constant 0 : index
    %236 = vector.load %arg7[%c0_196, %c0_197] : memref<1x512xf32, #tpu.memory_space<vmem>>, vector<1x512xf32>
    %237 = vector.broadcast %236 : vector<1x512xf32> to vector<32x512xf32>
    %238 = arith.addf %235, %237 : vector<32x512xf32>
    %239 = arith.addf %1, %238 : vector<32x512xf32>
    %240 = vector.shape_cast %239 : vector<32x512xf32> to vector<2x16x512xf32>
    %c0_198 = arith.constant 0 : index
    %c0_199 = arith.constant 0 : index
    %c0_200 = arith.constant 0 : index
    %241 = vector.load %arg8[%c0_198, %c0_199, %c0_200] : memref<2x16x512xf32, #tpu.memory_space<vmem>>, vector<2x16x512xf32>
    tpu.vector_store %arg8[%c0_198, %c0_199, %c0_200], %240 {strides = array<i32>} : memref<2x16x512xf32, #tpu.memory_space<vmem>>, vector<2x16x512xf32>,
    return
  }
  func.func @transform_0(%arg0: i32) -> (i32, i32, i32) {
    %c0_i32 = arith.constant 0 : i32
    %c0_i32_0 = arith.constant 0 : i32
    %c0_i32_1 = arith.constant 0 : i32
    return %arg0, %c0_i32, %c0_i32_0 : i32, i32, i32
  }
  func.func @transform_1(%arg0: i32) -> (i32, i32) {
    %c0_i32 = arith.constant 0 : i32
    %c0_i32_0 = arith.constant 0 : i32
    %c0_i32_1 = arith.constant 0 : i32
    return %c0_i32, %c0_i32_0 : i32, i32
  }
  func.func @transform_2(%arg0: i32) -> (i32, i32) {
    %c0_i32 = arith.constant 0 : i32
    %c0_i32_0 = arith.constant 0 : i32
    %c0_i32_1 = arith.constant 0 : i32
    return %c0_i32, %c0_i32_0 : i32, i32
  }
  func.func @transform_3(%arg0: i32) -> (i32, i32, i32) {
    %c0_i32 = arith.constant 0 : i32
    %c0_i32_0 = arith.constant 0 : i32
    %c0_i32_1 = arith.constant 0 : i32
    %c0_i32_2 = arith.constant 0 : i32
    return %c0_i32, %c0_i32_0, %c0_i32_1 : i32, i32, i32
  }
  func.func @transform_4(%arg0: i32) -> (i32, i32) {
    %c0_i32 = arith.constant 0 : i32
    %c0_i32_0 = arith.constant 0 : i32
    %c0_i32_1 = arith.constant 0 : i32
    return %c0_i32, %c0_i32_0 : i32, i32
  }
  func.func @transform_5(%arg0: i32) -> (i32, i32) {
    %c0_i32 = arith.constant 0 : i32
    %c0_i32_0 = arith.constant 0 : i32
    %c0_i32_1 = arith.constant 0 : i32
    return %c0_i32, %c0_i32_0 : i32, i32
  }
  func.func @transform_6(%arg0: i32) -> (i32, i32) {
    %c0_i32 = arith.constant 0 : i32
    %c0_i32_0 = arith.constant 0 : i32
    %c0_i32_1 = arith.constant 0 : i32
    return %c0_i32, %c0_i32_0 : i32, i32
  }
  func.func @transform_7(%arg0: i32) -> (i32, i32, i32) {
    %c0_i32 = arith.constant 0 : i32
    %c0_i32_0 = arith.constant 0 : i32
    %c0_i32_1 = arith.constant 0 : i32
    return %arg0, %c0_i32, %c0_i32_0 : i32, i32, i32
  }
}

</mosaic_0001>

<llo_original>
// kernel: tpu_custom_call.1
$region0: #{tpu_custom_call.1}
  #allocation0 [shape = 'u32[]', space=smem, size = 0x4, offset = 0x4, fixed_abs, tag = 'smem constant byte address 0x4 - core index']
  #allocation1 [shape = 'u32[144,128]{1,0:T(1,128)}', space=vmem, size = 0x12000, scoped, tag = 'internal scratch']
  #allocation2 [shape = 'f32[2,32,128]{2,1,0:T(8,128)}', space=vmem, size = 0x8000, scoped, tag = 'scratch operand']
  %s0 = inlined_call_operand.hbm [shape: f32[2,16,512], index: 0, kind: input, shape index: {}]
  %s1 = inlined_call_operand.hbm [shape: bf16[512,128], index: 1, kind: input, shape index: {}]
  %s2 = inlined_call_operand.hbm [shape: f32[1,128], index: 2, kind: input, shape index: {}]
  %s3 = inlined_call_operand.hbm [shape: bf16[12,384,128], index: 3, kind: input, shape index: {}]
  %s4 = inlined_call_operand.hbm [shape: f32[12,128], index: 4, kind: input, shape index: {}]
  %s5 = inlined_call_operand.hbm [shape: bf16[128,512], index: 5, kind: input, shape index: {}]
  %s6 = inlined_call_operand.hbm [shape: f32[1,512], index: 6, kind: input, shape index: {}]
  %s7 = inlined_call_operand.hbm [shape: f32[2,16,512], index: 7, kind: output, shape index: {}]
  %s8 = sld [smem:[#allocation0]]
  $region66: #{tpu_custom_call.1} parent=0
    _
  %s10 = ssub.s32 1, %s8
  %s11 = scalar_select 0, %s10, %s8
  $region1: #{tpu_custom_call.1} parent=0
    #allocation3 [shape = 'u8[65536]{0}', space=vmem, size = 0x10000, scoped, tag = 'input window, operand 0, single buffered']
    #allocation4 [shape = 's32[1]{0}', space=sflag, size = 0x4, scoped, tag = 'scoped memory for tpu_custom_call.1']
    #allocation5 [shape = 's32[1]{0}', space=sflag, size = 0x4, scoped, tag = 'scoped memory for tpu_custom_call.1']
    #allocation6 [shape = 'u8[131072]{0}', space=vmem, size = 0x20000, scoped, tag = 'input window, operand 1, single buffered']
    #allocation7 [shape = 's32[1]{0}', space=sflag, size = 0x4, scoped, tag = 'scoped memory for tpu_custom_call.1']
    #allocation8 [shape = 'u8[512]{0}', space=vmem, size = 0x400, scoped, tag = 'input window, operand 2, single buffered']
    #allocation9 [shape = 'u8[1179648]{0}', space=vmem, size = 0x120000, scoped, tag = 'input window, operand 3, single buffered']
    #allocation10 [shape = 's32[1]{0}', space=sflag, size = 0x4, scoped, tag = 'scoped memory for tpu_custom_call.1']
    #allocation11 [shape = 'u8[8192]{0}', space=vmem, size = 0x2000, scoped, tag = 'input window, operand 4, single buffered']
    #allocation12 [shape = 'u8[131072]{0}', space=vmem, size = 0x20000, scoped, tag = 'input window, operand 5, single buffered']
    #allocation13 [shape = 's32[1]{0}', space=sflag, size = 0x4, scoped, tag = 'scoped memory for tpu_custom_call.1']
    #allocation14 [shape = 'u8[2048]{0}', space=vmem, size = 0x800, scoped, tag = 'input window, operand 6, single buffered']
    #allocation15 [shape = 'u8[65536]{0}', space=vmem, size = 0x10000, scoped, tag = 'output window, operand 0, single buffered']
    %12 = vsyncpa [#allocation4], 0
    %13 = vsyncpa [#allocation7], 0
    %14 = vsyncpa [#allocation10], 0
    %15 = vsyncpa [#allocation13], 0
    %16 = vsyncpa [#allocation5], 0
    // Predicated region
    $region2: #{tpu_custom_call.1} parent=1 // pred_check
      _
    $region3: #{tpu_custom_call.1} parent=1 // pred_check_branch
      %18 = sbr.rel (0) target = $region5
    $region4: #{tpu_custom_call.1} parent=1 // pred_region
      %s20 = ssub.s32 2048, 2048
      %21 = vsyncadd [#allocation4], %s20
      %s22 = sshll.u32 [#allocation3], 4
      %s23 = int_to_ptr.vmem [resolvable:$true] %s22
      %28 = dma.hbm_to_vmem [thread:$0]  %s0, 2048, %s23, [#allocation4], 512, 512, 32
    $region5: #{tpu_custom_call.1} parent=1 // pred_fallthru
      _
    // Predicated region
    $region6: #{tpu_custom_call.1} parent=1 // pred_check
      _
    $region7: #{tpu_custom_call.1} parent=1 // pred_check_branch
      %30 = sbr.rel (0) target = $region9
    $region8: #{tpu_custom_call.1} parent=1 // pred_region
      %s32 = ssub.s32 4096, 4096
      %33 = vsyncadd [#allocation7], %s32
      %s34 = sshll.u32 [#allocation6], 4
      %s35 = int_to_ptr.vmem [resolvable:$true] %s34
      %40 = dma.hbm_to_vmem [thread:$0]  %s1, 4096, %s35, [#allocation7], 64, 64, 4
    $region9: #{tpu_custom_call.1} parent=1 // pred_fallthru
      _
    // Predicated region
    $region10: #{tpu_custom_call.1} parent=1 // pred_check
      _
    $region11: #{tpu_custom_call.1} parent=1 // pred_check_branch
      %42 = sbr.rel (0) target = $region13
    $region12: #{tpu_custom_call.1} parent=1 // pred_region
      %s44 = ssub.s32 16, 16
      %45 = vsyncadd [#allocation7], %s44
      %s47 = sshll.u32 [#allocation8], 4
      %s48 = int_to_ptr.vmem [resolvable:$true] %s47
      %50 = dma.hbm_to_vmem [thread:$0]  %s2, 16, %s48, [#allocation7]
    $region13: #{tpu_custom_call.1} parent=1 // pred_fallthru
      _
    // Predicated region
    $region14: #{tpu_custom_call.1} parent=1 // pred_check
      _
    $region15: #{tpu_custom_call.1} parent=1 // pred_check_branch
      %52 = sbr.rel (0) target = $region17
    $region16: #{tpu_custom_call.1} parent=1 // pred_region
      %s54 = ssub.s32 36864, 36864
      %55 = vsyncadd [#allocation10], %s54
      %s56 = sshll.u32 [#allocation9], 4
      %s57 = int_to_ptr.vmem [resolvable:$true] %s56
      %62 = dma.hbm_to_vmem [thread:$0]  %s3, 36864, %s57, [#allocation10], 64, 64, 4
    $region17: #{tpu_custom_call.1} parent=1 // pred_fallthru
      _
    // Predicated region
    $region18: #{tpu_custom_call.1} parent=1 // pred_check
      _
    $region19: #{tpu_custom_call.1} parent=1 // pred_check_branch
      %64 = sbr.rel (0) target = $region21
    $region20: #{tpu_custom_call.1} parent=1 // pred_region
      %s66 = ssub.s32 256, 256
      %67 = vsyncadd [#allocation10], %s66
      %s68 = sshll.u32 [#allocation11], 4
      %s69 = int_to_ptr.vmem [resolvable:$true] %s68
      %74 = dma.hbm_to_vmem [thread:$0]  %s4, 256, %s69, [#allocation10], 128, 128, 8
    $region21: #{tpu_custom_call.1} parent=1 // pred_fallthru
      _
    // Predicated region
    $region22: #{tpu_custom_call.1} parent=1 // pred_check
      _
    $region23: #{tpu_custom_call.1} parent=1 // pred_check_branch
      %76 = sbr.rel (0) target = $region25
    $region24: #{tpu_custom_call.1} parent=1 // pred_region
      %s78 = ssub.s32 4096, 4096
      %79 = vsyncadd [#allocation13], %s78
      %s80 = sshll.u32 [#allocation12], 4
      %s81 = int_to_ptr.vmem [resolvable:$true] %s80
      %86 = dma.hbm_to_vmem [thread:$0]  %s5, 4096, %s81, [#allocation13], 256, 256, 16
    $region25: #{tpu_custom_call.1} parent=1 // pred_fallthru
      _
    // Predicated region
    $region26: #{tpu_custom_call.1} parent=1 // pred_check
      _
    $region27: #{tpu_custom_call.1} parent=1 // pred_check_branch
      %88 = sbr.rel (0) target = $region29
    $region28: #{tpu_custom_call.1} parent=1 // pred_region
      %s90 = ssub.s32 64, 64
      %91 = vsyncadd [#allocation13], %s90
      %s93 = sshll.u32 [#allocation14], 4
      %s94 = int_to_ptr.vmem [resolvable:$true] %s93
      %96 = dma.hbm_to_vmem [thread:$0]  %s6, 64, %s94, [#allocation13]
    $region29: #{tpu_custom_call.1} parent=1 // pred_fallthru
      _
    // Predicated region
    $region30: #{tpu_custom_call.1} parent=1 // pred_check
      _
    $region31: #{tpu_custom_call.1} parent=1 // pred_check_branch
      %98 = sbr.rel (0) target = $region33
    $region32: #{tpu_custom_call.1} parent=1 // pred_region
      %99 = dma.done [#allocation4], 2048
    $region33: #{tpu_custom_call.1} parent=1 // pred_fallthru
      _
    // Predicated region
    $region34: #{tpu_custom_call.1} parent=1 // pred_check
      _
    $region35: #{tpu_custom_call.1} parent=1 // pred_check_branch
      %101 = sbr.rel (0) target = $region37
    $region36: #{tpu_custom_call.1} parent=1 // pred_region
      %102 = dma.done [#allocation7], 4096
    $region37: #{tpu_custom_call.1} parent=1 // pred_fallthru
      _
    // Predicated region
    $region38: #{tpu_custom_call.1} parent=1 // pred_check
      _
    $region39: #{tpu_custom_call.1} parent=1 // pred_check_branch
      %104 = sbr.rel (0) target = $region41
    $region40: #{tpu_custom_call.1} parent=1 // pred_region
      %105 = dma.done [#allocation7], 16
    $region41: #{tpu_custom_call.1} parent=1 // pred_fallthru
      _
    // Predicated region
    $region42: #{tpu_custom_call.1} parent=1 // pred_check
      _
    $region43: #{tpu_custom_call.1} parent=1 // pred_check_branch
      %107 = sbr.rel (0) target = $region45
    $region44: #{tpu_custom_call.1} parent=1 // pred_region
      %108 = dma.done [#allocation10], 36864
    $region45: #{tpu_custom_call.1} parent=1 // pred_fallthru
      _
    // Predicated region
    $region46: #{tpu_custom_call.1} parent=1 // pred_check
      _
    $region47: #{tpu_custom_call.1} parent=1 // pred_check_branch
      %110 = sbr.rel (0) target = $region49
    $region48: #{tpu_custom_call.1} parent=1 // pred_region
      %111 = dma.done [#allocation10], 256
    $region49: #{tpu_custom_call.1} parent=1 // pred_fallthru
      _
    // Predicated region
    $region50: #{tpu_custom_call.1} parent=1 // pred_check
      _
    $region51: #{tpu_custom_call.1} parent=1 // pred_check_branch
      %113 = sbr.rel (0) target = $region53
    $region52: #{tpu_custom_call.1} parent=1 // pred_region
      %114 = dma.done [#allocation13], 4096
    $region53: #{tpu_custom_call.1} parent=1 // pred_fallthru
      _
    // Predicated region
    $region54: #{tpu_custom_call.1} parent=1 // pred_check
      _
    $region55: #{tpu_custom_call.1} parent=1 // pred_check_branch
      %116 = sbr.rel (0) target = $region57
    $region56: #{tpu_custom_call.1} parent=1 // pred_region
      %117 = dma.done [#allocation13], 64
    $region57: #{tpu_custom_call.1} parent=1 // pred_fallthru
      _
    %v119 = vld [vmem:[#allocation3] sm:$0xff]
    %v120 = vld [vmem:[#allocation3 + $0x8] sm:$0xff]
    %v121 = vld [vmem:[#allocation3 + $0x10] sm:$0xff]
    %v122 = vld [vmem:[#allocation3 + $0x18] sm:$0xff]
    %v123 = vld [vmem:[#allocation3 + $0x20] sm:$0xff]
    %v124 = vld [vmem:[#allocation3 + $0x28] sm:$0xff]
    %v125 = vld [vmem:[#allocation3 + $0x30] sm:$0xff]
    %v126 = vld [vmem:[#allocation3 + $0x38] sm:$0xff]
    %v127 = vld [vmem:[#allocation3 + $0x40] sm:$0xff]
    %v128 = vld [vmem:[#allocation3 + $0x48] sm:$0xff]
    %v129 = vld [vmem:[#allocation3 + $0x50] sm:$0xff]
    %v130 = vld [vmem:[#allocation3 + $0x58] sm:$0xff]
    %v131 = vld [vmem:[#allocation3 + $0x60] sm:$0xff]
    %v132 = vld [vmem:[#allocation3 + $0x68] sm:$0xff]
    %v133 = vld [vmem:[#allocation3 + $0x70] sm:$0xff]
    %v134 = vld [vmem:[#allocation3 + $0x78] sm:$0xff]
    %v135 = vpack.c.bf16 %v123, %v119
    %v136 = vpack.c.bf16 %v124, %v120
    %v137 = vpack.c.bf16 %v125, %v121
    %v138 = vpack.c.bf16 %v126, %v122
    %v139 = vpack.c.bf16 %v131, %v127
    %v140 = vpack.c.bf16 %v132, %v128
    %v141 = vpack.c.bf16 %v133, %v129
    %v142 = vpack.c.bf16 %v134, %v130
    %v143 = vld [vmem:[#allocation6] sm:$0xf]
    %v144 = vld [vmem:[#allocation6 + $0x4] sm:$0xf]
    %v145 = vld [vmem:[#allocation6 + $0x8] sm:$0xf]
    %v146 = vld [vmem:[#allocation6 + $0xc] sm:$0xf]
    %v147 = vld [vmem:[#allocation6 + $0x10] sm:$0xf]
    %v148 = vld [vmem:[#allocation6 + $0x14] sm:$0xf]
    %v149 = vld [vmem:[#allocation6 + $0x18] sm:$0xf]
    %v150 = vld [vmem:[#allocation6 + $0x1c] sm:$0xf]
    %v151 = vld [vmem:[#allocation6 + $0x20] sm:$0xf]
    %v152 = vld [vmem:[#allocation6 + $0x24] sm:$0xf]
    %v153 = vld [vmem:[#allocation6 + $0x28] sm:$0xf]
    %v154 = vld [vmem:[#allocation6 + $0x2c] sm:$0xf]
    %v155 = vld [vmem:[#allocation6 + $0x30] sm:$0xf]
    %v156 = vld [vmem:[#allocation6 + $0x34] sm:$0xf]
    %v157 = vld [vmem:[#allocation6 + $0x38] sm:$0xf]
    %v158 = vld [vmem:[#allocation6 + $0x3c] sm:$0xf]
    %v159 = vld [vmem:[#allocation6 + $0x40] sm:$0xf]
    %v160 = vld [vmem:[#allocation6 + $0x44] sm:$0xf]
    %v161 = vld [vmem:[#allocation6 + $0x48] sm:$0xf]
    %v162 = vld [vmem:[#allocation6 + $0x4c] sm:$0xf]
    %v163 = vld [vmem:[#allocation6 + $0x50] sm:$0xf]
    %v164 = vld [vmem:[#allocation6 + $0x54] sm:$0xf]
    %v165 = vld [vmem:[#allocation6 + $0x58] sm:$0xf]
    %v166 = vld [vmem:[#allocation6 + $0x5c] sm:$0xf]
    %v167 = vld [vmem:[#allocation6 + $0x60] sm:$0xf]
    %v168 = vld [vmem:[#allocation6 + $0x64] sm:$0xf]
    %v169 = vld [vmem:[#allocation6 + $0x68] sm:$0xf]
    %v170 = vld [vmem:[#allocation6 + $0x6c] sm:$0xf]
    %v171 = vld [vmem:[#allocation6 + $0x70] sm:$0xf]
    %v172 = vld [vmem:[#allocation6 + $0x74] sm:$0xf]
    %v173 = vld [vmem:[#allocation6 + $0x78] sm:$0xf]
    %v174 = vld [vmem:[#allocation6 + $0x7c] sm:$0xf]
    %v175 = vld [vmem:[#allocation6 + $0x80] sm:$0xf]
    %v176 = vld [vmem:[#allocation6 + $0x84] sm:$0xf]
    %v177 = vld [vmem:[#allocation6 + $0x88] sm:$0xf]
    %v178 = vld [vmem:[#allocation6 + $0x8c] sm:$0xf]
    %v179 = vld [vmem:[#allocation6 + $0x90] sm:$0xf]
    %v180 = vld [vmem:[#allocation6 + $0x94] sm:$0xf]
    %v181 = vld [vmem:[#allocation6 + $0x98] sm:$0xf]
    %v182 = vld [vmem:[#allocation6 + $0x9c] sm:$0xf]
    %v183 = vld [vmem:[#allocation6 + $0xa0] sm:$0xf]
    %v184 = vld [vmem:[#allocation6 + $0xa4] sm:$0xf]
    %v185 = vld [vmem:[#allocation6 + $0xa8] sm:$0xf]
    %v186 = vld [vmem:[#allocation6 + $0xac] sm:$0xf]
    %v187 = vld [vmem:[#allocation6 + $0xb0] sm:$0xf]
    %v188 = vld [vmem:[#allocation6 + $0xb4] sm:$0xf]
    %v189 = vld [vmem:[#allocation6 + $0xb8] sm:$0xf]
    %v190 = vld [vmem:[#allocation6 + $0xbc] sm:$0xf]
    %v191 = vld [vmem:[#allocation6 + $0xc0] sm:$0xf]
    %v192 = vld [vmem:[#allocation6 + $0xc4] sm:$0xf]
    %v193 = vld [vmem:[#allocation6 + $0xc8] sm:$0xf]
    %v194 = vld [vmem:[#allocation6 + $0xcc] sm:$0xf]
    %v195 = vld [vmem:[#allocation6 + $0xd0] sm:$0xf]
    %v196 = vld [vmem:[#allocation6 + $0xd4] sm:$0xf]
    %v197 = vld [vmem:[#allocation6 + $0xd8] sm:$0xf]
    %v198 = vld [vmem:[#allocation6 + $0xdc] sm:$0xf]
    %v199 = vld [vmem:[#allocation6 + $0xe0] sm:$0xf]
    %v200 = vld [vmem:[#allocation6 + $0xe4] sm:$0xf]
    %v201 = vld [vmem:[#allocation6 + $0xe8] sm:$0xf]
    %v202 = vld [vmem:[#allocation6 + $0xec] sm:$0xf]
    %v203 = vld [vmem:[#allocation6 + $0xf0] sm:$0xf]
    %v204 = vld [vmem:[#allocation6 + $0xf4] sm:$0xf]
    %v205 = vld [vmem:[#allocation6 + $0xf8] sm:$0xf]
    %v206 = vld [vmem:[#allocation6 + $0xfc] sm:$0xf]
    %v207 = vld [vmem:[#allocation8] sm:$0x1]
    %v209 = vlaneseq
    %v210 = vshrl.u32 %v209, 7
    %v211 = vsub.s32 0, %v210
    %v212 = vrot.slane %v207, %v211
    %v278 = vunpack.c.l.b16 %v143
    %v279 = vunpack.c.l.b16 %v144
    %v280 = vunpack.c.l.b16 %v145
    %v281 = vunpack.c.l.b16 %v146
    %v282 = vunpack.c.l.b16 %v147
    %v283 = vunpack.c.l.b16 %v148
    %v284 = vunpack.c.l.b16 %v149
    %v285 = vunpack.c.l.b16 %v150
    %v286 = vunpack.c.l.b16 %v151
    %v287 = vunpack.c.l.b16 %v152
    %v288 = vunpack.c.l.b16 %v153
    %v289 = vunpack.c.l.b16 %v154
    %v290 = vunpack.c.l.b16 %v155
    %v291 = vunpack.c.l.b16 %v156
    %v292 = vunpack.c.l.b16 %v157
    %v293 = vunpack.c.l.b16 %v158
    %v294 = vunpack.c.l.b16 %v159
    %v295 = vunpack.c.l.b16 %v160
    %v296 = vunpack.c.l.b16 %v161
    %v297 = vunpack.c.l.b16 %v162
    %v298 = vunpack.c.l.b16 %v163
    %v299 = vunpack.c.l.b16 %v164
    %v300 = vunpack.c.l.b16 %v165
    %v301 = vunpack.c.l.b16 %v166
    %v302 = vunpack.c.l.b16 %v167
    %v303 = vunpack.c.l.b16 %v168
    %v304 = vunpack.c.l.b16 %v169
    %v305 = vunpack.c.l.b16 %v170
    %v306 = vunpack.c.l.b16 %v171
    %v307 = vunpack.c.l.b16 %v172
    %v308 = vunpack.c.l.b16 %v173
    %v309 = vunpack.c.l.b16 %v174
    %v310 = vunpack.c.l.b16 %v175
    %v311 = vunpack.c.l.b16 %v176
    %v312 = vunpack.c.l.b16 %v177
    %v313 = vunpack.c.l.b16 %v178
    %v314 = vunpack.c.l.b16 %v179
    %v315 = vunpack.c.l.b16 %v180
    %v316 = vunpack.c.l.b16 %v181
    %v317 = vunpack.c.l.b16 %v182
    %v318 = vunpack.c.l.b16 %v183
    %v319 = vunpack.c.l.b16 %v184
    %v320 = vunpack.c.l.b16 %v185
    %v321 = vunpack.c.l.b16 %v186
    %v322 = vunpack.c.l.b16 %v187
    %v323 = vunpack.c.l.b16 %v188
    %v324 = vunpack.c.l.b16 %v189
    %v325 = vunpack.c.l.b16 %v190
    %v326 = vunpack.c.l.b16 %v191
    %v327 = vunpack.c.l.b16 %v192
    %v328 = vunpack.c.l.b16 %v193
    %v329 = vunpack.c.l.b16 %v194
    %v330 = vunpack.c.l.b16 %v195
    %v331 = vunpack.c.l.b16 %v196
    %v332 = vunpack.c.l.b16 %v197
    %v333 = vunpack.c.l.b16 %v198
    %v334 = vunpack.c.l.b16 %v199
    %v335 = vunpack.c.l.b16 %v200
    %v336 = vunpack.c.l.b16 %v201
    %v337 = vunpack.c.l.b16 %v202
    %v338 = vunpack.c.l.b16 %v203
    %v339 = vunpack.c.l.b16 %v204
    %v340 = vunpack.c.l.b16 %v205
    %v341 = vunpack.c.l.b16 %v206
    %v342 = vpack.c.b16 %v279, %v278
    %v343 = vpack.c.b16 %v281, %v280
    %v344 = vpack.c.b16 %v283, %v282
    %v345 = vpack.c.b16 %v285, %v284
    %v346 = vpack.c.b16 %v287, %v286
    %v347 = vpack.c.b16 %v289, %v288
    %v348 = vpack.c.b16 %v291, %v290
    %v349 = vpack.c.b16 %v293, %v292
    %v350 = vpack.c.b16 %v295, %v294
    %v351 = vpack.c.b16 %v297, %v296
    %v352 = vpack.c.b16 %v299, %v298
    %v353 = vpack.c.b16 %v301, %v300
    %v354 = vpack.c.b16 %v303, %v302
    %v355 = vpack.c.b16 %v305, %v304
    %v356 = vpack.c.b16 %v307, %v306
    %v357 = vpack.c.b16 %v309, %v308
    %v358 = vpack.c.b16 %v311, %v310
    %v359 = vpack.c.b16 %v313, %v312
    %v360 = vpack.c.b16 %v315, %v314
    %v361 = vpack.c.b16 %v317, %v316
    %v362 = vpack.c.b16 %v319, %v318
    %v363 = vpack.c.b16 %v321, %v320
    %v364 = vpack.c.b16 %v323, %v322
    %v365 = vpack.c.b16 %v325, %v324
    %v366 = vpack.c.b16 %v327, %v326
    %v367 = vpack.c.b16 %v329, %v328
    %v368 = vpack.c.b16 %v331, %v330
    %v369 = vpack.c.b16 %v333, %v332
    %v370 = vpack.c.b16 %v335, %v334
    %v371 = vpack.c.b16 %v337, %v336
    %v372 = vpack.c.b16 %v339, %v338
    %v373 = vpack.c.b16 %v341, %v340
    %406 = vmatprep.subr.bf16.mxu0 0
    %407 = vmatpush1.bf16.msra.mxu0 %v342
    %408 = vmatprep.subr.bf16.mxu0 0
    %409 = vmatpush1.bf16.msra.mxu0 %v343
    %410 = vmatprep.subr.bf16.mxu0 0
    %411 = vmatpush1.bf16.msra.mxu0 %v344
    %412 = vmatprep.subr.bf16.mxu0 0
    %413 = vmatpush1.bf16.msra.mxu0 %v345
    %414 = vmatprep.subr.bf16.mxu0 0
    %415 = vmatpush1.bf16.msra.mxu0 %v346
    %416 = vmatprep.subr.bf16.mxu0 0
    %417 = vmatpush1.bf16.msra.mxu0 %v347
    %418 = vmatprep.subr.bf16.mxu0 0
    %419 = vmatpush1.bf16.msra.mxu0 %v348
    %420 = vmatprep.subr.bf16.mxu0 0
    %421 = vmatpush1.bf16.msra.mxu0 %v349
    %422 = vmatprep.subr.bf16.mxu0 0
    %423 = vmatpush1.bf16.msra.mxu0 %v350
    %424 = vmatprep.subr.bf16.mxu0 0
    %425 = vmatpush1.bf16.msra.mxu0 %v351
    %426 = vmatprep.subr.bf16.mxu0 0
    %427 = vmatpush1.bf16.msra.mxu0 %v352
    %428 = vmatprep.subr.bf16.mxu0 0
    %429 = vmatpush1.bf16.msra.mxu0 %v353
    %430 = vmatprep.subr.bf16.mxu0 0
    %431 = vmatpush1.bf16.msra.mxu0 %v354
    %432 = vmatprep.subr.bf16.mxu0 0
    %433 = vmatpush1.bf16.msra.mxu0 %v355
    %434 = vmatprep.subr.bf16.mxu0 0
    %435 = vmatpush1.bf16.msra.mxu0 %v356
    %436 = vmatprep.subr.bf16.mxu0 0
    %437 = vmatpush1.bf16.msra.mxu0 %v357
    %438 = vmatprep.mubr.bf16.mxu0 %v136
    %439 = vmatmul.mubr.bf16.gmra.mrb[0].mxu0 %v135
    %v440 = vpop.f32.mrb[0].mxu0
    %v441 = vadd.f32 %v212, %v440
    %v442 = vpop.f32.mrb[0].mxu0
    %v443 = vpop.f32.mrb[0].mxu0
    %v444 = vadd.f32 %v212, %v443
    %v445 = vpop.f32.mrb[0].mxu0
    %446 = vmatprep.mubr.bf16.mxu0 %v140
    %447 = vmatmul.mubr.bf16.gmra.mrb[0].mxu0 %v139
    %v448 = vpop.f32.mrb[0].mxu0
    %v449 = vadd.f32 %v212, %v448
    %v450 = vpop.f32.mrb[0].mxu0
    %v451 = vpop.f32.mrb[0].mxu0
    %v452 = vadd.f32 %v212, %v451
    %v453 = vpop.f32.mrb[0].mxu0
    %454 = vdwg.mxu0
    %455 = vmatprep.subr.bf16.mxu0 0
    %456 = vmatpush1.bf16.msra.mxu0 %v358
    %457 = vmatprep.subr.bf16.mxu0 0
    %458 = vmatpush1.bf16.msra.mxu0 %v359
    %459 = vmatprep.subr.bf16.mxu0 0
    %460 = vmatpush1.bf16.msra.mxu0 %v360
    %461 = vmatprep.subr.bf16.mxu0 0
    %462 = vmatpush1.bf16.msra.mxu0 %v361
    %463 = vmatprep.subr.bf16.mxu0 0
    %464 = vmatpush1.bf16.msra.mxu0 %v362
    %465 = vmatprep.subr.bf16.mxu0 0
    %466 = vmatpush1.bf16.msra.mxu0 %v363
    %467 = vmatprep.subr.bf16.mxu0 0
    %468 = vmatpush1.bf16.msra.mxu0 %v364
    %469 = vmatprep.subr.bf16.mxu0 0
    %470 = vmatpush1.bf16.msra.mxu0 %v365
    %471 = vmatprep.subr.bf16.mxu0 0
    %472 = vmatpush1.bf16.msra.mxu0 %v366
    %473 = vmatprep.subr.bf16.mxu0 0
    %474 = vmatpush1.bf16.msra.mxu0 %v367
    %475 = vmatprep.subr.bf16.mxu0 0
    %476 = vmatpush1.bf16.msra.mxu0 %v368
    %477 = vmatprep.subr.bf16.mxu0 0
    %478 = vmatpush1.bf16.msra.mxu0 %v369
    %479 = vmatprep.subr.bf16.mxu0 0
    %480 = vmatpush1.bf16.msra.mxu0 %v370
    %481 = vmatprep.subr.bf16.mxu0 0
    %482 = vmatpush1.bf16.msra.mxu0 %v371
    %483 = vmatprep.subr.bf16.mxu0 0
    %484 = vmatpush1.bf16.msra.mxu0 %v372
    %485 = vmatprep.subr.bf16.mxu0 0
    %486 = vmatpush1.bf16.msra.mxu0 %v373
    %487 = vmatprep.mubr.bf16.mxu0 %v138
    %488 = vmatmul.mubr.bf16.gmra.mrb[0].mxu0 %v137
    %v489 = vpop.f32.mrb[0].mxu0
    %v490 = vadd.f32 %v441, %v489
    %v491 = vpop.f32.mrb[0].mxu0
    %v492 = vpop.f32.mrb[0].mxu0
    %v493 = vadd.f32 %v444, %v492
    %v494 = vpop.f32.mrb[0].mxu0
    %495 = vmatprep.mubr.bf16.mxu0 %v142
    %496 = vmatmul.mubr.bf16.gmra.mrb[0].mxu0 %v141
    %v497 = vpop.f32.mrb[0].mxu0
    %v498 = vadd.f32 %v449, %v497
    %v499 = vpop.f32.mrb[0].mxu0
    %v500 = vpop.f32.mrb[0].mxu0
    %v501 = vadd.f32 %v452, %v500
    %v502 = vpop.f32.mrb[0].mxu0
    %503 = vdwg.mxu0
    %504 = vst [vmem:[#allocation2] sm:$0xff] 0.0
    %505 = vst [vmem:[#allocation2 + $0x20] sm:$0xff] 0.0
    %506 = vst [vmem:[#allocation2 + $0x18] sm:$0xff] 0.0
    %507 = vst [vmem:[#allocation2 + $0x38] sm:$0xff] 0.0
    %508 = vst [vmem:[#allocation2 + $0x8] sm:$0xff] %v490
    %509 = vst [vmem:[#allocation2 + $0x10] sm:$0xff] %v493
    %510 = vst [vmem:[#allocation2 + $0x28] sm:$0xff] %v498
    %511 = vst [vmem:[#allocation2 + $0x30] sm:$0xff] %v501
    %v512 = vld [vmem:[#allocation2 + $0x7] sm:$0xff]
    %v513 = vld [vmem:[#allocation2 + $0xf] sm:$0xff]
    %v514 = vld [vmem:[#allocation2 + $0x27] sm:$0xff]
    %v515 = vld [vmem:[#allocation2 + $0x2f] sm:$0xff]
    %v516 = vld [vmem:[#allocation2 + $0x9] sm:$0xff]
    %v517 = vld [vmem:[#allocation2 + $0x11] sm:$0xff]
    %v518 = vld [vmem:[#allocation2 + $0x29] sm:$0xff]
    %v519 = vld [vmem:[#allocation2 + $0x31] sm:$0xff]
    %v520 = vpack.c.bf16 %v513, %v512
    %v521 = vpack.c.bf16 %v515, %v514
    %v522 = vpack.c.bf16 %v493, %v490
    %v523 = vpack.c.bf16 %v501, %v498
    %v524 = vpack.c.bf16 %v517, %v516
    %v525 = vpack.c.bf16 %v519, %v518
    %v526 = vld [vmem:[#allocation9] sm:$0xf]
    %v527 = vld [vmem:[#allocation9 + $0x4] sm:$0xf]
    %v528 = vld [vmem:[#allocation9 + $0x8] sm:$0xf]
    %v529 = vld [vmem:[#allocation9 + $0xc] sm:$0xf]
    %v530 = vld [vmem:[#allocation9 + $0x10] sm:$0xf]
    %v531 = vld [vmem:[#allocation9 + $0x14] sm:$0xf]
    %v532 = vld [vmem:[#allocation9 + $0x18] sm:$0xf]
    %v533 = vld [vmem:[#allocation9 + $0x1c] sm:$0xf]
    %v534 = vld [vmem:[#allocation9 + $0x20] sm:$0xf]
    %v535 = vld [vmem:[#allocation9 + $0x24] sm:$0xf]
    %v536 = vld [vmem:[#allocation9 + $0x28] sm:$0xf]
    %v537 = vld [vmem:[#allocation9 + $0x2c] sm:$0xf]
    %v538 = vld [vmem:[#allocation9 + $0x30] sm:$0xf]
    %v539 = vld [vmem:[#allocation9 + $0x34] sm:$0xf]
    %v540 = vld [vmem:[#allocation9 + $0x38] sm:$0xf]
    %v541 = vld [vmem:[#allocation9 + $0x3c] sm:$0xf]
    %v542 = vld [vmem:[#allocation9 + $0x40] sm:$0xf]
    %v543 = vld [vmem:[#allocation9 + $0x44] sm:$0xf]
    %v544 = vld [vmem:[#allocation9 + $0x48] sm:$0xf]
    %v545 = vld [vmem:[#allocation9 + $0x4c] sm:$0xf]
    %v546 = vld [vmem:[#allocation9 + $0x50] sm:$0xf]
    %v547 = vld [vmem:[#allocation9 + $0x54] sm:$0xf]
    %v548 = vld [vmem:[#allocation9 + $0x58] sm:$0xf]
    %v549 = vld [vmem:[#allocation9 + $0x5c] sm:$0xf]
    %v550 = vld [vmem:[#allocation9 + $0x60] sm:$0xf]
    %v551 = vld [vmem:[#allocation9 + $0x64] sm:$0xf]
    %v552 = vld [vmem:[#allocation9 + $0x68] sm:$0xf]
    %v553 = vld [vmem:[#allocation9 + $0x6c] sm:$0xf]
    %v554 = vld [vmem:[#allocation9 + $0x70] sm:$0xf]
    %v555 = vld [vmem:[#allocation9 + $0x74] sm:$0xf]
    %v556 = vld [vmem:[#allocation9 + $0x78] sm:$0xf]
    %v557 = vld [vmem:[#allocation9 + $0x7c] sm:$0xf]
    %v558 = vld [vmem:[#allocation9 + $0x80] sm:$0xf]
    %v559 = vld [vmem:[#allocation9 + $0x84] sm:$0xf]
    %v560 = vld [vmem:[#allocation9 + $0x88] sm:$0xf]
    %v561 = vld [vmem:[#allocation9 + $0x8c] sm:$0xf]
    %v562 = vld [vmem:[#allocation9 + $0x90] sm:$0xf]
    %v563 = vld [vmem:[#allocation9 + $0x94] sm:$0xf]
    %v564 = vld [vmem:[#allocation9 + $0x98] sm:$0xf]
    %v565 = vld [vmem:[#allocation9 + $0x9c] sm:$0xf]
    %v566 = vld [vmem:[#allocation9 + $0xa0] sm:$0xf]
    %v567 = vld [vmem:[#allocation9 + $0xa4] sm:$0xf]
    %v568 = vld [vmem:[#allocation9 + $0xa8] sm:$0xf]
    %v569 = vld [vmem:[#allocation9 + $0xac] sm:$0xf]
    %v570 = vld [vmem:[#allocation9 + $0xb0] sm:$0xf]
    %v571 = vld [vmem:[#allocation9 + $0xb4] sm:$0xf]
    %v572 = vld [vmem:[#allocation9 + $0xb8] sm:$0xf]
    %v573 = vld [vmem:[#allocation9 + $0xbc] sm:$0xf]
    %v574 = vld [vmem:[#allocation11] sm:$0x1]
    %v575 = vlaneseq
    %v576 = vshrl.u32 %v575, 7
    %v577 = vsub.s32 0, %v576
    %v578 = vrot.slane %v574, %v577
    %v627 = vunpack.c.l.b16 %v526
    %v628 = vunpack.c.l.b16 %v527
    %v629 = vunpack.c.l.b16 %v528
    %v630 = vunpack.c.l.b16 %v529
    %v631 = vunpack.c.l.b16 %v530
    %v632 = vunpack.c.l.b16 %v531
    %v633 = vunpack.c.l.b16 %v532
    %v634 = vunpack.c.l.b16 %v533
    %v635 = vunpack.c.l.b16 %v534
    %v636 = vunpack.c.l.b16 %v535
    %v637 = vunpack.c.l.b16 %v536
    %v638 = vunpack.c.l.b16 %v537
    %v639 = vunpack.c.l.b16 %v538
    %v640 = vunpack.c.l.b16 %v539
    %v641 = vunpack.c.l.b16 %v540
    %v642 = vunpack.c.l.b16 %v541
    %v643 = vunpack.c.l.b16 %v542
    %v644 = vunpack.c.l.b16 %v543
    %v645 = vunpack.c.l.b16 %v544
    %v646 = vunpack.c.l.b16 %v545
    %v647 = vunpack.c.l.b16 %v546
    %v648 = vunpack.c.l.b16 %v547
    %v649 = vunpack.c.l.b16 %v548
    %v650 = vunpack.c.l.b16 %v549
    %v651 = vunpack.c.l.b16 %v550
    %v652 = vunpack.c.l.b16 %v551
    %v653 = vunpack.c.l.b16 %v552
    %v654 = vunpack.c.l.b16 %v553
    %v655 = vunpack.c.l.b16 %v554
    %v656 = vunpack.c.l.b16 %v555
    %v657 = vunpack.c.l.b16 %v556
    %v658 = vunpack.c.l.b16 %v557
    %v659 = vunpack.c.l.b16 %v558
    %v660 = vunpack.c.l.b16 %v559
    %v661 = vunpack.c.l.b16 %v560
    %v662 = vunpack.c.l.b16 %v561
    %v663 = vunpack.c.l.b16 %v562
    %v664 = vunpack.c.l.b16 %v563
    %v665 = vunpack.c.l.b16 %v564
    %v666 = vunpack.c.l.b16 %v565
    %v667 = vunpack.c.l.b16 %v566
    %v668 = vunpack.c.l.b16 %v567
    %v669 = vunpack.c.l.b16 %v568
    %v670 = vunpack.c.l.b16 %v569
    %v671 = vunpack.c.l.b16 %v570
    %v672 = vunpack.c.l.b16 %v571
    %v673 = vunpack.c.l.b16 %v572
    %v674 = vunpack.c.l.b16 %v573
    %v675 = vpack.c.b16 %v628, %v627
    %v676 = vpack.c.b16 %v630, %v629
    %v677 = vpack.c.b16 %v632, %v631
    %v678 = vpack.c.b16 %v634, %v633
    %v679 = vpack.c.b16 %v636, %v635
    %v680 = vpack.c.b16 %v638, %v637
    %v681 = vpack.c.b16 %v640, %v639
    %v682 = vpack.c.b16 %v642, %v641
    %v683 = vpack.c.b16 %v644, %v643
    %v684 = vpack.c.b16 %v646, %v645
    %v685 = vpack.c.b16 %v648, %v647
    %v686 = vpack.c.b16 %v650, %v649
    %v687 = vpack.c.b16 %v652, %v651
    %v688 = vpack.c.b16 %v654, %v653
    %v689 = vpack.c.b16 %v656, %v655
    %v690 = vpack.c.b16 %v658, %v657
    %v691 = vpack.c.b16 %v660, %v659
    %v692 = vpack.c.b16 %v662, %v661
    %v693 = vpack.c.b16 %v664, %v663
    %v694 = vpack.c.b16 %v666, %v665
    %v695 = vpack.c.b16 %v668, %v667
    %v696 = vpack.c.b16 %v670, %v669
    %v697 = vpack.c.b16 %v672, %v671
    %v698 = vpack.c.b16 %v674, %v673
    %723 = vmatprep.subr.bf16.mxu0 0
    %724 = vmatpush1.bf16.msra.mxu0 %v675
    %725 = vmatprep.subr.bf16.mxu0 0
    %726 = vmatpush1.bf16.msra.mxu0 %v676
    %727 = vmatprep.subr.bf16.mxu0 0
    %728 = vmatpush1.bf16.msra.mxu0 %v677
    %729 = vmatprep.subr.bf16.mxu0 0
    %730 = vmatpush1.bf16.msra.mxu0 %v678
    %731 = vmatprep.subr.bf16.mxu0 0
    %732 = vmatpush1.bf16.msra.mxu0 %v679
    %733 = vmatprep.subr.bf16.mxu0 0
    %734 = vmatpush1.bf16.msra.mxu0 %v680
    %735 = vmatprep.subr.bf16.mxu0 0
    %736 = vmatpush1.bf16.msra.mxu0 %v681
    %737 = vmatprep.subr.bf16.mxu0 0
    %738 = vmatpush1.bf16.msra.mxu0 %v682
    %739 = vmatprep.subr.bf16.mxu0 0
    %740 = vmatpush1.bf16.msra.mxu0 %v683
    %741 = vmatprep.subr.bf16.mxu0 0
    %742 = vmatpush1.bf16.msra.mxu0 %v684
    %743 = vmatprep.subr.bf16.mxu0 0
    %744 = vmatpush1.bf16.msra.mxu0 %v685
    %745 = vmatprep.subr.bf16.mxu0 0
    %746 = vmatpush1.bf16.msra.mxu0 %v686
    %747 = vmatprep.subr.bf16.mxu0 0
    %748 = vmatpush1.bf16.msra.mxu0 %v687
    %749 = vmatprep.subr.bf16.mxu0 0
    %750 = vmatpush1.bf16.msra.mxu0 %v688
    %751 = vmatprep.subr.bf16.mxu0 0
    %752 = vmatpush1.bf16.msra.mxu0 %v689
    %753 = vmatprep.subr.bf16.mxu0 0
    %754 = vmatpush1.bf16.msra.mxu0 %v690
    %755 = vmatprep.mubr.bf16.mxu0 %v522
    %756 = vmatmul.mubr.bf16.gmra.mrb[0].mxu0 %v520
    %v757 = vpop.f32.mrb[0].mxu0
    %v758 = vadd.f32 %v578, %v757
    %v759 = vpop.f32.mrb[0].mxu0
    %v760 = vpop.f32.mrb[0].mxu0
    %v761 = vadd.f32 %v578, %v760
    %v762 = vpop.f32.mrb[0].mxu0
    %763 = vmatprep.mubr.bf16.mxu0 %v523
    %764 = vmatmul.mubr.bf16.gmra.mrb[0].mxu0 %v521
    %v765 = vpop.f32.mrb[0].mxu0
    %v766 = vadd.f32 %v578, %v765
    %v767 = vpop.f32.mrb[0].mxu0
    %v768 = vpop.f32.mrb[0].mxu0
    %v769 = vadd.f32 %v578, %v768
    %v770 = vpop.f32.mrb[0].mxu0
    %771 = vdwg.mxu0
    %772 = vmatprep.subr.bf16.mxu0 0
    %773 = vmatpush1.bf16.msra.mxu0 %v691
    %774 = vmatprep.subr.bf16.mxu0 0
    %775 = vmatpush1.bf16.msra.mxu0 %v692
    %776 = vmatprep.subr.bf16.mxu0 0
    %777 = vmatpush1.bf16.msra.mxu0 %v693
    %778 = vmatprep.subr.bf16.mxu0 0
    %779 = vmatpush1.bf16.msra.mxu0 %v694
    %780 = vmatprep.subr.bf16.mxu0 0
    %781 = vmatpush1.bf16.msra.mxu0 %v695
    %782 = vmatprep.subr.bf16.mxu0 0
    %783 = vmatpush1.bf16.msra.mxu0 %v696
    %784 = vmatprep.subr.bf16.mxu0 0
    %785 = vmatpush1.bf16.msra.mxu0 %v697
    %786 = vmatprep.subr.bf16.mxu0 0
    %787 = vmatpush1.bf16.msra.mxu0 %v698
    %788 = vmatprep.subr.bf16.mxu0 0
    %789 = vmatpush1.bf16.msra.mxu0 0
    %790 = vmatprep.subr.bf16.mxu0 0
    %791 = vmatpush1.bf16.msra.mxu0 0
    %792 = vmatprep.subr.bf16.mxu0 0
    %793 = vmatpush1.bf16.msra.mxu0 0
    %794 = vmatprep.subr.bf16.mxu0 0
    %795 = vmatpush1.bf16.msra.mxu0 0
    %796 = vmatprep.subr.bf16.mxu0 0
    %797 = vmatpush1.bf16.msra.mxu0 0
    %798 = vmatprep.subr.bf16.mxu0 0
    %799 = vmatpush1.bf16.msra.mxu0 0
    %800 = vmatprep.subr.bf16.mxu0 0
    %801 = vmatpush1.bf16.msra.mxu0 0
    %802 = vmatprep.subr.bf16.mxu0 0
    %803 = vmatpush1.bf16.msra.mxu0 0
    %804 = vmatprep.mubr.bf16.mxu0 0
    %805 = vmatmul.mubr.bf16.gmra.mrb[0].mxu0 %v524
    %v806 = vpop.f32.mrb[0].mxu0
    %v807 = vadd.f32 %v758, %v806
    %v808 = vpop.f32.mrb[0].mxu0
    %v809 = vpop.f32.mrb[0].mxu0
    %v810 = vadd.f32 %v761, %v809
    %v811 = vpop.f32.mrb[0].mxu0
    %812 = vmatprep.mubr.bf16.mxu0 0
    %813 = vmatmul.mubr.bf16.gmra.mrb[0].mxu0 %v525
    %v814 = vpop.f32.mrb[0].mxu0
    %v815 = vadd.f32 %v766, %v814
    %v816 = vpop.f32.mrb[0].mxu0
    %v817 = vpop.f32.mrb[0].mxu0
    %v818 = vadd.f32 %v769, %v817
    %v819 = vpop.f32.mrb[0].mxu0
    %820 = vdwg.mxu0
    %v821 = vmax.f32 %v807, 0.0
    %v822 = vmax.f32 %v810, 0.0
    %v823 = vmax.f32 %v815, 0.0
    %v824 = vmax.f32 %v818, 0.0
    %825 = vst [vmem:[#allocation2 + $0x8] sm:$0xff] %v821
    %826 = vst [vmem:[#allocation2 + $0x10] sm:$0xff] %v822
    %827 = vst [vmem:[#allocation2 + $0x28] sm:$0xff] %v823
    %828 = vst [vmem:[#allocation2 + $0x30] sm:$0xff] %v824
    %v829 = vld [vmem:[#allocation2 + $0x6] sm:$0xff]
    %v830 = vld [vmem:[#allocation2 + $0xe] sm:$0xff]
    %v831 = vld [vmem:[#allocation2 + $0x26] sm:$0xff]
    %v832 = vld [vmem:[#allocation2 + $0x2e] sm:$0xff]
    %v833 = vld [vmem:[#allocation2 + $0xa] sm:$0xff]
    %v834 = vld [vmem:[#allocation2 + $0x12] sm:$0xff]
    %v835 = vld [vmem:[#allocation2 + $0x2a] sm:$0xff]
    %v836 = vld [vmem:[#allocation2 + $0x32] sm:$0xff]
    %v837 = vpack.c.bf16 %v830, %v829
    %v838 = vpack.c.bf16 %v832, %v831
    %v839 = vpack.c.bf16 %v822, %v821
    %v840 = vpack.c.bf16 %v824, %v823
    %v841 = vpack.c.bf16 %v834, %v833
    %v842 = vpack.c.bf16 %v836, %v835
    %s843 = scalar_lea.vmem [#allocation9], 192
    %v844 = vld [vmem:[%s843] sm:$0xf]
    %v845 = vld [vmem:[%s843 + $0x4] sm:$0xf]
    %v846 = vld [vmem:[%s843 + $0x8] sm:$0xf]
    %v847 = vld [vmem:[%s843 + $0xc] sm:$0xf]
    %v848 = vld [vmem:[%s843 + $0x10] sm:$0xf]
    %v849 = vld [vmem:[%s843 + $0x14] sm:$0xf]
    %v850 = vld [vmem:[%s843 + $0x18] sm:$0xf]
    %v851 = vld [vmem:[%s843 + $0x1c] sm:$0xf]
    %v852 = vld [vmem:[%s843 + $0x20] sm:$0xf]
    %v853 = vld [vmem:[%s843 + $0x24] sm:$0xf]
    %v854 = vld [vmem:[%s843 + $0x28] sm:$0xf]
    %v855 = vld [vmem:[%s843 + $0x2c] sm:$0xf]
    %v856 = vld [vmem:[%s843 + $0x30] sm:$0xf]
    %v857 = vld [vmem:[%s843 + $0x34] sm:$0xf]
    %v858 = vld [vmem:[%s843 + $0x38] sm:$0xf]
    %v859 = vld [vmem:[%s843 + $0x3c] sm:$0xf]
    %v860 = vld [vmem:[%s843 + $0x40] sm:$0xf]
    %v861 = vld [vmem:[%s843 + $0x44] sm:$0xf]
    %v862 = vld [vmem:[%s843 + $0x48] sm:$0xf]
    %v863 = vld [vmem:[%s843 + $0x4c] sm:$0xf]
    %v864 = vld [vmem:[%s843 + $0x50] sm:$0xf]
    %v865 = vld [vmem:[%s843 + $0x54] sm:$0xf]
    %v866 = vld [vmem:[%s843 + $0x58] sm:$0xf]
    %v867 = vld [vmem:[%s843 + $0x5c] sm:$0xf]
    %v868 = vld [vmem:[%s843 + $0x60] sm:$0xf]
    %v869 = vld [vmem:[%s843 + $0x64] sm:$0xf]
    %v870 = vld [vmem:[%s843 + $0x68] sm:$0xf]
    %v871 = vld [vmem:[%s843 + $0x6c] sm:$0xf]
    %v872 = vld [vmem:[%s843 + $0x70] sm:$0xf]
    %v873 = vld [vmem:[%s843 + $0x74] sm:$0xf]
    %v874 = vld [vmem:[%s843 + $0x78] sm:$0xf]
    %v875 = vld [vmem:[%s843 + $0x7c] sm:$0xf]
    %v876 = vld [vmem:[%s843 + $0x80] sm:$0xf]
    %v877 = vld [vmem:[%s843 + $0x84] sm:$0xf]
    %v878 = vld [vmem:[%s843 + $0x88] sm:$0xf]
    %v879 = vld [vmem:[%s843 + $0x8c] sm:$0xf]
    %v880 = vld [vmem:[%s843 + $0x90] sm:$0xf]
    %v881 = vld [vmem:[%s843 + $0x94] sm:$0xf]
    %v882 = vld [vmem:[%s843 + $0x98] sm:$0xf]
    %v883 = vld [vmem:[%s843 + $0x9c] sm:$0xf]
    %v884 = vld [vmem:[%s843 + $0xa0] sm:$0xf]
    %v885 = vld [vmem:[%s843 + $0xa4] sm:$0xf]
    %v886 = vld [vmem:[%s843 + $0xa8] sm:$0xf]
    %v887 = vld [vmem:[%s843 + $0xac] sm:$0xf]
    %v888 = vld [vmem:[%s843 + $0xb0] sm:$0xf]
    %v889 = vld [vmem:[%s843 + $0xb4] sm:$0xf]
    %v890 = vld [vmem:[%s843 + $0xb8] sm:$0xf]
    %v891 = vld [vmem:[%s843 + $0xbc] sm:$0xf]
    %v892 = vld [vmem:[#allocation11 + $0x1] sm:$0x1]
    %v893 = vlaneseq
    %v894 = vshrl.u32 %v893, 7
    %v895 = vsub.s32 0, %v894
    %v896 = vrot.slane %v892, %v895
    %v945 = vunpack.c.l.b16 %v844
    %v946 = vunpack.c.l.b16 %v845
    %v947 = vunpack.c.l.b16 %v846
    %v948 = vunpack.c.l.b16 %v847
    %v949 = vunpack.c.l.b16 %v848
    %v950 = vunpack.c.l.b16 %v849
    %v951 = vunpack.c.l.b16 %v850
    %v952 = vunpack.c.l.b16 %v851
    %v953 = vunpack.c.l.b16 %v852
    %v954 = vunpack.c.l.b16 %v853
    %v955 = vunpack.c.l.b16 %v854
    %v956 = vunpack.c.l.b16 %v855
    %v957 = vunpack.c.l.b16 %v856
    %v958 = vunpack.c.l.b16 %v857
    %v959 = vunpack.c.l.b16 %v858
    %v960 = vunpack.c.l.b16 %v859
    %v961 = vunpack.c.l.b16 %v860
    %v962 = vunpack.c.l.b16 %v861
    %v963 = vunpack.c.l.b16 %v862
    %v964 = vunpack.c.l.b16 %v863
    %v965 = vunpack.c.l.b16 %v864
    %v966 = vunpack.c.l.b16 %v865
    %v967 = vunpack.c.l.b16 %v866
    %v968 = vunpack.c.l.b16 %v867
    %v969 = vunpack.c.l.b16 %v868
    %v970 = vunpack.c.l.b16 %v869
    %v971 = vunpack.c.l.b16 %v870
    %v972 = vunpack.c.l.b16 %v871
    %v973 = vunpack.c.l.b16 %v872
    %v974 = vunpack.c.l.b16 %v873
    %v975 = vunpack.c.l.b16 %v874
    %v976 = vunpack.c.l.b16 %v875
    %v977 = vunpack.c.l.b16 %v876
    %v978 = vunpack.c.l.b16 %v877
    %v979 = vunpack.c.l.b16 %v878
    %v980 = vunpack.c.l.b16 %v879
    %v981 = vunpack.c.l.b16 %v880
    %v982 = vunpack.c.l.b16 %v881
    %v983 = vunpack.c.l.b16 %v882
    %v984 = vunpack.c.l.b16 %v883
    %v985 = vunpack.c.l.b16 %v884
    %v986 = vunpack.c.l.b16 %v885
    %v987 = vunpack.c.l.b16 %v886
    %v988 = vunpack.c.l.b16 %v887
    %v989 = vunpack.c.l.b16 %v888
    %v990 = vunpack.c.l.b16 %v889
    %v991 = vunpack.c.l.b16 %v890
    %v992 = vunpack.c.l.b16 %v891
    %v993 = vpack.c.b16 %v946, %v945
    %v994 = vpack.c.b16 %v948, %v947
    %v995 = vpack.c.b16 %v950, %v949
    %v996 = vpack.c.b16 %v952, %v951
    %v997 = vpack.c.b16 %v954, %v953
    %v998 = vpack.c.b16 %v956, %v955
    %v999 = vpack.c.b16 %v958, %v957
    %v1000 = vpack.c.b16 %v960, %v959
    %v1001 = vpack.c.b16 %v962, %v961
    %v1002 = vpack.c.b16 %v964, %v963
    %v1003 = vpack.c.b16 %v966, %v965
    %v1004 = vpack.c.b16 %v968, %v967
    %v1005 = vpack.c.b16 %v970, %v969
    %v1006 = vpack.c.b16 %v972, %v971
    %v1007 = vpack.c.b16 %v974, %v973
    %v1008 = vpack.c.b16 %v976, %v975
    %v1009 = vpack.c.b16 %v978, %v977
    %v1010 = vpack.c.b16 %v980, %v979
    %v1011 = vpack.c.b16 %v982, %v981
    %v1012 = vpack.c.b16 %v984, %v983
    %v1013 = vpack.c.b16 %v986, %v985
    %v1014 = vpack.c.b16 %v988, %v987
    %v1015 = vpack.c.b16 %v990, %v989
    %v1016 = vpack.c.b16 %v992, %v991
    %1041 = vmatprep.subr.bf16.mxu0 0
    %1042 = vmatpush1.bf16.msra.mxu0 %v993
    %1043 = vmatprep.subr.bf16.mxu0 0
    %1044 = vmatpush1.bf16.msra.mxu0 %v994
    %1045 = vmatprep.subr.bf16.mxu0 0
    %1046 = vmatpush1.bf16.msra.mxu0 %v995
    %1047 = vmatprep.subr.bf16.mxu0 0
    %1048 = vmatpush1.bf16.msra.mxu0 %v996
    %1049 = vmatprep.subr.bf16.mxu0 0
    %1050 = vmatpush1.bf16.msra.mxu0 %v997
    %1051 = vmatprep.subr.bf16.mxu0 0
    %1052 = vmatpush1.bf16.msra.mxu0 %v998
    %1053 = vmatprep.subr.bf16.mxu0 0
    %1054 = vmatpush1.bf16.msra.mxu0 %v999
    %1055 = vmatprep.subr.bf16.mxu0 0
    %1056 = vmatpush1.bf16.msra.mxu0 %v1000
    %1057 = vmatprep.subr.bf16.mxu0 0
    %1058 = vmatpush1.bf16.msra.mxu0 %v1001
    %1059 = vmatprep.subr.bf16.mxu0 0
    %1060 = vmatpush1.bf16.msra.mxu0 %v1002
    %1061 = vmatprep.subr.bf16.mxu0 0
    %1062 = vmatpush1.bf16.msra.mxu0 %v1003
    %1063 = vmatprep.subr.bf16.mxu0 0
    %1064 = vmatpush1.bf16.msra.mxu0 %v1004
    %1065 = vmatprep.subr.bf16.mxu0 0
    %1066 = vmatpush1.bf16.msra.mxu0 %v1005
    %1067 = vmatprep.subr.bf16.mxu0 0
    %1068 = vmatpush1.bf16.msra.mxu0 %v1006
    %1069 = vmatprep.subr.bf16.mxu0 0
    %1070 = vmatpush1.bf16.msra.mxu0 %v1007
    %1071 = vmatprep.subr.bf16.mxu0 0
    %1072 = vmatpush1.bf16.msra.mxu0 %v1008
    %1073 = vmatprep.mubr.bf16.mxu0 %v839
    %1074 = vmatmul.mubr.bf16.gmra.mrb[0].mxu0 %v837
    %v1075 = vpop.f32.mrb[0].mxu0
    %v1076 = vadd.f32 %v896, %v1075
    %v1077 = vpop.f32.mrb[0].mxu0
    %v1078 = vpop.f32.mrb[0].mxu0
    %v1079 = vadd.f32 %v896, %v1078
    %v1080 = vpop.f32.mrb[0].mxu0
    %1081 = vmatprep.mubr.bf16.mxu0 %v840
    %1082 = vmatmul.mubr.bf16.gmra.mrb[0].mxu0 %v838
    %v1083 = vpop.f32.mrb[0].mxu0
    %v1084 = vadd.f32 %v896, %v1083
    %v1085 = vpop.f32.mrb[0].mxu0
    %v1086 = vpop.f32.mrb[0].mxu0
    %v1087 = vadd.f32 %v896, %v1086
    %v1088 = vpop.f32.mrb[0].mxu0
    %1089 = vdwg.mxu0
    %1090 = vmatprep.subr.bf16.mxu0 0
    %1091 = vmatpush1.bf16.msra.mxu0 %v1009
    %1092 = vmatprep.subr.bf16.mxu0 0
    %1093 = vmatpush1.bf16.msra.mxu0 %v1010
    %1094 = vmatprep.subr.bf16.mxu0 0
    %1095 = vmatpush1.bf16.msra.mxu0 %v1011
    %1096 = vmatprep.subr.bf16.mxu0 0
    %1097 = vmatpush1.bf16.msra.mxu0 %v1012
    %1098 = vmatprep.subr.bf16.mxu0 0
    %1099 = vmatpush1.bf16.msra.mxu0 %v1013
    %1100 = vmatprep.subr.bf16.mxu0 0
    %1101 = vmatpush1.bf16.msra.mxu0 %v1014
    %1102 = vmatprep.subr.bf16.mxu0 0
    %1103 = vmatpush1.bf16.msra.mxu0 %v1015
    %1104 = vmatprep.subr.bf16.mxu0 0
    %1105 = vmatpush1.bf16.msra.mxu0 %v1016
    %1106 = vmatprep.subr.bf16.mxu0 0
    %1107 = vmatpush1.bf16.msra.mxu0 0
    %1108 = vmatprep.subr.bf16.mxu0 0
    %1109 = vmatpush1.bf16.msra.mxu0 0
    %1110 = vmatprep.subr.bf16.mxu0 0
    %1111 = vmatpush1.bf16.msra.mxu0 0
    %1112 = vmatprep.subr.bf16.mxu0 0
    %1113 = vmatpush1.bf16.msra.mxu0 0
    %1114 = vmatprep.subr.bf16.mxu0 0
    %1115 = vmatpush1.bf16.msra.mxu0 0
    %1116 = vmatprep.subr.bf16.mxu0 0
    %1117 = vmatpush1.bf16.msra.mxu0 0
    %1118 = vmatprep.subr.bf16.mxu0 0
    %1119 = vmatpush1.bf16.msra.mxu0 0
    %1120 = vmatprep.subr.bf16.mxu0 0
    %1121 = vmatpush1.bf16.msra.mxu0 0
    %1122 = vmatprep.mubr.bf16.mxu0 0
    %1123 = vmatmul.mubr.bf16.gmra.mrb[0].mxu0 %v841
    %v1124 = vpop.f32.mrb[0].mxu0
    %v1125 = vadd.f32 %v1076, %v1124
    %v1126 = vpop.f32.mrb[0].mxu0
    %v1127 = vpop.f32.mrb[0].mxu0
    %v1128 = vadd.f32 %v1079, %v1127
    %v1129 = vpop.f32.mrb[0].mxu0
    %1130 = vmatprep.mubr.bf16.mxu0 0
    %1131 = vmatmul.mubr.bf16.gmra.mrb[0].mxu0 %v842
    %v1132 = vpop.f32.mrb[0].mxu0
    %v1133 = vadd.f32 %v1084, %v1132
    %v1134 = vpop.f32.mrb[0].mxu0
    %v1135 = vpop.f32.mrb[0].mxu0
    %v1136 = vadd.f32 %v1087, %v1135
    %v1137 = vpop.f32.mrb[0].mxu0
    %1138 = vdwg.mxu0
    %v1139 = vmax.f32 %v1125, 0.0
    %v1140 = vmax.f32 %v1128, 0.0
    %v1141 = vmax.f32 %v1133, 0.0
    %v1142 = vmax.f32 %v1136, 0.0
    %1143 = vst [vmem:[#allocation2 + $0x8] sm:$0xff] %v1139
    %1144 = vst [vmem:[#allocation2 + $0x10] sm:$0xff] %v1140
    %1145 = vst [vmem:[#allocation2 + $0x28] sm:$0xff] %v1141
    %1146 = vst [vmem:[#allocation2 + $0x30] sm:$0xff] %v1142
    %v1147 = vld [vmem:[#allocation2 + $0x4] sm:$0xff]
    %v1148 = vld [vmem:[#allocation2 + $0xc] sm:$0xff]
    %v1149 = vld [vmem:[#allocation2 + $0x24] sm:$0xff]
    %v1150 = vld [vmem:[#allocation2 + $0x2c] sm:$0xff]
    %v1151 = vld [vmem:[#allocation2 + $0x14] sm:$0xff]
    %v1152 = vld [vmem:[#allocation2 + $0x34] sm:$0xff]
    %v1153 = vpack.c.bf16 %v1148, %v1147
    %v1154 = vpack.c.bf16 %v1150, %v1149
    %v1155 = vpack.c.bf16 %v1140, %v1139
    %v1156 = vpack.c.bf16 %v1142, %v1141
    %v1157 = vpack.c.bf16 %v1151, %v1148
    %v1158 = vpack.c.bf16 %v1152, %v1150
    %s1159 = scalar_lea.vmem [#allocation9], 384
    %v1160 = vld [vmem:[%s1159] sm:$0xf]
    %v1161 = vld [vmem:[%s1159 + $0x4] sm:$0xf]
    %v1162 = vld [vmem:[%s1159 + $0x8] sm:$0xf]
    %v1163 = vld [vmem:[%s1159 + $0xc] sm:$0xf]
    %v1164 = vld [vmem:[%s1159 + $0x10] sm:$0xf]
    %v1165 = vld [vmem:[%s1159 + $0x14] sm:$0xf]
    %v1166 = vld [vmem:[%s1159 + $0x18] sm:$0xf]
    %v1167 = vld [vmem:[%s1159 + $0x1c] sm:$0xf]
    %v1168 = vld [vmem:[%s1159 + $0x20] sm:$0xf]
    %v1169 = vld [vmem:[%s1159 + $0x24] sm:$0xf]
    %v1170 = vld [vmem:[%s1159 + $0x28] sm:$0xf]
    %v1171 = vld [vmem:[%s1159 + $0x2c] sm:$0xf]
    %v1172 = vld [vmem:[%s1159 + $0x30] sm:$0xf]
    %v1173 = vld [vmem:[%s1159 + $0x34] sm:$0xf]
    %v1174 = vld [vmem:[%s1159 + $0x38] sm:$0xf]
    %v1175 = vld [vmem:[%s1159 + $0x3c] sm:$0xf]
    %v1176 = vld [vmem:[%s1159 + $0x40] sm:$0xf]
    %v1177 = vld [vmem:[%s1159 + $0x44] sm:$0xf]
    %v1178 = vld [vmem:[%s1159 + $0x48] sm:$0xf]
    %v1179 = vld [vmem:[%s1159 + $0x4c] sm:$0xf]
    %v1180 = vld [vmem:[%s1159 + $0x50] sm:$0xf]
    %v1181 = vld [vmem:[%s1159 + $0x54] sm:$0xf]
    %v1182 = vld [vmem:[%s1159 + $0x58] sm:$0xf]
    %v1183 = vld [vmem:[%s1159 + $0x5c] sm:$0xf]
    %v1184 = vld [vmem:[%s1159 + $0x60] sm:$0xf]
    %v1185 = vld [vmem:[%s1159 + $0x64] sm:$0xf]
    %v1186 = vld [vmem:[%s1159 + $0x68] sm:$0xf]
    %v1187 = vld [vmem:[%s1159 + $0x6c] sm:$0xf]
    %v1188 = vld [vmem:[%s1159 + $0x70] sm:$0xf]
    %v1189 = vld [vmem:[%s1159 + $0x74] sm:$0xf]
    %v1190 = vld [vmem:[%s1159 + $0x78] sm:$0xf]
    %v1191 = vld [vmem:[%s1159 + $0x7c] sm:$0xf]
    %v1192 = vld [vmem:[%s1159 + $0x80] sm:$0xf]
    %v1193 = vld [vmem:[%s1159 + $0x84] sm:$0xf]
    %v1194 = vld [vmem:[%s1159 + $0x88] sm:$0xf]
    %v1195 = vld [vmem:[%s1159 + $0x8c] sm:$0xf]
    %v1196 = vld [vmem:[%s1159 + $0x90] sm:$0xf]
    %v1197 = vld [vmem:[%s1159 + $0x94] sm:$0xf]
    %v1198 = vld [vmem:[%s1159 + $0x98] sm:$0xf]
    %v1199 = vld [vmem:[%s1159 + $0x9c] sm:$0xf]
    %v1200 = vld [vmem:[%s1159 + $0xa0] sm:$0xf]
    %v1201 = vld [vmem:[%s1159 + $0xa4] sm:$0xf]
    %v1202 = vld [vmem:[%s1159 + $0xa8] sm:$0xf]
    %v1203 = vld [vmem:[%s1159 + $0xac] sm:$0xf]
    %v1204 = vld [vmem:[%s1159 + $0xb0] sm:$0xf]
    %v1205 = vld [vmem:[%s1159 + $0xb4] sm:$0xf]
    %v1206 = vld [vmem:[%s1159 + $0xb8] sm:$0xf]
    %v1207 = vld [vmem:[%s1159 + $0xbc] sm:$0xf]
    %v1208 = vld [vmem:[#allocation11 + $0x2] sm:$0x1]
    %v1209 = vlaneseq
    %v1210 = vshrl.u32 %v1209, 7
    %v1211 = vsub.s32 0, %v1210
    %v1212 = vrot.slane %v1208, %v1211
    %v1261 = vunpack.c.l.b16 %v1160
    %v1262 = vunpack.c.l.b16 %v1161
    %v1263 = vunpack.c.l.b16 %v1162
    %v1264 = vunpack.c.l.b16 %v1163
    %v1265 = vunpack.c.l.b16 %v1164
    %v1266 = vunpack.c.l.b16 %v1165
    %v1267 = vunpack.c.l.b16 %v1166
    %v1268 = vunpack.c.l.b16 %v1167
    %v1269 = vunpack.c.l.b16 %v1168
    %v1270 = vunpack.c.l.b16 %v1169
    %v1271 = vunpack.c.l.b16 %v1170
    %v1272 = vunpack.c.l.b16 %v1171
    %v1273 = vunpack.c.l.b16 %v1172
    %v1274 = vunpack.c.l.b16 %v1173
    %v1275 = vunpack.c.l.b16 %v1174
    %v1276 = vunpack.c.l.b16 %v1175
    %v1277 = vunpack.c.l.b16 %v1176
    %v1278 = vunpack.c.l.b16 %v1177
    %v1279 = vunpack.c.l.b16 %v1178
    %v1280 = vunpack.c.l.b16 %v1179
    %v1281 = vunpack.c.l.b16 %v1180
    %v1282 = vunpack.c.l.b16 %v1181
    %v1283 = vunpack.c.l.b16 %v1182
    %v1284 = vunpack.c.l.b16 %v1183
    %v1285 = vunpack.c.l.b16 %v1184
    %v1286 = vunpack.c.l.b16 %v1185
    %v1287 = vunpack.c.l.b16 %v1186
    %v1288 = vunpack.c.l.b16 %v1187
    %v1289 = vunpack.c.l.b16 %v1188
    %v1290 = vunpack.c.l.b16 %v1189
    %v1291 = vunpack.c.l.b16 %v1190
    %v1292 = vunpack.c.l.b16 %v1191
    %v1293 = vunpack.c.l.b16 %v1192
    %v1294 = vunpack.c.l.b16 %v1193
    %v1295 = vunpack.c.l.b16 %v1194
    %v1296 = vunpack.c.l.b16 %v1195
    %v1297 = vunpack.c.l.b16 %v1196
    %v1298 = vunpack.c.l.b16 %v1197
    %v1299 = vunpack.c.l.b16 %v1198
    %v1300 = vunpack.c.l.b16 %v1199
    %v1301 = vunpack.c.l.b16 %v1200
    %v1302 = vunpack.c.l.b16 %v1201
    %v1303 = vunpack.c.l.b16 %v1202
    %v1304 = vunpack.c.l.b16 %v1203
    %v1305 = vunpack.c.l.b16 %v1204
    %v1306 = vunpack.c.l.b16 %v1205
    %v1307 = vunpack.c.l.b16 %v1206
    %v1308 = vunpack.c.l.b16 %v1207
    %v1309 = vpack.c.b16 %v1262, %v1261
    %v1310 = vpack.c.b16 %v1264, %v1263
    %v1311 = vpack.c.b16 %v1266, %v1265
    %v1312 = vpack.c.b16 %v1268, %v1267
    %v1313 = vpack.c.b16 %v1270, %v1269
    %v1314 = vpack.c.b16 %v1272, %v1271
    %v1315 = vpack.c.b16 %v1274, %v1273
    %v1316 = vpack.c.b16 %v1276, %v1275
    %v1317 = vpack.c.b16 %v1278, %v1277
    %v1318 = vpack.c.b16 %v1280, %v1279
    %v1319 = vpack.c.b16 %v1282, %v1281
    %v1320 = vpack.c.b16 %v1284, %v1283
    %v1321 = vpack.c.b16 %v1286, %v1285
    %v1322 = vpack.c.b16 %v1288, %v1287
    %v1323 = vpack.c.b16 %v1290, %v1289
    %v1324 = vpack.c.b16 %v1292, %v1291
    %v1325 = vpack.c.b16 %v1294, %v1293
    %v1326 = vpack.c.b16 %v1296, %v1295
    %v1327 = vpack.c.b16 %v1298, %v1297
    %v1328 = vpack.c.b16 %v1300, %v1299
    %v1329 = vpack.c.b16 %v1302, %v1301
    %v1330 = vpack.c.b16 %v1304, %v1303
    %v1331 = vpack.c.b16 %v1306, %v1305
    %v1332 = vpack.c.b16 %v1308, %v1307
    %1357 = vmatprep.subr.bf16.mxu0 0
    %1358 = vmatpush1.bf16.msra.mxu0 %v1309
    %1359 = vmatprep.subr.bf16.mxu0 0
    %1360 = vmatpush1.bf16.msra.mxu0 %v1310
    %1361 = vmatprep.subr.bf16.mxu0 0
    %1362 = vmatpush1.bf16.msra.mxu0 %v1311
    %1363 = vmatprep.subr.bf16.mxu0 0
    %1364 = vmatpush1.bf16.msra.mxu0 %v1312
    %1365 = vmatprep.subr.bf16.mxu0 0
    %1366 = vmatpush1.bf16.msra.mxu0 %v1313
    %1367 = vmatprep.subr.bf16.mxu0 0
    %1368 = vmatpush1.bf16.msra.mxu0 %v1314
    %1369 = vmatprep.subr.bf16.mxu0 0
    %1370 = vmatpush1.bf16.msra.mxu0 %v1315
    %1371 = vmatprep.subr.bf16.mxu0 0
    %1372 = vmatpush1.bf16.msra.mxu0 %v1316
    %1373 = vmatprep.subr.bf16.mxu0 0
    %1374 = vmatpush1.bf16.msra.mxu0 %v1317
    %1375 = vmatprep.subr.bf16.mxu0 0
    %1376 = vmatpush1.bf16.msra.mxu0 %v1318
    %1377 = vmatprep.subr.bf16.mxu0 0
    %1378 = vmatpush1.bf16.msra.mxu0 %v1319
    %1379 = vmatprep.subr.bf16.mxu0 0
    %1380 = vmatpush1.bf16.msra.mxu0 %v1320
    %1381 = vmatprep.subr.bf16.mxu0 0
    %1382 = vmatpush1.bf16.msra.mxu0 %v1321
    %1383 = vmatprep.subr.bf16.mxu0 0
    %1384 = vmatpush1.bf16.msra.mxu0 %v1322
    %1385 = vmatprep.subr.bf16.mxu0 0
    %1386 = vmatpush1.bf16.msra.mxu0 %v1323
    %1387 = vmatprep.subr.bf16.mxu0 0
    %1388 = vmatpush1.bf16.msra.mxu0 %v1324
    %1389 = vmatprep.mubr.bf16.mxu0 %v1155
    %1390 = vmatmul.mubr.bf16.gmra.mrb[0].mxu0 %v1153
    %v1391 = vpop.f32.mrb[0].mxu0
    %v1392 = vadd.f32 %v1212, %v1391
    %v1393 = vpop.f32.mrb[0].mxu0
    %v1394 = vpop.f32.mrb[0].mxu0
    %v1395 = vadd.f32 %v1212, %v1394
    %v1396 = vpop.f32.mrb[0].mxu0
    %1397 = vmatprep.mubr.bf16.mxu0 %v1156
    %1398 = vmatmul.mubr.bf16.gmra.mrb[0].mxu0 %v1154
    %v1399 = vpop.f32.mrb[0].mxu0
    %v1400 = vadd.f32 %v1212, %v1399
    %v1401 = vpop.f32.mrb[0].mxu0
    %v1402 = vpop.f32.mrb[0].mxu0
    %v1403 = vadd.f32 %v1212, %v1402
    %v1404 = vpop.f32.mrb[0].mxu0
    %1405 = vdwg.mxu0
    %1406 = vmatprep.subr.bf16.mxu0 0
    %1407 = vmatpush1.bf16.msra.mxu0 %v1325
    %1408 = vmatprep.subr.bf16.mxu0 0
    %1409 = vmatpush1.bf16.msra.mxu0 %v1326
    %1410 = vmatprep.subr.bf16.mxu0 0
    %1411 = vmatpush1.bf16.msra.mxu0 %v1327
    %1412 = vmatprep.subr.bf16.mxu0 0
    %1413 = vmatpush1.bf16.msra.mxu0 %v1328
    %1414 = vmatprep.subr.bf16.mxu0 0
    %1415 = vmatpush1.bf16.msra.mxu0 %v1329
    %1416 = vmatprep.subr.bf16.mxu0 0
    %1417 = vmatpush1.bf16.msra.mxu0 %v1330
    %1418 = vmatprep.subr.bf16.mxu0 0
    %1419 = vmatpush1.bf16.msra.mxu0 %v1331
    %1420 = vmatprep.subr.bf16.mxu0 0
    %1421 = vmatpush1.bf16.msra.mxu0 %v1332
    %1422 = vmatprep.subr.bf16.mxu0 0
    %1423 = vmatpush1.bf16.msra.mxu0 0
    %1424 = vmatprep.subr.bf16.mxu0 0
    %1425 = vmatpush1.bf16.msra.mxu0 0
    %1426 = vmatprep.subr.bf16.mxu0 0
    %1427 = vmatpush1.bf16.msra.mxu0 0
    %1428 = vmatprep.subr.bf16.mxu0 0
    %1429 = vmatpush1.bf16.msra.mxu0 0
    %1430 = vmatprep.subr.bf16.mxu0 0
    %1431 = vmatpush1.bf16.msra.mxu0 0
    %1432 = vmatprep.subr.bf16.mxu0 0
    %1433 = vmatpush1.bf16.msra.mxu0 0
    %1434 = vmatprep.subr.bf16.mxu0 0
    %1435 = vmatpush1.bf16.msra.mxu0 0
    %1436 = vmatprep.subr.bf16.mxu0 0
    %1437 = vmatpush1.bf16.msra.mxu0 0
    %1438 = vmatprep.mubr.bf16.mxu0 0
    %1439 = vmatmul.mubr.bf16.gmra.mrb[0].mxu0 %v1157
    %v1440 = vpop.f32.mrb[0].mxu0
    %v1441 = vadd.f32 %v1392, %v1440
    %v1442 = vpop.f32.mrb[0].mxu0
    %v1443 = vpop.f32.mrb[0].mxu0
    %v1444 = vadd.f32 %v1395, %v1443
    %v1445 = vpop.f32.mrb[0].mxu0
    %1446 = vmatprep.mubr.bf16.mxu0 0
    %1447 = vmatmul.mubr.bf16.gmra.mrb[0].mxu0 %v1158
    %v1448 = vpop.f32.mrb[0].mxu0
    %v1449 = vadd.f32 %v1400, %v1448
    %v1450 = vpop.f32.mrb[0].mxu0
    %v1451 = vpop.f32.mrb[0].mxu0
    %v1452 = vadd.f32 %v1403, %v1451
    %v1453 = vpop.f32.mrb[0].mxu0
    %1454 = vdwg.mxu0
    %v1455 = vmax.f32 %v1441, 0.0
    %v1456 = vmax.f32 %v1444, 0.0
    %v1457 = vmax.f32 %v1449, 0.0
    %v1458 = vmax.f32 %v1452, 0.0
    %v1459 = vadd.f32 %v1455, 0.0
    %v1460 = vadd.f32 %v1456, 0.0
    %v1461 = vadd.f32 %v1457, 0.0
    %v1462 = vadd.f32 %v1458, 0.0
    %1463 = vst [vmem:[#allocation2 + $0x8] sm:$0xff] %v490
    %1464 = vst [vmem:[#allocation2 + $0x10] sm:$0xff] %v493
    %1465 = vst [vmem:[#allocation2 + $0x28] sm:$0xff] %v498
    %1466 = vst [vmem:[#allocation2 + $0x30] sm:$0xff] %v501
    %v1467 = vld [vmem:[#allocation2 + $0x6] sm:$0xff]
    %v1468 = vld [vmem:[#allocation2 + $0xe] sm:$0xff]
    %v1469 = vld [vmem:[#allocation2 + $0x26] sm:$0xff]
    %v1470 = vld [vmem:[#allocation2 + $0x2e] sm:$0xff]
    %v1471 = vld [vmem:[#allocation2 + $0xa] sm:$0xff]
    %v1472 = vld [vmem:[#allocation2 + $0x12] sm:$0xff]
    %v1473 = vld [vmem:[#allocation2 + $0x2a] sm:$0xff]
    %v1474 = vld [vmem:[#allocation2 + $0x32] sm:$0xff]
    %v1475 = vpack.c.bf16 %v1468, %v1467
    %v1476 = vpack.c.bf16 %v1470, %v1469
    %v1477 = vpack.c.bf16 %v1472, %v1471
    %v1478 = vpack.c.bf16 %v1474, %v1473
    %s1479 = scalar_lea.vmem [#allocation9], 576
    %v1480 = vld [vmem:[%s1479] sm:$0xf]
    %v1481 = vld [vmem:[%s1479 + $0x4] sm:$0xf]
    %v1482 = vld [vmem:[%s1479 + $0x8] sm:$0xf]
    %v1483 = vld [vmem:[%s1479 + $0xc] sm:$0xf]
    %v1484 = vld [vmem:[%s1479 + $0x10] sm:$0xf]
    %v1485 = vld [vmem:[%s1479 + $0x14] sm:$0xf]
    %v1486 = vld [vmem:[%s1479 + $0x18] sm:$0xf]
    %v1487 = vld [vmem:[%s1479 + $0x1c] sm:$0xf]
    %v1488 = vld [vmem:[%s1479 + $0x20] sm:$0xf]
    %v1489 = vld [vmem:[%s1479 + $0x24] sm:$0xf]
    %v1490 = vld [vmem:[%s1479 + $0x28] sm:$0xf]
    %v1491 = vld [vmem:[%s1479 + $0x2c] sm:$0xf]
    %v1492 = vld [vmem:[%s1479 + $0x30] sm:$0xf]
    %v1493 = vld [vmem:[%s1479 + $0x34] sm:$0xf]
    %v1494 = vld [vmem:[%s1479 + $0x38] sm:$0xf]
    %v1495 = vld [vmem:[%s1479 + $0x3c] sm:$0xf]
    %v1496 = vld [vmem:[%s1479 + $0x40] sm:$0xf]
    %v1497 = vld [vmem:[%s1479 + $0x44] sm:$0xf]
    %v1498 = vld [vmem:[%s1479 + $0x48] sm:$0xf]
    %v1499 = vld [vmem:[%s1479 + $0x4c] sm:$0xf]
    %v1500 = vld [vmem:[%s1479 + $0x50] sm:$0xf]
    %v1501 = vld [vmem:[%s1479 + $0x54] sm:$0xf]
    %v1502 = vld [vmem:[%s1479 + $0x58] sm:$0xf]
    %v1503 = vld [vmem:[%s1479 + $0x5c] sm:$0xf]
    %v1504 = vld [vmem:[%s1479 + $0x60] sm:$0xf]
    %v1505 = vld [vmem:[%s1479 + $0x64] sm:$0xf]
    %v1506 = vld [vmem:[%s1479 + $0x68] sm:$0xf]
    %v1507 = vld [vmem:[%s1479 + $0x6c] sm:$0xf]
    %v1508 = vld [vmem:[%s1479 + $0x70] sm:$0xf]
    %v1509 = vld [vmem:[%s1479 + $0x74] sm:$0xf]
    %v1510 = vld [vmem:[%s1479 + $0x78] sm:$0xf]
    %v1511 = vld [vmem:[%s1479 + $0x7c] sm:$0xf]
    %v1512 = vld [vmem:[%s1479 + $0x80] sm:$0xf]
    %v1513 = vld [vmem:[%s1479 + $0x84] sm:$0xf]
    %v1514 = vld [vmem:[%s1479 + $0x88] sm:$0xf]
    %v1515 = vld [vmem:[%s1479 + $0x8c] sm:$0xf]
    %v1516 = vld [vmem:[%s1479 + $0x90] sm:$0xf]
    %v1517 = vld [vmem:[%s1479 + $0x94] sm:$0xf]
    %v1518 = vld [vmem:[%s1479 + $0x98] sm:$0xf]
    %v1519 = vld [vmem:[%s1479 + $0x9c] sm:$0xf]
    %v1520 = vld [vmem:[%s1479 + $0xa0] sm:$0xf]
    %v1521 = vld [vmem:[%s1479 + $0xa4] sm:$0xf]
    %v1522 = vld [vmem:[%s1479 + $0xa8] sm:$0xf]
    %v1523 = vld [vmem:[%s1479 + $0xac] sm:$0xf]
    %v1524 = vld [vmem:[%s1479 + $0xb0] sm:$0xf]
    %v1525 = vld [vmem:[%s1479 + $0xb4] sm:$0xf]
    %v1526 = vld [vmem:[%s1479 + $0xb8] sm:$0xf]
    %v1527 = vld [vmem:[%s1479 + $0xbc] sm:$0xf]
    %v1528 = vld [vmem:[#allocation11 + $0x3] sm:$0x1]
    %v1529 = vlaneseq
    %v1530 = vshrl.u32 %v1529, 7
    %v1531 = vsub.s32 0, %v1530
    %v1532 = vrot.slane %v1528, %v1531
    %v1581 = vunpack.c.l.b16 %v1480
    %v1582 = vunpack.c.l.b16 %v1481
    %v1583 = vunpack.c.l.b16 %v1482
    %v1584 = vunpack.c.l.b16 %v1483
    %v1585 = vunpack.c.l.b16 %v1484
    %v1586 = vunpack.c.l.b16 %v1485
    %v1587 = vunpack.c.l.b16 %v1486
    %v1588 = vunpack.c.l.b16 %v1487
    %v1589 = vunpack.c.l.b16 %v1488
    %v1590 = vunpack.c.l.b16 %v1489
    %v1591 = vunpack.c.l.b16 %v1490
    %v1592 = vunpack.c.l.b16 %v1491
    %v1593 = vunpack.c.l.b16 %v1492
    %v1594 = vunpack.c.l.b16 %v1493
    %v1595 = vunpack.c.l.b16 %v1494
    %v1596 = vunpack.c.l.b16 %v1495
    %v1597 = vunpack.c.l.b16 %v1496
    %v1598 = vunpack.c.l.b16 %v1497
    %v1599 = vunpack.c.l.b16 %v1498
    %v1600 = vunpack.c.l.b16 %v1499
    %v1601 = vunpack.c.l.b16 %v1500
    %v1602 = vunpack.c.l.b16 %v1501
    %v1603 = vunpack.c.l.b16 %v1502
    %v1604 = vunpack.c.l.b16 %v1503
    %v1605 = vunpack.c.l.b16 %v1504
    %v1606 = vunpack.c.l.b16 %v1505
    %v1607 = vunpack.c.l.b16 %v1506
    %v1608 = vunpack.c.l.b16 %v1507
    %v1609 = vunpack.c.l.b16 %v1508
    %v1610 = vunpack.c.l.b16 %v1509
    %v1611 = vunpack.c.l.b16 %v1510
    %v1612 = vunpack.c.l.b16 %v1511
    %v1613 = vunpack.c.l.b16 %v1512
    %v1614 = vunpack.c.l.b16 %v1513
    %v1615 = vunpack.c.l.b16 %v1514
    %v1616 = vunpack.c.l.b16 %v1515
    %v1617 = vunpack.c.l.b16 %v1516
    %v1618 = vunpack.c.l.b16 %v1517
    %v1619 = vunpack.c.l.b16 %v1518
    %v1620 = vunpack.c.l.b16 %v1519
    %v1621 = vunpack.c.l.b16 %v1520
    %v1622 = vunpack.c.l.b16 %v1521
    %v1623 = vunpack.c.l.b16 %v1522
    %v1624 = vunpack.c.l.b16 %v1523
    %v1625 = vunpack.c.l.b16 %v1524
    %v1626 = vunpack.c.l.b16 %v1525
    %v1627 = vunpack.c.l.b16 %v1526
    %v1628 = vunpack.c.l.b16 %v1527
    %v1629 = vpack.c.b16 %v1582, %v1581
    %v1630 = vpack.c.b16 %v1584, %v1583
    %v1631 = vpack.c.b16 %v1586, %v1585
    %v1632 = vpack.c.b16 %v1588, %v1587
    %v1633 = vpack.c.b16 %v1590, %v1589
    %v1634 = vpack.c.b16 %v1592, %v1591
    %v1635 = vpack.c.b16 %v1594, %v1593
    %v1636 = vpack.c.b16 %v1596, %v1595
    %v1637 = vpack.c.b16 %v1598, %v1597
    %v1638 = vpack.c.b16 %v1600, %v1599
    %v1639 = vpack.c.b16 %v1602, %v1601
    %v1640 = vpack.c.b16 %v1604, %v1603
    %v1641 = vpack.c.b16 %v1606, %v1605
    %v1642 = vpack.c.b16 %v1608, %v1607
    %v1643 = vpack.c.b16 %v1610, %v1609
    %v1644 = vpack.c.b16 %v1612, %v1611
    %v1645 = vpack.c.b16 %v1614, %v1613
    %v1646 = vpack.c.b16 %v1616, %v1615
    %v1647 = vpack.c.b16 %v1618, %v1617
    %v1648 = vpack.c.b16 %v1620, %v1619
    %v1649 = vpack.c.b16 %v1622, %v1621
    %v1650 = vpack.c.b16 %v1624, %v1623
    %v1651 = vpack.c.b16 %v1626, %v1625
    %v1652 = vpack.c.b16 %v1628, %v1627
    %1677 = vmatprep.subr.bf16.mxu0 0
    %1678 = vmatpush1.bf16.msra.mxu0 %v1629
    %1679 = vmatprep.subr.bf16.mxu0 0
    %1680 = vmatpush1.bf16.msra.mxu0 %v1630
    %1681 = vmatprep.subr.bf16.mxu0 0
    %1682 = vmatpush1.bf16.msra.mxu0 %v1631
    %1683 = vmatprep.subr.bf16.mxu0 0
    %1684 = vmatpush1.bf16.msra.mxu0 %v1632
    %1685 = vmatprep.subr.bf16.mxu0 0
    %1686 = vmatpush1.bf16.msra.mxu0 %v1633
    %1687 = vmatprep.subr.bf16.mxu0 0
    %1688 = vmatpush1.bf16.msra.mxu0 %v1634
    %1689 = vmatprep.subr.bf16.mxu0 0
    %1690 = vmatpush1.bf16.msra.mxu0 %v1635
    %1691 = vmatprep.subr.bf16.mxu0 0
    %1692 = vmatpush1.bf16.msra.mxu0 %v1636
    %1693 = vmatprep.subr.bf16.mxu0 0
    %1694 = vmatpush1.bf16.msra.mxu0 %v1637
    %1695 = vmatprep.subr.bf16.mxu0 0
    %1696 = vmatpush1.bf16.msra.mxu0 %v1638
    %1697 = vmatprep.subr.bf16.mxu0 0
    %1698 = vmatpush1.bf16.msra.mxu0 %v1639
    %1699 = vmatprep.subr.bf16.mxu0 0
    %1700 = vmatpush1.bf16.msra.mxu0 %v1640
    %1701 = vmatprep.subr.bf16.mxu0 0
    %1702 = vmatpush1.bf16.msra.mxu0 %v1641
    %1703 = vmatprep.subr.bf16.mxu0 0
    %1704 = vmatpush1.bf16.msra.mxu0 %v1642
    %1705 = vmatprep.subr.bf16.mxu0 0
    %1706 = vmatpush1.bf16.msra.mxu0 %v1643
    %1707 = vmatprep.subr.bf16.mxu0 0
    %1708 = vmatpush1.bf16.msra.mxu0 %v1644
    %1709 = vmatprep.mubr.bf16.mxu0 %v522
    %1710 = vmatmul.mubr.bf16.gmra.mrb[0].mxu0 %v1475
    %v1711 = vpop.f32.mrb[0].mxu0
    %v1712 = vadd.f32 %v1532, %v1711
    %v1713 = vpop.f32.mrb[0].mxu0
    %v1714 = vpop.f32.mrb[0].mxu0
    %v1715 = vadd.f32 %v1532, %v1714
    %v1716 = vpop.f32.mrb[0].mxu0
    %1717 = vmatprep.mubr.bf16.mxu0 %v523
    %1718 = vmatmul.mubr.bf16.gmra.mrb[0].mxu0 %v1476
    %v1719 = vpop.f32.mrb[0].mxu0
    %v1720 = vadd.f32 %v1532, %v1719
    %v1721 = vpop.f32.mrb[0].mxu0
    %v1722 = vpop.f32.mrb[0].mxu0
    %v1723 = vadd.f32 %v1532, %v1722
    %v1724 = vpop.f32.mrb[0].mxu0
    %1725 = vdwg.mxu0
    %1726 = vmatprep.subr.bf16.mxu0 0
    %1727 = vmatpush1.bf16.msra.mxu0 %v1645
    %1728 = vmatprep.subr.bf16.mxu0 0
    %1729 = vmatpush1.bf16.msra.mxu0 %v1646
    %1730 = vmatprep.subr.bf16.mxu0 0
    %1731 = vmatpush1.bf16.msra.mxu0 %v1647
    %1732 = vmatprep.subr.bf16.mxu0 0
    %1733 = vmatpush1.bf16.msra.mxu0 %v1648
    %1734 = vmatprep.subr.bf16.mxu0 0
    %1735 = vmatpush1.bf16.msra.mxu0 %v1649
    %1736 = vmatprep.subr.bf16.mxu0 0
    %1737 = vmatpush1.bf16.msra.mxu0 %v1650
    %1738 = vmatprep.subr.bf16.mxu0 0
    %1739 = vmatpush1.bf16.msra.mxu0 %v1651
    %1740 = vmatprep.subr.bf16.mxu0 0
    %1741 = vmatpush1.bf16.msra.mxu0 %v1652
    %1742 = vmatprep.subr.bf16.mxu0 0
    %1743 = vmatpush1.bf16.msra.mxu0 0
    %1744 = vmatprep.subr.bf16.mxu0 0
    %1745 = vmatpush1.bf16.msra.mxu0 0
    %1746 = vmatprep.subr.bf16.mxu0 0
    %1747 = vmatpush1.bf16.msra.mxu0 0
    %1748 = vmatprep.subr.bf16.mxu0 0
    %1749 = vmatpush1.bf16.msra.mxu0 0
    %1750 = vmatprep.subr.bf16.mxu0 0
    %1751 = vmatpush1.bf16.msra.mxu0 0
    %1752 = vmatprep.subr.bf16.mxu0 0
    %1753 = vmatpush1.bf16.msra.mxu0 0
    %1754 = vmatprep.subr.bf16.mxu0 0
    %1755 = vmatpush1.bf16.msra.mxu0 0
    %1756 = vmatprep.subr.bf16.mxu0 0
    %1757 = vmatpush1.bf16.msra.mxu0 0
    %1758 = vmatprep.mubr.bf16.mxu0 0
    %1759 = vmatmul.mubr.bf16.gmra.mrb[0].mxu0 %v1477
    %v1760 = vpop.f32.mrb[0].mxu0
    %v1761 = vadd.f32 %v1712, %v1760
    %v1762 = vpop.f32.mrb[0].mxu0
    %v1763 = vpop.f32.mrb[0].mxu0
    %v1764 = vadd.f32 %v1715, %v1763
    %v1765 = vpop.f32.mrb[0].mxu0
    %1766 = vmatprep.mubr.bf16.mxu0 0
    %1767 = vmatmul.mubr.bf16.gmra.mrb[0].mxu0 %v1478
    %v1768 = vpop.f32.mrb[0].mxu0
    %v1769 = vadd.f32 %v1720, %v1768
    %v1770 = vpop.f32.mrb[0].mxu0
    %v1771 = vpop.f32.mrb[0].mxu0
    %v1772 = vadd.f32 %v1723, %v1771
    %v1773 = vpop.f32.mrb[0].mxu0
    %1774 = vdwg.mxu0
    %v1775 = vmax.f32 %v1761, 0.0
    %v1776 = vmax.f32 %v1764, 0.0
    %v1777 = vmax.f32 %v1769, 0.0
    %v1778 = vmax.f32 %v1772, 0.0
    %1779 = vst [vmem:[#allocation2 + $0x8] sm:$0xff] %v1775
    %1780 = vst [vmem:[#allocation2 + $0x10] sm:$0xff] %v1776
    %1781 = vst [vmem:[#allocation2 + $0x28] sm:$0xff] %v1777
    %1782 = vst [vmem:[#allocation2 + $0x30] sm:$0xff] %v1778
    %v1783 = vld [vmem:[#allocation2 + $0x4] sm:$0xff]
    %v1784 = vld [vmem:[#allocation2 + $0xc] sm:$0xff]
    %v1785 = vld [vmem:[#allocation2 + $0x24] sm:$0xff]
    %v1786 = vld [vmem:[#allocation2 + $0x2c] sm:$0xff]
    %v1787 = vld [vmem:[#allocation2 + $0x14] sm:$0xff]
    %v1788 = vld [vmem:[#allocation2 + $0x34] sm:$0xff]
    %v1789 = vpack.c.bf16 %v1784, %v1783
    %v1790 = vpack.c.bf16 %v1786, %v1785
    %v1791 = vpack.c.bf16 %v1776, %v1775
    %v1792 = vpack.c.bf16 %v1778, %v1777
    %v1793 = vpack.c.bf16 %v1787, %v1784
    %v1794 = vpack.c.bf16 %v1788, %v1786
    %s1795 = scalar_lea.vmem [#allocation9], 768
    %v1796 = vld [vmem:[%s1795] sm:$0xf]
    %v1797 = vld [vmem:[%s1795 + $0x4] sm:$0xf]
    %v1798 = vld [vmem:[%s1795 + $0x8] sm:$0xf]
    %v1799 = vld [vmem:[%s1795 + $0xc] sm:$0xf]
    %v1800 = vld [vmem:[%s1795 + $0x10] sm:$0xf]
    %v1801 = vld [vmem:[%s1795 + $0x14] sm:$0xf]
    %v1802 = vld [vmem:[%s1795 + $0x18] sm:$0xf]
    %v1803 = vld [vmem:[%s1795 + $0x1c] sm:$0xf]
    %v1804 = vld [vmem:[%s1795 + $0x20] sm:$0xf]
    %v1805 = vld [vmem:[%s1795 + $0x24] sm:$0xf]
    %v1806 = vld [vmem:[%s1795 + $0x28] sm:$0xf]
    %v1807 = vld [vmem:[%s1795 + $0x2c] sm:$0xf]
    %v1808 = vld [vmem:[%s1795 + $0x30] sm:$0xf]
    %v1809 = vld [vmem:[%s1795 + $0x34] sm:$0xf]
    %v1810 = vld [vmem:[%s1795 + $0x38] sm:$0xf]
    %v1811 = vld [vmem:[%s1795 + $0x3c] sm:$0xf]
    %v1812 = vld [vmem:[%s1795 + $0x40] sm:$0xf]
    %v1813 = vld [vmem:[%s1795 + $0x44] sm:$0xf]
    %v1814 = vld [vmem:[%s1795 + $0x48] sm:$0xf]
    %v1815 = vld [vmem:[%s1795 + $0x4c] sm:$0xf]
    %v1816 = vld [vmem:[%s1795 + $0x50] sm:$0xf]
    %v1817 = vld [vmem:[%s1795 + $0x54] sm:$0xf]
    %v1818 = vld [vmem:[%s1795 + $0x58] sm:$0xf]
    %v1819 = vld [vmem:[%s1795 + $0x5c] sm:$0xf]
    %v1820 = vld [vmem:[%s1795 + $0x60] sm:$0xf]
    %v1821 = vld [vmem:[%s1795 + $0x64] sm:$0xf]
    %v1822 = vld [vmem:[%s1795 + $0x68] sm:$0xf]
    %v1823 = vld [vmem:[%s1795 + $0x6c] sm:$0xf]
    %v1824 = vld [vmem:[%s1795 + $0x70] sm:$0xf]
    %v1825 = vld [vmem:[%s1795 + $0x74] sm:$0xf]
    %v1826 = vld [vmem:[%s1795 + $0x78] sm:$0xf]
    %v1827 = vld [vmem:[%s1795 + $0x7c] sm:$0xf]
    %v1828 = vld [vmem:[%s1795 + $0x80] sm:$0xf]
    %v1829 = vld [vmem:[%s1795 + $0x84] sm:$0xf]
    %v1830 = vld [vmem:[%s1795 + $0x88] sm:$0xf]
    %v1831 = vld [vmem:[%s1795 + $0x8c] sm:$0xf]
    %v1832 = vld [vmem:[%s1795 + $0x90] sm:$0xf]
    %v1833 = vld [vmem:[%s1795 + $0x94] sm:$0xf]
    %v1834 = vld [vmem:[%s1795 + $0x98] sm:$0xf]
    %v1835 = vld [vmem:[%s1795 + $0x9c] sm:$0xf]
    %v1836 = vld [vmem:[%s1795 + $0xa0] sm:$0xf]
    %v1837 = vld [vmem:[%s1795 + $0xa4] sm:$0xf]
    %v1838 = vld [vmem:[%s1795 + $0xa8] sm:$0xf]
    %v1839 = vld [vmem:[%s1795 + $0xac] sm:$0xf]
    %v1840 = vld [vmem:[%s1795 + $0xb0] sm:$0xf]
    %v1841 = vld [vmem:[%s1795 + $0xb4] sm:$0xf]
    %v1842 = vld [vmem:[%s1795 + $0xb8] sm:$0xf]
    %v1843 = vld [vmem:[%s1795 + $0xbc] sm:$0xf]
    %v1844 = vld [vmem:[#allocation11 + $0x4] sm:$0x1]
    %v1845 = vlaneseq
    %v1846 = vshrl.u32 %v1845, 7
    %v1847 = vsub.s32 0, %v1846
    %v1848 = vrot.slane %v1844, %v1847
    %v1897 = vunpack.c.l.b16 %v1796
    %v1898 = vunpack.c.l.b16 %v1797
    %v1899 = vunpack.c.l.b16 %v1798
    %v1900 = vunpack.c.l.b16 %v1799
    %v1901 = vunpack.c.l.b16 %v1800
    %v1902 = vunpack.c.l.b16 %v1801
    %v1903 = vunpack.c.l.b16 %v1802
    %v1904 = vunpack.c.l.b16 %v1803
    %v1905 = vunpack.c.l.b16 %v1804
    %v1906 = vunpack.c.l.b16 %v1805
    %v1907 = vunpack.c.l.b16 %v1806
    %v1908 = vunpack.c.l.b16 %v1807
    %v1909 = vunpack.c.l.b16 %v1808
    %v1910 = vunpack.c.l.b16 %v1809
    %v1911 = vunpack.c.l.b16 %v1810
    %v1912 = vunpack.c.l.b16 %v1811
    %v1913 = vunpack.c.l.b16 %v1812
    %v1914 = vunpack.c.l.b16 %v1813
    %v1915 = vunpack.c.l.b16 %v1814
    %v1916 = vunpack.c.l.b16 %v1815
    %v1917 = vunpack.c.l.b16 %v1816
    %v1918 = vunpack.c.l.b16 %v1817
    %v1919 = vunpack.c.l.b16 %v1818
    %v1920 = vunpack.c.l.b16 %v1819
    %v1921 = vunpack.c.l.b16 %v1820
    %v1922 = vunpack.c.l.b16 %v1821
    %v1923 = vunpack.c.l.b16 %v1822
    %v1924 = vunpack.c.l.b16 %v1823
    %v1925 = vunpack.c.l.b16 %v1824
    %v1926 = vunpack.c.l.b16 %v1825
    %v1927 = vunpack.c.l.b16 %v1826
    %v1928 = vunpack.c.l.b16 %v1827
    %v1929 = vunpack.c.l.b16 %v1828
    %v1930 = vunpack.c.l.b16 %v1829
    %v1931 = vunpack.c.l.b16 %v1830
    %v1932 = vunpack.c.l.b16 %v1831
    %v1933 = vunpack.c.l.b16 %v1832
    %v1934 = vunpack.c.l.b16 %v1833
    %v1935 = vunpack.c.l.b16 %v1834
    %v1936 = vunpack.c.l.b16 %v1835
    %v1937 = vunpack.c.l.b16 %v1836
    %v1938 = vunpack.c.l.b16 %v1837
    %v1939 = vunpack.c.l.b16 %v1838
    %v1940 = vunpack.c.l.b16 %v1839
    %v1941 = vunpack.c.l.b16 %v1840
    %v1942 = vunpack.c.l.b16 %v1841
    %v1943 = vunpack.c.l.b16 %v1842
    %v1944 = vunpack.c.l.b16 %v1843
    %v1945 = vpack.c.b16 %v1898, %v1897
    %v1946 = vpack.c.b16 %v1900, %v1899
    %v1947 = vpack.c.b16 %v1902, %v1901
    %v1948 = vpack.c.b16 %v1904, %v1903
    %v1949 = vpack.c.b16 %v1906, %v1905
    %v1950 = vpack.c.b16 %v1908, %v1907
    %v1951 = vpack.c.b16 %v1910, %v1909
    %v1952 = vpack.c.b16 %v1912, %v1911
    %v1953 = vpack.c.b16 %v1914, %v1913
    %v1954 = vpack.c.b16 %v1916, %v1915
    %v1955 = vpack.c.b16 %v1918, %v1917
    %v1956 = vpack.c.b16 %v1920, %v1919
    %v1957 = vpack.c.b16 %v1922, %v1921
    %v1958 = vpack.c.b16 %v1924, %v1923
    %v1959 = vpack.c.b16 %v1926, %v1925
    %v1960 = vpack.c.b16 %v1928, %v1927
    %v1961 = vpack.c.b16 %v1930, %v1929
    %v1962 = vpack.c.b16 %v1932, %v1931
    %v1963 = vpack.c.b16 %v1934, %v1933
    %v1964 = vpack.c.b16 %v1936, %v1935
    %v1965 = vpack.c.b16 %v1938, %v1937
    %v1966 = vpack.c.b16 %v1940, %v1939
    %v1967 = vpack.c.b16 %v1942, %v1941
    %v1968 = vpack.c.b16 %v1944, %v1943
    %1993 = vmatprep.subr.bf16.mxu0 0
    %1994 = vmatpush1.bf16.msra.mxu0 %v1945
    %1995 = vmatprep.subr.bf16.mxu0 0
    %1996 = vmatpush1.bf16.msra.mxu0 %v1946
    %1997 = vmatprep.subr.bf16.mxu0 0
    %1998 = vmatpush1.bf16.msra.mxu0 %v1947
    %1999 = vmatprep.subr.bf16.mxu0 0
    %2000 = vmatpush1.bf16.msra.mxu0 %v1948
    %2001 = vmatprep.subr.bf16.mxu0 0
    %2002 = vmatpush1.bf16.msra.mxu0 %v1949
    %2003 = vmatprep.subr.bf16.mxu0 0
    %2004 = vmatpush1.bf16.msra.mxu0 %v1950
    %2005 = vmatprep.subr.bf16.mxu0 0
    %2006 = vmatpush1.bf16.msra.mxu0 %v1951
    %2007 = vmatprep.subr.bf16.mxu0 0
    %2008 = vmatpush1.bf16.msra.mxu0 %v1952
    %2009 = vmatprep.subr.bf16.mxu0 0
    %2010 = vmatpush1.bf16.msra.mxu0 %v1953
    %2011 = vmatprep.subr.bf16.mxu0 0
    %2012 = vmatpush1.bf16.msra.mxu0 %v1954
    %2013 = vmatprep.subr.bf16.mxu0 0
    %2014 = vmatpush1.bf16.msra.mxu0 %v1955
    %2015 = vmatprep.subr.bf16.mxu0 0
    %2016 = vmatpush1.bf16.msra.mxu0 %v1956
    %2017 = vmatprep.subr.bf16.mxu0 0
    %2018 = vmatpush1.bf16.msra.mxu0 %v1957
    %2019 = vmatprep.subr.bf16.mxu0 0
    %2020 = vmatpush1.bf16.msra.mxu0 %v1958
    %2021 = vmatprep.subr.bf16.mxu0 0
    %2022 = vmatpush1.bf16.msra.mxu0 %v1959
    %2023 = vmatprep.subr.bf16.mxu0 0
    %2024 = vmatpush1.bf16.msra.mxu0 %v1960
    %2025 = vmatprep.mubr.bf16.mxu0 %v1791
    %2026 = vmatmul.mubr.bf16.gmra.mrb[0].mxu0 %v1789
    %v2027 = vpop.f32.mrb[0].mxu0
    %v2028 = vadd.f32 %v1848, %v2027
    %v2029 = vpop.f32.mrb[0].mxu0
    %v2030 = vpop.f32.mrb[0].mxu0
    %v2031 = vadd.f32 %v1848, %v2030
    %v2032 = vpop.f32.mrb[0].mxu0
    %2033 = vmatprep.mubr.bf16.mxu0 %v1792
    %2034 = vmatmul.mubr.bf16.gmra.mrb[0].mxu0 %v1790
    %v2035 = vpop.f32.mrb[0].mxu0
    %v2036 = vadd.f32 %v1848, %v2035
    %v2037 = vpop.f32.mrb[0].mxu0
    %v2038 = vpop.f32.mrb[0].mxu0
    %v2039 = vadd.f32 %v1848, %v2038
    %v2040 = vpop.f32.mrb[0].mxu0
    %2041 = vdwg.mxu0
    %2042 = vmatprep.subr.bf16.mxu0 0
    %2043 = vmatpush1.bf16.msra.mxu0 %v1961
    %2044 = vmatprep.subr.bf16.mxu0 0
    %2045 = vmatpush1.bf16.msra.mxu0 %v1962
    %2046 = vmatprep.subr.bf16.mxu0 0
    %2047 = vmatpush1.bf16.msra.mxu0 %v1963
    %2048 = vmatprep.subr.bf16.mxu0 0
    %2049 = vmatpush1.bf16.msra.mxu0 %v1964
    %2050 = vmatprep.subr.bf16.mxu0 0
    %2051 = vmatpush1.bf16.msra.mxu0 %v1965
    %2052 = vmatprep.subr.bf16.mxu0 0
    %2053 = vmatpush1.bf16.msra.mxu0 %v1966
    %2054 = vmatprep.subr.bf16.mxu0 0
    %2055 = vmatpush1.bf16.msra.mxu0 %v1967
    %2056 = vmatprep.subr.bf16.mxu0 0
    %2057 = vmatpush1.bf16.msra.mxu0 %v1968
    %2058 = vmatprep.subr.bf16.mxu0 0
    %2059 = vmatpush1.bf16.msra.mxu0 0
    %2060 = vmatprep.subr.bf16.mxu0 0
    %2061 = vmatpush1.bf16.msra.mxu0 0
    %2062 = vmatprep.subr.bf16.mxu0 0
    %2063 = vmatpush1.bf16.msra.mxu0 0
    %2064 = vmatprep.subr.bf16.mxu0 0
    %2065 = vmatpush1.bf16.msra.mxu0 0
    %2066 = vmatprep.subr.bf16.mxu0 0
    %2067 = vmatpush1.bf16.msra.mxu0 0
    %2068 = vmatprep.subr.bf16.mxu0 0
    %2069 = vmatpush1.bf16.msra.mxu0 0
    %2070 = vmatprep.subr.bf16.mxu0 0
    %2071 = vmatpush1.bf16.msra.mxu0 0
    %2072 = vmatprep.subr.bf16.mxu0 0
    %2073 = vmatpush1.bf16.msra.mxu0 0
    %2074 = vmatprep.mubr.bf16.mxu0 0
    %2075 = vmatmul.mubr.bf16.gmra.mrb[0].mxu0 %v1793
    %v2076 = vpop.f32.mrb[0].mxu0
    %v2077 = vadd.f32 %v2028, %v2076
    %v2078 = vpop.f32.mrb[0].mxu0
    %v2079 = vpop.f32.mrb[0].mxu0
    %v2080 = vadd.f32 %v2031, %v2079
    %v2081 = vpop.f32.mrb[0].mxu0
    %2082 = vmatprep.mubr.bf16.mxu0 0
    %2083 = vmatmul.mubr.bf16.gmra.mrb[0].mxu0 %v1794
    %v2084 = vpop.f32.mrb[0].mxu0
    %v2085 = vadd.f32 %v2036, %v2084
    %v2086 = vpop.f32.mrb[0].mxu0
    %v2087 = vpop.f32.mrb[0].mxu0
    %v2088 = vadd.f32 %v2039, %v2087
    %v2089 = vpop.f32.mrb[0].mxu0
    %2090 = vdwg.mxu0
    %v2091 = vmax.f32 %v2077, 0.0
    %v2092 = vmax.f32 %v2080, 0.0
    %v2093 = vmax.f32 %v2085, 0.0
    %v2094 = vmax.f32 %v2088, 0.0
    %2095 = vst [vmem:[#allocation2 + $0x8] sm:$0xff] %v2091
    %2096 = vst [vmem:[#allocation2 + $0x10] sm:$0xff] %v2092
    %2097 = vst [vmem:[#allocation2 + $0x28] sm:$0xff] %v2093
    %2098 = vst [vmem:[#allocation2 + $0x30] sm:$0xff] %v2094
    %v2099 = vld [vmem:[#allocation2] sm:$0xff]
    %v2100 = vld [vmem:[#allocation2 + $0x8] sm:$0xff]
    %v2101 = vld [vmem:[#allocation2 + $0x20] sm:$0xff]
    %v2102 = vld [vmem:[#allocation2 + $0x28] sm:$0xff]
    %v2103 = vld [vmem:[#allocation2 + $0x10] sm:$0xff]
    %v2104 = vld [vmem:[#allocation2 + $0x18] sm:$0xff]
    %v2105 = vld [vmem:[#allocation2 + $0x30] sm:$0xff]
    %v2106 = vld [vmem:[#allocation2 + $0x38] sm:$0xff]
    %v2107 = vpack.c.bf16 %v2100, %v2099
    %v2108 = vpack.c.bf16 %v2102, %v2101
    %v2109 = vpack.c.bf16 %v2092, %v2091
    %v2110 = vpack.c.bf16 %v2094, %v2093
    %v2111 = vpack.c.bf16 %v2104, %v2103
    %v2112 = vpack.c.bf16 %v2106, %v2105
    %s2113 = scalar_lea.vmem [#allocation9], 960
    %v2114 = vld [vmem:[%s2113] sm:$0xf]
    %v2115 = vld [vmem:[%s2113 + $0x4] sm:$0xf]
    %v2116 = vld [vmem:[%s2113 + $0x8] sm:$0xf]
    %v2117 = vld [vmem:[%s2113 + $0xc] sm:$0xf]
    %v2118 = vld [vmem:[%s2113 + $0x10] sm:$0xf]
    %v2119 = vld [vmem:[%s2113 + $0x14] sm:$0xf]
    %v2120 = vld [vmem:[%s2113 + $0x18] sm:$0xf]
    %v2121 = vld [vmem:[%s2113 + $0x1c] sm:$0xf]
    %v2122 = vld [vmem:[%s2113 + $0x20] sm:$0xf]
    %v2123 = vld [vmem:[%s2113 + $0x24] sm:$0xf]
    %v2124 = vld [vmem:[%s2113 + $0x28] sm:$0xf]
    %v2125 = vld [vmem:[%s2113 + $0x2c] sm:$0xf]
    %v2126 = vld [vmem:[%s2113 + $0x30] sm:$0xf]
    %v2127 = vld [vmem:[%s2113 + $0x34] sm:$0xf]
    %v2128 = vld [vmem:[%s2113 + $0x38] sm:$0xf]
    %v2129 = vld [vmem:[%s2113 + $0x3c] sm:$0xf]
    %v2130 = vld [vmem:[%s2113 + $0x40] sm:$0xf]
    %v2131 = vld [vmem:[%s2113 + $0x44] sm:$0xf]
    %v2132 = vld [vmem:[%s2113 + $0x48] sm:$0xf]
    %v2133 = vld [vmem:[%s2113 + $0x4c] sm:$0xf]
    %v2134 = vld [vmem:[%s2113 + $0x50] sm:$0xf]
    %v2135 = vld [vmem:[%s2113 + $0x54] sm:$0xf]
    %v2136 = vld [vmem:[%s2113 + $0x58] sm:$0xf]
    %v2137 = vld [vmem:[%s2113 + $0x5c] sm:$0xf]
    %v2138 = vld [vmem:[%s2113 + $0x60] sm:$0xf]
    %v2139 = vld [vmem:[%s2113 + $0x64] sm:$0xf]
    %v2140 = vld [vmem:[%s2113 + $0x68] sm:$0xf]
    %v2141 = vld [vmem:[%s2113 + $0x6c] sm:$0xf]
    %v2142 = vld [vmem:[%s2113 + $0x70] sm:$0xf]
    %v2143 = vld [vmem:[%s2113 + $0x74] sm:$0xf]
    %v2144 = vld [vmem:[%s2113 + $0x78] sm:$0xf]
    %v2145 = vld [vmem:[%s2113 + $0x7c] sm:$0xf]
    %v2146 = vld [vmem:[%s2113 + $0x80] sm:$0xf]
    %v2147 = vld [vmem:[%s2113 + $0x84] sm:$0xf]
    %v2148 = vld [vmem:[%s2113 + $0x88] sm:$0xf]
    %v2149 = vld [vmem:[%s2113 + $0x8c] sm:$0xf]
    %v2150 = vld [vmem:[%s2113 + $0x90] sm:$0xf]
    %v2151 = vld [vmem:[%s2113 + $0x94] sm:$0xf]
    %v2152 = vld [vmem:[%s2113 + $0x98] sm:$0xf]
    %v2153 = vld [vmem:[%s2113 + $0x9c] sm:$0xf]
    %v2154 = vld [vmem:[%s2113 + $0xa0] sm:$0xf]
    %v2155 = vld [vmem:[%s2113 + $0xa4] sm:$0xf]
    %v2156 = vld [vmem:[%s2113 + $0xa8] sm:$0xf]
    %v2157 = vld [vmem:[%s2113 + $0xac] sm:$0xf]
    %v2158 = vld [vmem:[%s2113 + $0xb0] sm:$0xf]
    %v2159 = vld [vmem:[%s2113 + $0xb4] sm:$0xf]
    %v2160 = vld [vmem:[%s2113 + $0xb8] sm:$0xf]
    %v2161 = vld [vmem:[%s2113 + $0xbc] sm:$0xf]
    %v2162 = vld [vmem:[#allocation11 + $0x5] sm:$0x1]
    %v2163 = vlaneseq
    %v2164 = vshrl.u32 %v2163, 7
    %v2165 = vsub.s32 0, %v2164
    %v2166 = vrot.slane %v2162, %v2165
    %v2215 = vunpack.c.l.b16 %v2114
    %v2216 = vunpack.c.l.b16 %v2115
    %v2217 = vunpack.c.l.b16 %v2116
    %v2218 = vunpack.c.l.b16 %v2117
    %v2219 = vunpack.c.l.b16 %v2118
    %v2220 = vunpack.c.l.b16 %v2119
    %v2221 = vunpack.c.l.b16 %v2120
    %v2222 = vunpack.c.l.b16 %v2121
    %v2223 = vunpack.c.l.b16 %v2122
    %v2224 = vunpack.c.l.b16 %v2123
    %v2225 = vunpack.c.l.b16 %v2124
    %v2226 = vunpack.c.l.b16 %v2125
    %v2227 = vunpack.c.l.b16 %v2126
    %v2228 = vunpack.c.l.b16 %v2127
    %v2229 = vunpack.c.l.b16 %v2128
    %v2230 = vunpack.c.l.b16 %v2129
    %v2231 = vunpack.c.l.b16 %v2130
    %v2232 = vunpack.c.l.b16 %v2131
    %v2233 = vunpack.c.l.b16 %v2132
    %v2234 = vunpack.c.l.b16 %v2133
    %v2235 = vunpack.c.l.b16 %v2134
    %v2236 = vunpack.c.l.b16 %v2135
    %v2237 = vunpack.c.l.b16 %v2136
    %v2238 = vunpack.c.l.b16 %v2137
    %v2239 = vunpack.c.l.b16 %v2138
    %v2240 = vunpack.c.l.b16 %v2139
    %v2241 = vunpack.c.l.b16 %v2140
    %v2242 = vunpack.c.l.b16 %v2141
    %v2243 = vunpack.c.l.b16 %v2142
    %v2244 = vunpack.c.l.b16 %v2143
    %v2245 = vunpack.c.l.b16 %v2144
    %v2246 = vunpack.c.l.b16 %v2145
    %v2247 = vunpack.c.l.b16 %v2146
    %v2248 = vunpack.c.l.b16 %v2147
    %v2249 = vunpack.c.l.b16 %v2148
    %v2250 = vunpack.c.l.b16 %v2149
    %v2251 = vunpack.c.l.b16 %v2150
    %v2252 = vunpack.c.l.b16 %v2151
    %v2253 = vunpack.c.l.b16 %v2152
    %v2254 = vunpack.c.l.b16 %v2153
    %v2255 = vunpack.c.l.b16 %v2154
    %v2256 = vunpack.c.l.b16 %v2155
    %v2257 = vunpack.c.l.b16 %v2156
    %v2258 = vunpack.c.l.b16 %v2157
    %v2259 = vunpack.c.l.b16 %v2158
    %v2260 = vunpack.c.l.b16 %v2159
    %v2261 = vunpack.c.l.b16 %v2160
    %v2262 = vunpack.c.l.b16 %v2161
    %v2263 = vpack.c.b16 %v2216, %v2215
    %v2264 = vpack.c.b16 %v2218, %v2217
    %v2265 = vpack.c.b16 %v2220, %v2219
    %v2266 = vpack.c.b16 %v2222, %v2221
    %v2267 = vpack.c.b16 %v2224, %v2223
    %v2268 = vpack.c.b16 %v2226, %v2225
    %v2269 = vpack.c.b16 %v2228, %v2227
    %v2270 = vpack.c.b16 %v2230, %v2229
    %v2271 = vpack.c.b16 %v2232, %v2231
    %v2272 = vpack.c.b16 %v2234, %v2233
    %v2273 = vpack.c.b16 %v2236, %v2235
    %v2274 = vpack.c.b16 %v2238, %v2237
    %v2275 = vpack.c.b16 %v2240, %v2239
    %v2276 = vpack.c.b16 %v2242, %v2241
    %v2277 = vpack.c.b16 %v2244, %v2243
    %v2278 = vpack.c.b16 %v2246, %v2245
    %v2279 = vpack.c.b16 %v2248, %v2247
    %v2280 = vpack.c.b16 %v2250, %v2249
    %v2281 = vpack.c.b16 %v2252, %v2251
    %v2282 = vpack.c.b16 %v2254, %v2253
    %v2283 = vpack.c.b16 %v2256, %v2255
    %v2284 = vpack.c.b16 %v2258, %v2257
    %v2285 = vpack.c.b16 %v2260, %v2259
    %v2286 = vpack.c.b16 %v2262, %v2261
    %2311 = vmatprep.subr.bf16.mxu0 0
    %2312 = vmatpush1.bf16.msra.mxu0 %v2263
    %2313 = vmatprep.subr.bf16.mxu0 0
    %2314 = vmatpush1.bf16.msra.mxu0 %v2264
    %2315 = vmatprep.subr.bf16.mxu0 0
    %2316 = vmatpush1.bf16.msra.mxu0 %v2265
    %2317 = vmatprep.subr.bf16.mxu0 0
    %2318 = vmatpush1.bf16.msra.mxu0 %v2266
    %2319 = vmatprep.subr.bf16.mxu0 0
    %2320 = vmatpush1.bf16.msra.mxu0 %v2267
    %2321 = vmatprep.subr.bf16.mxu0 0
    %2322 = vmatpush1.bf16.msra.mxu0 %v2268
    %2323 = vmatprep.subr.bf16.mxu0 0
    %2324 = vmatpush1.bf16.msra.mxu0 %v2269
    %2325 = vmatprep.subr.bf16.mxu0 0
    %2326 = vmatpush1.bf16.msra.mxu0 %v2270
    %2327 = vmatprep.subr.bf16.mxu0 0
    %2328 = vmatpush1.bf16.msra.mxu0 %v2271
    %2329 = vmatprep.subr.bf16.mxu0 0
    %2330 = vmatpush1.bf16.msra.mxu0 %v2272
    %2331 = vmatprep.subr.bf16.mxu0 0
    %2332 = vmatpush1.bf16.msra.mxu0 %v2273
    %2333 = vmatprep.subr.bf16.mxu0 0
    %2334 = vmatpush1.bf16.msra.mxu0 %v2274
    %2335 = vmatprep.subr.bf16.mxu0 0
    %2336 = vmatpush1.bf16.msra.mxu0 %v2275
    %2337 = vmatprep.subr.bf16.mxu0 0
    %2338 = vmatpush1.bf16.msra.mxu0 %v2276
    %2339 = vmatprep.subr.bf16.mxu0 0
    %2340 = vmatpush1.bf16.msra.mxu0 %v2277
    %2341 = vmatprep.subr.bf16.mxu0 0
    %2342 = vmatpush1.bf16.msra.mxu0 %v2278
    %2343 = vmatprep.mubr.bf16.mxu0 %v2109
    %2344 = vmatmul.mubr.bf16.gmra.mrb[0].mxu0 %v2107
    %v2345 = vpop.f32.mrb[0].mxu0
    %v2346 = vadd.f32 %v2166, %v2345
    %v2347 = vpop.f32.mrb[0].mxu0
    %v2348 = vpop.f32.mrb[0].mxu0
    %v2349 = vadd.f32 %v2166, %v2348
    %v2350 = vpop.f32.mrb[0].mxu0
    %2351 = vmatprep.mubr.bf16.mxu0 %v2110
    %2352 = vmatmul.mubr.bf16.gmra.mrb[0].mxu0 %v2108
    %v2353 = vpop.f32.mrb[0].mxu0
    %v2354 = vadd.f32 %v2166, %v2353
    %v2355 = vpop.f32.mrb[0].mxu0
    %v2356 = vpop.f32.mrb[0].mxu0
    %v2357 = vadd.f32 %v2166, %v2356
    %v2358 = vpop.f32.mrb[0].mxu0
    %2359 = vdwg.mxu0
    %2360 = vmatprep.subr.bf16.mxu0 0
    %2361 = vmatpush1.bf16.msra.mxu0 %v2279
    %2362 = vmatprep.subr.bf16.mxu0 0
    %2363 = vmatpush1.bf16.msra.mxu0 %v2280
    %2364 = vmatprep.subr.bf16.mxu0 0
    %2365 = vmatpush1.bf16.msra.mxu0 %v2281
    %2366 = vmatprep.subr.bf16.mxu0 0
    %2367 = vmatpush1.bf16.msra.mxu0 %v2282
    %2368 = vmatprep.subr.bf16.mxu0 0
    %2369 = vmatpush1.bf16.msra.mxu0 %v2283
    %2370 = vmatprep.subr.bf16.mxu0 0
    %2371 = vmatpush1.bf16.msra.mxu0 %v2284
    %2372 = vmatprep.subr.bf16.mxu0 0
    %2373 = vmatpush1.bf16.msra.mxu0 %v2285
    %2374 = vmatprep.subr.bf16.mxu0 0
    %2375 = vmatpush1.bf16.msra.mxu0 %v2286
    %2376 = vmatprep.subr.bf16.mxu0 0
    %2377 = vmatpush1.bf16.msra.mxu0 0
    %2378 = vmatprep.subr.bf16.mxu0 0
    %2379 = vmatpush1.bf16.msra.mxu0 0
    %2380 = vmatprep.subr.bf16.mxu0 0
    %2381 = vmatpush1.bf16.msra.mxu0 0
    %2382 = vmatprep.subr.bf16.mxu0 0
    %2383 = vmatpush1.bf16.msra.mxu0 0
    %2384 = vmatprep.subr.bf16.mxu0 0
    %2385 = vmatpush1.bf16.msra.mxu0 0
    %2386 = vmatprep.subr.bf16.mxu0 0
    %2387 = vmatpush1.bf16.msra.mxu0 0
    %2388 = vmatprep.subr.bf16.mxu0 0
    %2389 = vmatpush1.bf16.msra.mxu0 0
    %2390 = vmatprep.subr.bf16.mxu0 0
    %2391 = vmatpush1.bf16.msra.mxu0 0
    %2392 = vmatprep.mubr.bf16.mxu0 0
    %2393 = vmatmul.mubr.bf16.gmra.mrb[0].mxu0 %v2111
    %v2394 = vpop.f32.mrb[0].mxu0
    %v2395 = vadd.f32 %v2346, %v2394
    %v2396 = vpop.f32.mrb[0].mxu0
    %v2397 = vpop.f32.mrb[0].mxu0
    %v2398 = vadd.f32 %v2349, %v2397
    %v2399 = vpop.f32.mrb[0].mxu0
    %2400 = vmatprep.mubr.bf16.mxu0 0
    %2401 = vmatmul.mubr.bf16.gmra.mrb[0].mxu0 %v2112
    %v2402 = vpop.f32.mrb[0].mxu0
    %v2403 = vadd.f32 %v2354, %v2402
    %v2404 = vpop.f32.mrb[0].mxu0
    %v2405 = vpop.f32.mrb[0].mxu0
    %v2406 = vadd.f32 %v2357, %v2405
    %v2407 = vpop.f32.mrb[0].mxu0
    %2408 = vdwg.mxu0
    %v2409 = vmax.f32 %v2395, 0.0
    %v2410 = vmax.f32 %v2398, 0.0
    %v2411 = vmax.f32 %v2403, 0.0
    %v2412 = vmax.f32 %v2406, 0.0
    %v2413 = vadd.f32 %v1459, %v2409
    %v2414 = vadd.f32 %v1460, %v2410
    %v2415 = vadd.f32 %v1461, %v2411
    %v2416 = vadd.f32 %v1462, %v2412
    %2417 = vst [vmem:[#allocation2 + $0x8] sm:$0xff] %v490
    %2418 = vst [vmem:[#allocation2 + $0x10] sm:$0xff] %v493
    %2419 = vst [vmem:[#allocation2 + $0x28] sm:$0xff] %v498
    %2420 = vst [vmem:[#allocation2 + $0x30] sm:$0xff] %v501
    %v2421 = vld [vmem:[#allocation2 + $0x6] sm:$0xff]
    %v2422 = vld [vmem:[#allocation2 + $0xe] sm:$0xff]
    %v2423 = vld [vmem:[#allocation2 + $0x26] sm:$0xff]
    %v2424 = vld [vmem:[#allocation2 + $0x2e] sm:$0xff]
    %v2425 = vld [vmem:[#allocation2 + $0xa] sm:$0xff]
    %v2426 = vld [vmem:[#allocation2 + $0x12] sm:$0xff]
    %v2427 = vld [vmem:[#allocation2 + $0x2a] sm:$0xff]
    %v2428 = vld [vmem:[#allocation2 + $0x32] sm:$0xff]
    %v2429 = vpack.c.bf16 %v2422, %v2421
    %v2430 = vpack.c.bf16 %v2424, %v2423
    %v2431 = vpack.c.bf16 %v2426, %v2425
    %v2432 = vpack.c.bf16 %v2428, %v2427
    %s2433 = scalar_lea.vmem [#allocation9], 1152
    %v2434 = vld [vmem:[%s2433] sm:$0xf]
    %v2435 = vld [vmem:[%s2433 + $0x4] sm:$0xf]
    %v2436 = vld [vmem:[%s2433 + $0x8] sm:$0xf]
    %v2437 = vld [vmem:[%s2433 + $0xc] sm:$0xf]
    %v2438 = vld [vmem:[%s2433 + $0x10] sm:$0xf]
    %v2439 = vld [vmem:[%s2433 + $0x14] sm:$0xf]
    %v2440 = vld [vmem:[%s2433 + $0x18] sm:$0xf]
    %v2441 = vld [vmem:[%s2433 + $0x1c] sm:$0xf]
    %v2442 = vld [vmem:[%s2433 + $0x20] sm:$0xf]
    %v2443 = vld [vmem:[%s2433 + $0x24] sm:$0xf]
    %v2444 = vld [vmem:[%s2433 + $0x28] sm:$0xf]
    %v2445 = vld [vmem:[%s2433 + $0x2c] sm:$0xf]
    %v2446 = vld [vmem:[%s2433 + $0x30] sm:$0xf]
    %v2447 = vld [vmem:[%s2433 + $0x34] sm:$0xf]
    %v2448 = vld [vmem:[%s2433 + $0x38] sm:$0xf]
    %v2449 = vld [vmem:[%s2433 + $0x3c] sm:$0xf]
    %v2450 = vld [vmem:[%s2433 + $0x40] sm:$0xf]
    %v2451 = vld [vmem:[%s2433 + $0x44] sm:$0xf]
    %v2452 = vld [vmem:[%s2433 + $0x48] sm:$0xf]
    %v2453 = vld [vmem:[%s2433 + $0x4c] sm:$0xf]
    %v2454 = vld [vmem:[%s2433 + $0x50] sm:$0xf]
    %v2455 = vld [vmem:[%s2433 + $0x54] sm:$0xf]
    %v2456 = vld [vmem:[%s2433 + $0x58] sm:$0xf]
    %v2457 = vld [vmem:[%s2433 + $0x5c] sm:$0xf]
    %v2458 = vld [vmem:[%s2433 + $0x60] sm:$0xf]
    %v2459 = vld [vmem:[%s2433 + $0x64] sm:$0xf]
    %v2460 = vld [vmem:[%s2433 + $0x68] sm:$0xf]
    %v2461 = vld [vmem:[%s2433 + $0x6c] sm:$0xf]
    %v2462 = vld [vmem:[%s2433 + $0x70] sm:$0xf]
    %v2463 = vld [vmem:[%s2433 + $0x74] sm:$0xf]
    %v2464 = vld [vmem:[%s2433 + $0x78] sm:$0xf]
    %v2465 = vld [vmem:[%s2433 + $0x7c] sm:$0xf]
    %v2466 = vld [vmem:[%s2433 + $0x80] sm:$0xf]
    %v2467 = vld [vmem:[%s2433 + $0x84] sm:$0xf]
    %v2468 = vld [vmem:[%s2433 + $0x88] sm:$0xf]
    %v2469 = vld [vmem:[%s2433 + $0x8c] sm:$0xf]
    %v2470 = vld [vmem:[%s2433 + $0x90] sm:$0xf]
    %v2471 = vld [vmem:[%s2433 + $0x94] sm:$0xf]
    %v2472 = vld [vmem:[%s2433 + $0x98] sm:$0xf]
    %v2473 = vld [vmem:[%s2433 + $0x9c] sm:$0xf]
    %v2474 = vld [vmem:[%s2433 + $0xa0] sm:$0xf]
    %v2475 = vld [vmem:[%s2433 + $0xa4] sm:$0xf]
    %v2476 = vld [vmem:[%s2433 + $0xa8] sm:$0xf]
    %v2477 = vld [vmem:[%s2433 + $0xac] sm:$0xf]
    %v2478 = vld [vmem:[%s2433 + $0xb0] sm:$0xf]
    %v2479 = vld [vmem:[%s2433 + $0xb4] sm:$0xf]
    %v2480 = vld [vmem:[%s2433 + $0xb8] sm:$0xf]
    %v2481 = vld [vmem:[%s2433 + $0xbc] sm:$0xf]
    %v2482 = vld [vmem:[#allocation11 + $0x6] sm:$0x1]
    %v2483 = vlaneseq
    %v2484 = vshrl.u32 %v2483, 7
    %v2485 = vsub.s32 0, %v2484
    %v2486 = vrot.slane %v2482, %v2485
    %v2535 = vunpack.c.l.b16 %v2434
    %v2536 = vunpack.c.l.b16 %v2435
    %v2537 = vunpack.c.l.b16 %v2436
    %v2538 = vunpack.c.l.b16 %v2437
    %v2539 = vunpack.c.l.b16 %v2438
    %v2540 = vunpack.c.l.b16 %v2439
    %v2541 = vunpack.c.l.b16 %v2440
    %v2542 = vunpack.c.l.b16 %v2441
    %v2543 = vunpack.c.l.b16 %v2442
    %v2544 = vunpack.c.l.b16 %v2443
    %v2545 = vunpack.c.l.b16 %v2444
    %v2546 = vunpack.c.l.b16 %v2445
    %v2547 = vunpack.c.l.b16 %v2446
    %v2548 = vunpack.c.l.b16 %v2447
    %v2549 = vunpack.c.l.b16 %v2448
    %v2550 = vunpack.c.l.b16 %v2449
    %v2551 = vunpack.c.l.b16 %v2450
    %v2552 = vunpack.c.l.b16 %v2451
    %v2553 = vunpack.c.l.b16 %v2452
    %v2554 = vunpack.c.l.b16 %v2453
    %v2555 = vunpack.c.l.b16 %v2454
    %v2556 = vunpack.c.l.b16 %v2455
    %v2557 = vunpack.c.l.b16 %v2456
    %v2558 = vunpack.c.l.b16 %v2457
    %v2559 = vunpack.c.l.b16 %v2458
    %v2560 = vunpack.c.l.b16 %v2459
    %v2561 = vunpack.c.l.b16 %v2460
    %v2562 = vunpack.c.l.b16 %v2461
    %v2563 = vunpack.c.l.b16 %v2462
    %v2564 = vunpack.c.l.b16 %v2463
    %v2565 = vunpack.c.l.b16 %v2464
    %v2566 = vunpack.c.l.b16 %v2465
    %v2567 = vunpack.c.l.b16 %v2466
    %v2568 = vunpack.c.l.b16 %v2467
    %v2569 = vunpack.c.l.b16 %v2468
    %v2570 = vunpack.c.l.b16 %v2469
    %v2571 = vunpack.c.l.b16 %v2470
    %v2572 = vunpack.c.l.b16 %v2471
    %v2573 = vunpack.c.l.b16 %v2472
    %v2574 = vunpack.c.l.b16 %v2473
    %v2575 = vunpack.c.l.b16 %v2474
    %v2576 = vunpack.c.l.b16 %v2475
    %v2577 = vunpack.c.l.b16 %v2476
    %v2578 = vunpack.c.l.b16 %v2477
    %v2579 = vunpack.c.l.b16 %v2478
    %v2580 = vunpack.c.l.b16 %v2479
    %v2581 = vunpack.c.l.b16 %v2480
    %v2582 = vunpack.c.l.b16 %v2481
    %v2583 = vpack.c.b16 %v2536, %v2535
    %v2584 = vpack.c.b16 %v2538, %v2537
    %v2585 = vpack.c.b16 %v2540, %v2539
    %v2586 = vpack.c.b16 %v2542, %v2541
    %v2587 = vpack.c.b16 %v2544, %v2543
    %v2588 = vpack.c.b16 %v2546, %v2545
    %v2589 = vpack.c.b16 %v2548, %v2547
    %v2590 = vpack.c.b16 %v2550, %v2549
    %v2591 = vpack.c.b16 %v2552, %v2551
    %v2592 = vpack.c.b16 %v2554, %v2553
    %v2593 = vpack.c.b16 %v2556, %v2555
    %v2594 = vpack.c.b16 %v2558, %v2557
    %v2595 = vpack.c.b16 %v2560, %v2559
    %v2596 = vpack.c.b16 %v2562, %v2561
    %v2597 = vpack.c.b16 %v2564, %v2563
    %v2598 = vpack.c.b16 %v2566, %v2565
    %v2599 = vpack.c.b16 %v2568, %v2567
    %v2600 = vpack.c.b16 %v2570, %v2569
    %v2601 = vpack.c.b16 %v2572, %v2571
    %v2602 = vpack.c.b16 %v2574, %v2573
    %v2603 = vpack.c.b16 %v2576, %v2575
    %v2604 = vpack.c.b16 %v2578, %v2577
    %v2605 = vpack.c.b16 %v2580, %v2579
    %v2606 = vpack.c.b16 %v2582, %v2581
    %2631 = vmatprep.subr.bf16.mxu0 0
    %2632 = vmatpush1.bf16.msra.mxu0 %v2583
    %2633 = vmatprep.subr.bf16.mxu0 0
    %2634 = vmatpush1.bf16.msra.mxu0 %v2584
    %2635 = vmatprep.subr.bf16.mxu0 0
    %2636 = vmatpush1.bf16.msra.mxu0 %v2585
    %2637 = vmatprep.subr.bf16.mxu0 0
    %2638 = vmatpush1.bf16.msra.mxu0 %v2586
    %2639 = vmatprep.subr.bf16.mxu0 0
    %2640 = vmatpush1.bf16.msra.mxu0 %v2587
    %2641 = vmatprep.subr.bf16.mxu0 0
    %2642 = vmatpush1.bf16.msra.mxu0 %v2588
    %2643 = vmatprep.subr.bf16.mxu0 0
    %2644 = vmatpush1.bf16.msra.mxu0 %v2589
    %2645 = vmatprep.subr.bf16.mxu0 0
    %2646 = vmatpush1.bf16.msra.mxu0 %v2590
    %2647 = vmatprep.subr.bf16.mxu0 0
    %2648 = vmatpush1.bf16.msra.mxu0 %v2591
    %2649 = vmatprep.subr.bf16.mxu0 0
    %2650 = vmatpush1.bf16.msra.mxu0 %v2592
    %2651 = vmatprep.subr.bf16.mxu0 0
    %2652 = vmatpush1.bf16.msra.mxu0 %v2593
    %2653 = vmatprep.subr.bf16.mxu0 0
    %2654 = vmatpush1.bf16.msra.mxu0 %v2594
    %2655 = vmatprep.subr.bf16.mxu0 0
    %2656 = vmatpush1.bf16.msra.mxu0 %v2595
    %2657 = vmatprep.subr.bf16.mxu0 0
    %2658 = vmatpush1.bf16.msra.mxu0 %v2596
    %2659 = vmatprep.subr.bf16.mxu0 0
    %2660 = vmatpush1.bf16.msra.mxu0 %v2597
    %2661 = vmatprep.subr.bf16.mxu0 0
    %2662 = vmatpush1.bf16.msra.mxu0 %v2598
    %2663 = vmatprep.mubr.bf16.mxu0 %v522
    %2664 = vmatmul.mubr.bf16.gmra.mrb[0].mxu0 %v2429
    %v2665 = vpop.f32.mrb[0].mxu0
    %v2666 = vadd.f32 %v2486, %v2665
    %v2667 = vpop.f32.mrb[0].mxu0
    %v2668 = vpop.f32.mrb[0].mxu0
    %v2669 = vadd.f32 %v2486, %v2668
    %v2670 = vpop.f32.mrb[0].mxu0
    %2671 = vmatprep.mubr.bf16.mxu0 %v523
    %2672 = vmatmul.mubr.bf16.gmra.mrb[0].mxu0 %v2430
    %v2673 = vpop.f32.mrb[0].mxu0
    %v2674 = vadd.f32 %v2486, %v2673
    %v2675 = vpop.f32.mrb[0].mxu0
    %v2676 = vpop.f32.mrb[0].mxu0
    %v2677 = vadd.f32 %v2486, %v2676
    %v2678 = vpop.f32.mrb[0].mxu0
    %2679 = vdwg.mxu0
    %2680 = vmatprep.subr.bf16.mxu0 0
    %2681 = vmatpush1.bf16.msra.mxu0 %v2599
    %2682 = vmatprep.subr.bf16.mxu0 0
    %2683 = vmatpush1.bf16.msra.mxu0 %v2600
    %2684 = vmatprep.subr.bf16.mxu0 0
    %2685 = vmatpush1.bf16.msra.mxu0 %v2601
    %2686 = vmatprep.subr.bf16.mxu0 0
    %2687 = vmatpush1.bf16.msra.mxu0 %v2602
    %2688 = vmatprep.subr.bf16.mxu0 0
    %2689 = vmatpush1.bf16.msra.mxu0 %v2603
    %2690 = vmatprep.subr.bf16.mxu0 0
    %2691 = vmatpush1.bf16.msra.mxu0 %v2604
    %2692 = vmatprep.subr.bf16.mxu0 0
    %2693 = vmatpush1.bf16.msra.mxu0 %v2605
    %2694 = vmatprep.subr.bf16.mxu0 0
    %2695 = vmatpush1.bf16.msra.mxu0 %v2606
    %2696 = vmatprep.subr.bf16.mxu0 0
    %2697 = vmatpush1.bf16.msra.mxu0 0
    %2698 = vmatprep.subr.bf16.mxu0 0
    %2699 = vmatpush1.bf16.msra.mxu0 0
    %2700 = vmatprep.subr.bf16.mxu0 0
    %2701 = vmatpush1.bf16.msra.mxu0 0
    %2702 = vmatprep.subr.bf16.mxu0 0
    %2703 = vmatpush1.bf16.msra.mxu0 0
    %2704 = vmatprep.subr.bf16.mxu0 0
    %2705 = vmatpush1.bf16.msra.mxu0 0
    %2706 = vmatprep.subr.bf16.mxu0 0
    %2707 = vmatpush1.bf16.msra.mxu0 0
    %2708 = vmatprep.subr.bf16.mxu0 0
    %2709 = vmatpush1.bf16.msra.mxu0 0
    %2710 = vmatprep.subr.bf16.mxu0 0
    %2711 = vmatpush1.bf16.msra.mxu0 0
    %2712 = vmatprep.mubr.bf16.mxu0 0
    %2713 = vmatmul.mubr.bf16.gmra.mrb[0].mxu0 %v2431
    %v2714 = vpop.f32.mrb[0].mxu0
    %v2715 = vadd.f32 %v2666, %v2714
    %v2716 = vpop.f32.mrb[0].mxu0
    %v2717 = vpop.f32.mrb[0].mxu0
    %v2718 = vadd.f32 %v2669, %v2717
    %v2719 = vpop.f32.mrb[0].mxu0
    %2720 = vmatprep.mubr.bf16.mxu0 0
    %2721 = vmatmul.mubr.bf16.gmra.mrb[0].mxu0 %v2432
    %v2722 = vpop.f32.mrb[0].mxu0
    %v2723 = vadd.f32 %v2674, %v2722
    %v2724 = vpop.f32.mrb[0].mxu0
    %v2725 = vpop.f32.mrb[0].mxu0
    %v2726 = vadd.f32 %v2677, %v2725
    %v2727 = vpop.f32.mrb[0].mxu0
    %2728 = vdwg.mxu0
    %v2729 = vmax.f32 %v2715, 0.0
    %v2730 = vmax.f32 %v2718, 0.0
    %v2731 = vmax.f32 %v2723, 0.0
    %v2732 = vmax.f32 %v2726, 0.0
    %2733 = vst [vmem:[#allocation2 + $0x8] sm:$0xff] %v2729
    %2734 = vst [vmem:[#allocation2 + $0x10] sm:$0xff] %v2730
    %2735 = vst [vmem:[#allocation2 + $0x28] sm:$0xff] %v2731
    %2736 = vst [vmem:[#allocation2 + $0x30] sm:$0xff] %v2732
    %v2737 = vld [vmem:[#allocation2 + $0x4] sm:$0xff]
    %v2738 = vld [vmem:[#allocation2 + $0xc] sm:$0xff]
    %v2739 = vld [vmem:[#allocation2 + $0x24] sm:$0xff]
    %v2740 = vld [vmem:[#allocation2 + $0x2c] sm:$0xff]
    %v2741 = vld [vmem:[#allocation2 + $0x14] sm:$0xff]
    %v2742 = vld [vmem:[#allocation2 + $0x34] sm:$0xff]
    %v2743 = vpack.c.bf16 %v2738, %v2737
    %v2744 = vpack.c.bf16 %v2740, %v2739
    %v2745 = vpack.c.bf16 %v2730, %v2729
    %v2746 = vpack.c.bf16 %v2732, %v2731
    %v2747 = vpack.c.bf16 %v2741, %v2738
    %v2748 = vpack.c.bf16 %v2742, %v2740
    %s2749 = scalar_lea.vmem [#allocation9], 1344
    %v2750 = vld [vmem:[%s2749] sm:$0xf]
    %v2751 = vld [vmem:[%s2749 + $0x4] sm:$0xf]
    %v2752 = vld [vmem:[%s2749 + $0x8] sm:$0xf]
    %v2753 = vld [vmem:[%s2749 + $0xc] sm:$0xf]
    %v2754 = vld [vmem:[%s2749 + $0x10] sm:$0xf]
    %v2755 = vld [vmem:[%s2749 + $0x14] sm:$0xf]
    %v2756 = vld [vmem:[%s2749 + $0x18] sm:$0xf]
    %v2757 = vld [vmem:[%s2749 + $0x1c] sm:$0xf]
    %v2758 = vld [vmem:[%s2749 + $0x20] sm:$0xf]
    %v2759 = vld [vmem:[%s2749 + $0x24] sm:$0xf]
    %v2760 = vld [vmem:[%s2749 + $0x28] sm:$0xf]
    %v2761 = vld [vmem:[%s2749 + $0x2c] sm:$0xf]
    %v2762 = vld [vmem:[%s2749 + $0x30] sm:$0xf]
    %v2763 = vld [vmem:[%s2749 + $0x34] sm:$0xf]
    %v2764 = vld [vmem:[%s2749 + $0x38] sm:$0xf]
    %v2765 = vld [vmem:[%s2749 + $0x3c] sm:$0xf]
    %v2766 = vld [vmem:[%s2749 + $0x40] sm:$0xf]
    %v2767 = vld [vmem:[%s2749 + $0x44] sm:$0xf]
    %v2768 = vld [vmem:[%s2749 + $0x48] sm:$0xf]
    %v2769 = vld [vmem:[%s2749 + $0x4c] sm:$0xf]
    %v2770 = vld [vmem:[%s2749 + $0x50] sm:$0xf]
    %v2771 = vld [vmem:[%s2749 + $0x54] sm:$0xf]
    %v2772 = vld [vmem:[%s2749 + $0x58] sm:$0xf]
    %v2773 = vld [vmem:[%s2749 + $0x5c] sm:$0xf]
    %v2774 = vld [vmem:[%s2749 + $0x60] sm:$0xf]
    %v2775 = vld [vmem:[%s2749 + $0x64] sm:$0xf]
    %v2776 = vld [vmem:[%s2749 + $0x68] sm:$0xf]
    %v2777 = vld [vmem:[%s2749 + $0x6c] sm:$0xf]
    %v2778 = vld [vmem:[%s2749 + $0x70] sm:$0xf]
    %v2779 = vld [vmem:[%s2749 + $0x74] sm:$0xf]
    %v2780 = vld [vmem:[%s2749 + $0x78] sm:$0xf]
    %v2781 = vld [vmem:[%s2749 + $0x7c] sm:$0xf]
    %v2782 = vld [vmem:[%s2749 + $0x80] sm:$0xf]
    %v2783 = vld [vmem:[%s2749 + $0x84] sm:$0xf]
    %v2784 = vld [vmem:[%s2749 + $0x88] sm:$0xf]
    %v2785 = vld [vmem:[%s2749 + $0x8c] sm:$0xf]
    %v2786 = vld [vmem:[%s2749 + $0x90] sm:$0xf]
    %v2787 = vld [vmem:[%s2749 + $0x94] sm:$0xf]
    %v2788 = vld [vmem:[%s2749 + $0x98] sm:$0xf]
    %v2789 = vld [vmem:[%s2749 + $0x9c] sm:$0xf]
    %v2790 = vld [vmem:[%s2749 + $0xa0] sm:$0xf]
    %v2791 = vld [vmem:[%s2749 + $0xa4] sm:$0xf]
    %v2792 = vld [vmem:[%s2749 + $0xa8] sm:$0xf]
    %v2793 = vld [vmem:[%s2749 + $0xac] sm:$0xf]
    %v2794 = vld [vmem:[%s2749 + $0xb0] sm:$0xf]
    %v2795 = vld [vmem:[%s2749 + $0xb4] sm:$0xf]
    %v2796 = vld [vmem:[%s2749 + $0xb8] sm:$0xf]
    %v2797 = vld [vmem:[%s2749 + $0xbc] sm:$0xf]
    %v2798 = vld [vmem:[#allocation11 + $0x7] sm:$0x1]
    %v2799 = vlaneseq
    %v2800 = vshrl.u32 %v2799, 7
    %v2801 = vsub.s32 0, %v2800
    %v2802 = vrot.slane %v2798, %v2801
    %v2851 = vunpack.c.l.b16 %v2750
    %v2852 = vunpack.c.l.b16 %v2751
    %v2853 = vunpack.c.l.b16 %v2752
    %v2854 = vunpack.c.l.b16 %v2753
    %v2855 = vunpack.c.l.b16 %v2754
    %v2856 = vunpack.c.l.b16 %v2755
    %v2857 = vunpack.c.l.b16 %v2756
    %v2858 = vunpack.c.l.b16 %v2757
    %v2859 = vunpack.c.l.b16 %v2758
    %v2860 = vunpack.c.l.b16 %v2759
    %v2861 = vunpack.c.l.b16 %v2760
    %v2862 = vunpack.c.l.b16 %v2761
    %v2863 = vunpack.c.l.b16 %v2762
    %v2864 = vunpack.c.l.b16 %v2763
    %v2865 = vunpack.c.l.b16 %v2764
    %v2866 = vunpack.c.l.b16 %v2765
    %v2867 = vunpack.c.l.b16 %v2766
    %v2868 = vunpack.c.l.b16 %v2767
    %v2869 = vunpack.c.l.b16 %v2768
    %v2870 = vunpack.c.l.b16 %v2769
    %v2871 = vunpack.c.l.b16 %v2770
    %v2872 = vunpack.c.l.b16 %v2771
    %v2873 = vunpack.c.l.b16 %v2772
    %v2874 = vunpack.c.l.b16 %v2773
    %v2875 = vunpack.c.l.b16 %v2774
    %v2876 = vunpack.c.l.b16 %v2775
    %v2877 = vunpack.c.l.b16 %v2776
    %v2878 = vunpack.c.l.b16 %v2777
    %v2879 = vunpack.c.l.b16 %v2778
    %v2880 = vunpack.c.l.b16 %v2779
    %v2881 = vunpack.c.l.b16 %v2780
    %v2882 = vunpack.c.l.b16 %v2781
    %v2883 = vunpack.c.l.b16 %v2782
    %v2884 = vunpack.c.l.b16 %v2783
    %v2885 = vunpack.c.l.b16 %v2784
    %v2886 = vunpack.c.l.b16 %v2785
    %v2887 = vunpack.c.l.b16 %v2786
    %v2888 = vunpack.c.l.b16 %v2787
    %v2889 = vunpack.c.l.b16 %v2788
    %v2890 = vunpack.c.l.b16 %v2789
    %v2891 = vunpack.c.l.b16 %v2790
    %v2892 = vunpack.c.l.b16 %v2791
    %v2893 = vunpack.c.l.b16 %v2792
    %v2894 = vunpack.c.l.b16 %v2793
    %v2895 = vunpack.c.l.b16 %v2794
    %v2896 = vunpack.c.l.b16 %v2795
    %v2897 = vunpack.c.l.b16 %v2796
    %v2898 = vunpack.c.l.b16 %v2797
    %v2899 = vpack.c.b16 %v2852, %v2851
    %v2900 = vpack.c.b16 %v2854, %v2853
    %v2901 = vpack.c.b16 %v2856, %v2855
    %v2902 = vpack.c.b16 %v2858, %v2857
    %v2903 = vpack.c.b16 %v2860, %v2859
    %v2904 = vpack.c.b16 %v2862, %v2861
    %v2905 = vpack.c.b16 %v2864, %v2863
    %v2906 = vpack.c.b16 %v2866, %v2865
    %v2907 = vpack.c.b16 %v2868, %v2867
    %v2908 = vpack.c.b16 %v2870, %v2869
    %v2909 = vpack.c.b16 %v2872, %v2871
    %v2910 = vpack.c.b16 %v2874, %v2873
    %v2911 = vpack.c.b16 %v2876, %v2875
    %v2912 = vpack.c.b16 %v2878, %v2877
    %v2913 = vpack.c.b16 %v2880, %v2879
    %v2914 = vpack.c.b16 %v2882, %v2881
    %v2915 = vpack.c.b16 %v2884, %v2883
    %v2916 = vpack.c.b16 %v2886, %v2885
    %v2917 = vpack.c.b16 %v2888, %v2887
    %v2918 = vpack.c.b16 %v2890, %v2889
    %v2919 = vpack.c.b16 %v2892, %v2891
    %v2920 = vpack.c.b16 %v2894, %v2893
    %v2921 = vpack.c.b16 %v2896, %v2895
    %v2922 = vpack.c.b16 %v2898, %v2897
    %2947 = vmatprep.subr.bf16.mxu0 0
    %2948 = vmatpush1.bf16.msra.mxu0 %v2899
    %2949 = vmatprep.subr.bf16.mxu0 0
    %2950 = vmatpush1.bf16.msra.mxu0 %v2900
    %2951 = vmatprep.subr.bf16.mxu0 0
    %2952 = vmatpush1.bf16.msra.mxu0 %v2901
    %2953 = vmatprep.subr.bf16.mxu0 0
    %2954 = vmatpush1.bf16.msra.mxu0 %v2902
    %2955 = vmatprep.subr.bf16.mxu0 0
    %2956 = vmatpush1.bf16.msra.mxu0 %v2903
    %2957 = vmatprep.subr.bf16.mxu0 0
    %2958 = vmatpush1.bf16.msra.mxu0 %v2904
    %2959 = vmatprep.subr.bf16.mxu0 0
    %2960 = vmatpush1.bf16.msra.mxu0 %v2905
    %2961 = vmatprep.subr.bf16.mxu0 0
    %2962 = vmatpush1.bf16.msra.mxu0 %v2906
    %2963 = vmatprep.subr.bf16.mxu0 0
    %2964 = vmatpush1.bf16.msra.mxu0 %v2907
    %2965 = vmatprep.subr.bf16.mxu0 0
    %2966 = vmatpush1.bf16.msra.mxu0 %v2908
    %2967 = vmatprep.subr.bf16.mxu0 0
    %2968 = vmatpush1.bf16.msra.mxu0 %v2909
    %2969 = vmatprep.subr.bf16.mxu0 0
    %2970 = vmatpush1.bf16.msra.mxu0 %v2910
    %2971 = vmatprep.subr.bf16.mxu0 0
    %2972 = vmatpush1.bf16.msra.mxu0 %v2911
    %2973 = vmatprep.subr.bf16.mxu0 0
    %2974 = vmatpush1.bf16.msra.mxu0 %v2912
    %2975 = vmatprep.subr.bf16.mxu0 0
    %2976 = vmatpush1.bf16.msra.mxu0 %v2913
    %2977 = vmatprep.subr.bf16.mxu0 0
    %2978 = vmatpush1.bf16.msra.mxu0 %v2914
    %2979 = vmatprep.mubr.bf16.mxu0 %v2745
    %2980 = vmatmul.mubr.bf16.gmra.mrb[0].mxu0 %v2743
    %v2981 = vpop.f32.mrb[0].mxu0
    %v2982 = vadd.f32 %v2802, %v2981
    %v2983 = vpop.f32.mrb[0].mxu0
    %v2984 = vpop.f32.mrb[0].mxu0
    %v2985 = vadd.f32 %v2802, %v2984
    %v2986 = vpop.f32.mrb[0].mxu0
    %2987 = vmatprep.mubr.bf16.mxu0 %v2746
    %2988 = vmatmul.mubr.bf16.gmra.mrb[0].mxu0 %v2744
    %v2989 = vpop.f32.mrb[0].mxu0
    %v2990 = vadd.f32 %v2802, %v2989
    %v2991 = vpop.f32.mrb[0].mxu0
    %v2992 = vpop.f32.mrb[0].mxu0
    %v2993 = vadd.f32 %v2802, %v2992
    %v2994 = vpop.f32.mrb[0].mxu0
    %2995 = vdwg.mxu0
    %2996 = vmatprep.subr.bf16.mxu0 0
    %2997 = vmatpush1.bf16.msra.mxu0 %v2915
    %2998 = vmatprep.subr.bf16.mxu0 0
    %2999 = vmatpush1.bf16.msra.mxu0 %v2916
    %3000 = vmatprep.subr.bf16.mxu0 0
    %3001 = vmatpush1.bf16.msra.mxu0 %v2917
    %3002 = vmatprep.subr.bf16.mxu0 0
    %3003 = vmatpush1.bf16.msra.mxu0 %v2918
    %3004 = vmatprep.subr.bf16.mxu0 0
    %3005 = vmatpush1.bf16.msra.mxu0 %v2919
    %3006 = vmatprep.subr.bf16.mxu0 0
    %3007 = vmatpush1.bf16.msra.mxu0 %v2920
    %3008 = vmatprep.subr.bf16.mxu0 0
    %3009 = vmatpush1.bf16.msra.mxu0 %v2921
    %3010 = vmatprep.subr.bf16.mxu0 0
    %3011 = vmatpush1.bf16.msra.mxu0 %v2922
    %3012 = vmatprep.subr.bf16.mxu0 0
    %3013 = vmatpush1.bf16.msra.mxu0 0
    %3014 = vmatprep.subr.bf16.mxu0 0
    %3015 = vmatpush1.bf16.msra.mxu0 0
    %3016 = vmatprep.subr.bf16.mxu0 0
    %3017 = vmatpush1.bf16.msra.mxu0 0
    %3018 = vmatprep.subr.bf16.mxu0 0
    %3019 = vmatpush1.bf16.msra.mxu0 0
    %3020 = vmatprep.subr.bf16.mxu0 0
    %3021 = vmatpush1.bf16.msra.mxu0 0
    %3022 = vmatprep.subr.bf16.mxu0 0
    %3023 = vmatpush1.bf16.msra.mxu0 0
    %3024 = vmatprep.subr.bf16.mxu0 0
    %3025 = vmatpush1.bf16.msra.mxu0 0
    %3026 = vmatprep.subr.bf16.mxu0 0
    %3027 = vmatpush1.bf16.msra.mxu0 0
    %3028 = vmatprep.mubr.bf16.mxu0 0
    %3029 = vmatmul.mubr.bf16.gmra.mrb[0].mxu0 %v2747
    %v3030 = vpop.f32.mrb[0].mxu0
    %v3031 = vadd.f32 %v2982, %v3030
    %v3032 = vpop.f32.mrb[0].mxu0
    %v3033 = vpop.f32.mrb[0].mxu0
    %v3034 = vadd.f32 %v2985, %v3033
    %v3035 = vpop.f32.mrb[0].mxu0
    %3036 = vmatprep.mubr.bf16.mxu0 0
    %3037 = vmatmul.mubr.bf16.gmra.mrb[0].mxu0 %v2748
    %v3038 = vpop.f32.mrb[0].mxu0
    %v3039 = vadd.f32 %v2990, %v3038
    %v3040 = vpop.f32.mrb[0].mxu0
    %v3041 = vpop.f32.mrb[0].mxu0
    %v3042 = vadd.f32 %v2993, %v3041
    %v3043 = vpop.f32.mrb[0].mxu0
    %3044 = vdwg.mxu0
    %v3045 = vmax.f32 %v3031, 0.0
    %v3046 = vmax.f32 %v3034, 0.0
    %v3047 = vmax.f32 %v3039, 0.0
    %v3048 = vmax.f32 %v3042, 0.0
    %3049 = vst [vmem:[#allocation2 + $0x8] sm:$0xff] %v3045
    %3050 = vst [vmem:[#allocation2 + $0x10] sm:$0xff] %v3046
    %3051 = vst [vmem:[#allocation2 + $0x28] sm:$0xff] %v3047
    %3052 = vst [vmem:[#allocation2 + $0x30] sm:$0xff] %v3048
    %v3053 = vld [vmem:[#allocation2] sm:$0xff]
    %v3054 = vld [vmem:[#allocation2 + $0x8] sm:$0xff]
    %v3055 = vld [vmem:[#allocation2 + $0x20] sm:$0xff]
    %v3056 = vld [vmem:[#allocation2 + $0x28] sm:$0xff]
    %v3057 = vld [vmem:[#allocation2 + $0x10] sm:$0xff]
    %v3058 = vld [vmem:[#allocation2 + $0x18] sm:$0xff]
    %v3059 = vld [vmem:[#allocation2 + $0x30] sm:$0xff]
    %v3060 = vld [vmem:[#allocation2 + $0x38] sm:$0xff]
    %v3061 = vpack.c.bf16 %v3054, %v3053
    %v3062 = vpack.c.bf16 %v3056, %v3055
    %v3063 = vpack.c.bf16 %v3046, %v3045
    %v3064 = vpack.c.bf16 %v3048, %v3047
    %v3065 = vpack.c.bf16 %v3058, %v3057
    %v3066 = vpack.c.bf16 %v3060, %v3059
    %s3067 = scalar_lea.vmem [#allocation9], 1536
    %v3068 = vld [vmem:[%s3067] sm:$0xf]
    %v3069 = vld [vmem:[%s3067 + $0x4] sm:$0xf]
    %v3070 = vld [vmem:[%s3067 + $0x8] sm:$0xf]
    %v3071 = vld [vmem:[%s3067 + $0xc] sm:$0xf]
    %v3072 = vld [vmem:[%s3067 + $0x10] sm:$0xf]
    %v3073 = vld [vmem:[%s3067 + $0x14] sm:$0xf]
    %v3074 = vld [vmem:[%s3067 + $0x18] sm:$0xf]
    %v3075 = vld [vmem:[%s3067 + $0x1c] sm:$0xf]
    %v3076 = vld [vmem:[%s3067 + $0x20] sm:$0xf]
    %v3077 = vld [vmem:[%s3067 + $0x24] sm:$0xf]
    %v3078 = vld [vmem:[%s3067 + $0x28] sm:$0xf]
    %v3079 = vld [vmem:[%s3067 + $0x2c] sm:$0xf]
    %v3080 = vld [vmem:[%s3067 + $0x30] sm:$0xf]
    %v3081 = vld [vmem:[%s3067 + $0x34] sm:$0xf]
    %v3082 = vld [vmem:[%s3067 + $0x38] sm:$0xf]
    %v3083 = vld [vmem:[%s3067 + $0x3c] sm:$0xf]
    %v3084 = vld [vmem:[%s3067 + $0x40] sm:$0xf]
    %v3085 = vld [vmem:[%s3067 + $0x44] sm:$0xf]
    %v3086 = vld [vmem:[%s3067 + $0x48] sm:$0xf]
    %v3087 = vld [vmem:[%s3067 + $0x4c] sm:$0xf]
    %v3088 = vld [vmem:[%s3067 + $0x50] sm:$0xf]
    %v3089 = vld [vmem:[%s3067 + $0x54] sm:$0xf]
    %v3090 = vld [vmem:[%s3067 + $0x58] sm:$0xf]
    %v3091 = vld [vmem:[%s3067 + $0x5c] sm:$0xf]
    %v3092 = vld [vmem:[%s3067 + $0x60] sm:$0xf]
    %v3093 = vld [vmem:[%s3067 + $0x64] sm:$0xf]
    %v3094 = vld [vmem:[%s3067 + $0x68] sm:$0xf]
    %v3095 = vld [vmem:[%s3067 + $0x6c] sm:$0xf]
    %v3096 = vld [vmem:[%s3067 + $0x70] sm:$0xf]
    %v3097 = vld [vmem:[%s3067 + $0x74] sm:$0xf]
    %v3098 = vld [vmem:[%s3067 + $0x78] sm:$0xf]
    %v3099 = vld [vmem:[%s3067 + $0x7c] sm:$0xf]
    %v3100 = vld [vmem:[%s3067 + $0x80] sm:$0xf]
    %v3101 = vld [vmem:[%s3067 + $0x84] sm:$0xf]
    %v3102 = vld [vmem:[%s3067 + $0x88] sm:$0xf]
    %v3103 = vld [vmem:[%s3067 + $0x8c] sm:$0xf]
    %v3104 = vld [vmem:[%s3067 + $0x90] sm:$0xf]
    %v3105 = vld [vmem:[%s3067 + $0x94] sm:$0xf]
    %v3106 = vld [vmem:[%s3067 + $0x98] sm:$0xf]
    %v3107 = vld [vmem:[%s3067 + $0x9c] sm:$0xf]
    %v3108 = vld [vmem:[%s3067 + $0xa0] sm:$0xf]
    %v3109 = vld [vmem:[%s3067 + $0xa4] sm:$0xf]
    %v3110 = vld [vmem:[%s3067 + $0xa8] sm:$0xf]
    %v3111 = vld [vmem:[%s3067 + $0xac] sm:$0xf]
    %v3112 = vld [vmem:[%s3067 + $0xb0] sm:$0xf]
    %v3113 = vld [vmem:[%s3067 + $0xb4] sm:$0xf]
    %v3114 = vld [vmem:[%s3067 + $0xb8] sm:$0xf]
    %v3115 = vld [vmem:[%s3067 + $0xbc] sm:$0xf]
    %v3116 = vld [vmem:[#allocation11 + $0x8] sm:$0x1]
    %v3117 = vlaneseq
    %v3118 = vshrl.u32 %v3117, 7
    %v3119 = vsub.s32 0, %v3118
    %v3120 = vrot.slane %v3116, %v3119
    %v3169 = vunpack.c.l.b16 %v3068
    %v3170 = vunpack.c.l.b16 %v3069
    %v3171 = vunpack.c.l.b16 %v3070
    %v3172 = vunpack.c.l.b16 %v3071
    %v3173 = vunpack.c.l.b16 %v3072
    %v3174 = vunpack.c.l.b16 %v3073
    %v3175 = vunpack.c.l.b16 %v3074
    %v3176 = vunpack.c.l.b16 %v3075
    %v3177 = vunpack.c.l.b16 %v3076
    %v3178 = vunpack.c.l.b16 %v3077
    %v3179 = vunpack.c.l.b16 %v3078
    %v3180 = vunpack.c.l.b16 %v3079
    %v3181 = vunpack.c.l.b16 %v3080
    %v3182 = vunpack.c.l.b16 %v3081
    %v3183 = vunpack.c.l.b16 %v3082
    %v3184 = vunpack.c.l.b16 %v3083
    %v3185 = vunpack.c.l.b16 %v3084
    %v3186 = vunpack.c.l.b16 %v3085
    %v3187 = vunpack.c.l.b16 %v3086
    %v3188 = vunpack.c.l.b16 %v3087
    %v3189 = vunpack.c.l.b16 %v3088
    %v3190 = vunpack.c.l.b16 %v3089
    %v3191 = vunpack.c.l.b16 %v3090
    %v3192 = vunpack.c.l.b16 %v3091
    %v3193 = vunpack.c.l.b16 %v3092
    %v3194 = vunpack.c.l.b16 %v3093
    %v3195 = vunpack.c.l.b16 %v3094
    %v3196 = vunpack.c.l.b16 %v3095
    %v3197 = vunpack.c.l.b16 %v3096
    %v3198 = vunpack.c.l.b16 %v3097
    %v3199 = vunpack.c.l.b16 %v3098
    %v3200 = vunpack.c.l.b16 %v3099
    %v3201 = vunpack.c.l.b16 %v3100
    %v3202 = vunpack.c.l.b16 %v3101
    %v3203 = vunpack.c.l.b16 %v3102
    %v3204 = vunpack.c.l.b16 %v3103
    %v3205 = vunpack.c.l.b16 %v3104
    %v3206 = vunpack.c.l.b16 %v3105
    %v3207 = vunpack.c.l.b16 %v3106
    %v3208 = vunpack.c.l.b16 %v3107
    %v3209 = vunpack.c.l.b16 %v3108
    %v3210 = vunpack.c.l.b16 %v3109
    %v3211 = vunpack.c.l.b16 %v3110
    %v3212 = vunpack.c.l.b16 %v3111
    %v3213 = vunpack.c.l.b16 %v3112
    %v3214 = vunpack.c.l.b16 %v3113
    %v3215 = vunpack.c.l.b16 %v3114
    %v3216 = vunpack.c.l.b16 %v3115
    %v3217 = vpack.c.b16 %v3170, %v3169
    %v3218 = vpack.c.b16 %v3172, %v3171
    %v3219 = vpack.c.b16 %v3174, %v3173
    %v3220 = vpack.c.b16 %v3176, %v3175
    %v3221 = vpack.c.b16 %v3178, %v3177
    %v3222 = vpack.c.b16 %v3180, %v3179
    %v3223 = vpack.c.b16 %v3182, %v3181
    %v3224 = vpack.c.b16 %v3184, %v3183
    %v3225 = vpack.c.b16 %v3186, %v3185
    %v3226 = vpack.c.b16 %v3188, %v3187
    %v3227 = vpack.c.b16 %v3190, %v3189
    %v3228 = vpack.c.b16 %v3192, %v3191
    %v3229 = vpack.c.b16 %v3194, %v3193
    %v3230 = vpack.c.b16 %v3196, %v3195
    %v3231 = vpack.c.b16 %v3198, %v3197
    %v3232 = vpack.c.b16 %v3200, %v3199
    %v3233 = vpack.c.b16 %v3202, %v3201
    %v3234 = vpack.c.b16 %v3204, %v3203
    %v3235 = vpack.c.b16 %v3206, %v3205
    %v3236 = vpack.c.b16 %v3208, %v3207
    %v3237 = vpack.c.b16 %v3210, %v3209
    %v3238 = vpack.c.b16 %v3212, %v3211
    %v3239 = vpack.c.b16 %v3214, %v3213
    %v3240 = vpack.c.b16 %v3216, %v3215
    %3265 = vmatprep.subr.bf16.mxu0 0
    %3266 = vmatpush1.bf16.msra.mxu0 %v3217
    %3267 = vmatprep.subr.bf16.mxu0 0
    %3268 = vmatpush1.bf16.msra.mxu0 %v3218
    %3269 = vmatprep.subr.bf16.mxu0 0
    %3270 = vmatpush1.bf16.msra.mxu0 %v3219
    %3271 = vmatprep.subr.bf16.mxu0 0
    %3272 = vmatpush1.bf16.msra.mxu0 %v3220
    %3273 = vmatprep.subr.bf16.mxu0 0
    %3274 = vmatpush1.bf16.msra.mxu0 %v3221
    %3275 = vmatprep.subr.bf16.mxu0 0
    %3276 = vmatpush1.bf16.msra.mxu0 %v3222
    %3277 = vmatprep.subr.bf16.mxu0 0
    %3278 = vmatpush1.bf16.msra.mxu0 %v3223
    %3279 = vmatprep.subr.bf16.mxu0 0
    %3280 = vmatpush1.bf16.msra.mxu0 %v3224
    %3281 = vmatprep.subr.bf16.mxu0 0
    %3282 = vmatpush1.bf16.msra.mxu0 %v3225
    %3283 = vmatprep.subr.bf16.mxu0 0
    %3284 = vmatpush1.bf16.msra.mxu0 %v3226
    %3285 = vmatprep.subr.bf16.mxu0 0
    %3286 = vmatpush1.bf16.msra.mxu0 %v3227
    %3287 = vmatprep.subr.bf16.mxu0 0
    %3288 = vmatpush1.bf16.msra.mxu0 %v3228
    %3289 = vmatprep.subr.bf16.mxu0 0
    %3290 = vmatpush1.bf16.msra.mxu0 %v3229
    %3291 = vmatprep.subr.bf16.mxu0 0
    %3292 = vmatpush1.bf16.msra.mxu0 %v3230
    %3293 = vmatprep.subr.bf16.mxu0 0
    %3294 = vmatpush1.bf16.msra.mxu0 %v3231
    %3295 = vmatprep.subr.bf16.mxu0 0
    %3296 = vmatpush1.bf16.msra.mxu0 %v3232
    %3297 = vmatprep.mubr.bf16.mxu0 %v3063
    %3298 = vmatmul.mubr.bf16.gmra.mrb[0].mxu0 %v3061
    %v3299 = vpop.f32.mrb[0].mxu0
    %v3300 = vadd.f32 %v3120, %v3299
    %v3301 = vpop.f32.mrb[0].mxu0
    %v3302 = vpop.f32.mrb[0].mxu0
    %v3303 = vadd.f32 %v3120, %v3302
    %v3304 = vpop.f32.mrb[0].mxu0
    %3305 = vmatprep.mubr.bf16.mxu0 %v3064
    %3306 = vmatmul.mubr.bf16.gmra.mrb[0].mxu0 %v3062
    %v3307 = vpop.f32.mrb[0].mxu0
    %v3308 = vadd.f32 %v3120, %v3307
    %v3309 = vpop.f32.mrb[0].mxu0
    %v3310 = vpop.f32.mrb[0].mxu0
    %v3311 = vadd.f32 %v3120, %v3310
    %v3312 = vpop.f32.mrb[0].mxu0
    %3313 = vdwg.mxu0
    %3314 = vmatprep.subr.bf16.mxu0 0
    %3315 = vmatpush1.bf16.msra.mxu0 %v3233
    %3316 = vmatprep.subr.bf16.mxu0 0
    %3317 = vmatpush1.bf16.msra.mxu0 %v3234
    %3318 = vmatprep.subr.bf16.mxu0 0
    %3319 = vmatpush1.bf16.msra.mxu0 %v3235
    %3320 = vmatprep.subr.bf16.mxu0 0
    %3321 = vmatpush1.bf16.msra.mxu0 %v3236
    %3322 = vmatprep.subr.bf16.mxu0 0
    %3323 = vmatpush1.bf16.msra.mxu0 %v3237
    %3324 = vmatprep.subr.bf16.mxu0 0
    %3325 = vmatpush1.bf16.msra.mxu0 %v3238
    %3326 = vmatprep.subr.bf16.mxu0 0
    %3327 = vmatpush1.bf16.msra.mxu0 %v3239
    %3328 = vmatprep.subr.bf16.mxu0 0
    %3329 = vmatpush1.bf16.msra.mxu0 %v3240
    %3330 = vmatprep.subr.bf16.mxu0 0
    %3331 = vmatpush1.bf16.msra.mxu0 0
    %3332 = vmatprep.subr.bf16.mxu0 0
    %3333 = vmatpush1.bf16.msra.mxu0 0
    %3334 = vmatprep.subr.bf16.mxu0 0
    %3335 = vmatpush1.bf16.msra.mxu0 0
    %3336 = vmatprep.subr.bf16.mxu0 0
    %3337 = vmatpush1.bf16.msra.mxu0 0
    %3338 = vmatprep.subr.bf16.mxu0 0
    %3339 = vmatpush1.bf16.msra.mxu0 0
    %3340 = vmatprep.subr.bf16.mxu0 0
    %3341 = vmatpush1.bf16.msra.mxu0 0
    %3342 = vmatprep.subr.bf16.mxu0 0
    %3343 = vmatpush1.bf16.msra.mxu0 0
    %3344 = vmatprep.subr.bf16.mxu0 0
    %3345 = vmatpush1.bf16.msra.mxu0 0
    %3346 = vmatprep.mubr.bf16.mxu0 0
    %3347 = vmatmul.mubr.bf16.gmra.mrb[0].mxu0 %v3065
    %v3348 = vpop.f32.mrb[0].mxu0
    %v3349 = vadd.f32 %v3300, %v3348
    %v3350 = vpop.f32.mrb[0].mxu0
    %v3351 = vpop.f32.mrb[0].mxu0
    %v3352 = vadd.f32 %v3303, %v3351
    %v3353 = vpop.f32.mrb[0].mxu0
    %3354 = vmatprep.mubr.bf16.mxu0 0
    %3355 = vmatmul.mubr.bf16.gmra.mrb[0].mxu0 %v3066
    %v3356 = vpop.f32.mrb[0].mxu0
    %v3357 = vadd.f32 %v3308, %v3356
    %v3358 = vpop.f32.mrb[0].mxu0
    %v3359 = vpop.f32.mrb[0].mxu0
    %v3360 = vadd.f32 %v3311, %v3359
    %v3361 = vpop.f32.mrb[0].mxu0
    %3362 = vdwg.mxu0
    %v3363 = vmax.f32 %v3349, 0.0
    %v3364 = vmax.f32 %v3352, 0.0
    %v3365 = vmax.f32 %v3357, 0.0
    %v3366 = vmax.f32 %v3360, 0.0
    %v3367 = vadd.f32 %v2413, %v3363
    %v3368 = vadd.f32 %v2414, %v3364
    %v3369 = vadd.f32 %v2415, %v3365
    %v3370 = vadd.f32 %v2416, %v3366
    %3371 = vst [vmem:[#allocation2 + $0x8] sm:$0xff] %v490
    %3372 = vst [vmem:[#allocation2 + $0x10] sm:$0xff] %v493
    %3373 = vst [vmem:[#allocation2 + $0x28] sm:$0xff] %v498
    %3374 = vst [vmem:[#allocation2 + $0x30] sm:$0xff] %v501
    %v3375 = vld [vmem:[#allocation2 + $0x6] sm:$0xff]
    %v3376 = vld [vmem:[#allocation2 + $0xe] sm:$0xff]
    %v3377 = vld [vmem:[#allocation2 + $0x26] sm:$0xff]
    %v3378 = vld [vmem:[#allocation2 + $0x2e] sm:$0xff]
    %v3379 = vld [vmem:[#allocation2 + $0xa] sm:$0xff]
    %v3380 = vld [vmem:[#allocation2 + $0x12] sm:$0xff]
    %v3381 = vld [vmem:[#allocation2 + $0x2a] sm:$0xff]
    %v3382 = vld [vmem:[#allocation2 + $0x32] sm:$0xff]
    %v3383 = vpack.c.bf16 %v3376, %v3375
    %v3384 = vpack.c.bf16 %v3378, %v3377
    %v3385 = vpack.c.bf16 %v3380, %v3379
    %v3386 = vpack.c.bf16 %v3382, %v3381
    %s3387 = scalar_lea.vmem [#allocation9], 1728
    %v3388 = vld [vmem:[%s3387] sm:$0xf]
    %v3389 = vld [vmem:[%s3387 + $0x4] sm:$0xf]
    %v3390 = vld [vmem:[%s3387 + $0x8] sm:$0xf]
    %v3391 = vld [vmem:[%s3387 + $0xc] sm:$0xf]
    %v3392 = vld [vmem:[%s3387 + $0x10] sm:$0xf]
    %v3393 = vld [vmem:[%s3387 + $0x14] sm:$0xf]
    %v3394 = vld [vmem:[%s3387 + $0x18] sm:$0xf]
    %v3395 = vld [vmem:[%s3387 + $0x1c] sm:$0xf]
    %v3396 = vld [vmem:[%s3387 + $0x20] sm:$0xf]
    %v3397 = vld [vmem:[%s3387 + $0x24] sm:$0xf]
    %v3398 = vld [vmem:[%s3387 + $0x28] sm:$0xf]
    %v3399 = vld [vmem:[%s3387 + $0x2c] sm:$0xf]
    %v3400 = vld [vmem:[%s3387 + $0x30] sm:$0xf]
    %v3401 = vld [vmem:[%s3387 + $0x34] sm:$0xf]
    %v3402 = vld [vmem:[%s3387 + $0x38] sm:$0xf]
    %v3403 = vld [vmem:[%s3387 + $0x3c] sm:$0xf]
    %v3404 = vld [vmem:[%s3387 + $0x40] sm:$0xf]
    %v3405 = vld [vmem:[%s3387 + $0x44] sm:$0xf]
    %v3406 = vld [vmem:[%s3387 + $0x48] sm:$0xf]
    %v3407 = vld [vmem:[%s3387 + $0x4c] sm:$0xf]
    %v3408 = vld [vmem:[%s3387 + $0x50] sm:$0xf]
    %v3409 = vld [vmem:[%s3387 + $0x54] sm:$0xf]
    %v3410 = vld [vmem:[%s3387 + $0x58] sm:$0xf]
    %v3411 = vld [vmem:[%s3387 + $0x5c] sm:$0xf]
    %v3412 = vld [vmem:[%s3387 + $0x60] sm:$0xf]
    %v3413 = vld [vmem:[%s3387 + $0x64] sm:$0xf]
    %v3414 = vld [vmem:[%s3387 + $0x68] sm:$0xf]
    %v3415 = vld [vmem:[%s3387 + $0x6c] sm:$0xf]
    %v3416 = vld [vmem:[%s3387 + $0x70] sm:$0xf]
    %v3417 = vld [vmem:[%s3387 + $0x74] sm:$0xf]
    %v3418 = vld [vmem:[%s3387 + $0x78] sm:$0xf]
    %v3419 = vld [vmem:[%s3387 + $0x7c] sm:$0xf]
    %v3420 = vld [vmem:[%s3387 + $0x80] sm:$0xf]
    %v3421 = vld [vmem:[%s3387 + $0x84] sm:$0xf]
    %v3422 = vld [vmem:[%s3387 + $0x88] sm:$0xf]
    %v3423 = vld [vmem:[%s3387 + $0x8c] sm:$0xf]
    %v3424 = vld [vmem:[%s3387 + $0x90] sm:$0xf]
    %v3425 = vld [vmem:[%s3387 + $0x94] sm:$0xf]
    %v3426 = vld [vmem:[%s3387 + $0x98] sm:$0xf]
    %v3427 = vld [vmem:[%s3387 + $0x9c] sm:$0xf]
    %v3428 = vld [vmem:[%s3387 + $0xa0] sm:$0xf]
    %v3429 = vld [vmem:[%s3387 + $0xa4] sm:$0xf]
    %v3430 = vld [vmem:[%s3387 + $0xa8] sm:$0xf]
    %v3431 = vld [vmem:[%s3387 + $0xac] sm:$0xf]
    %v3432 = vld [vmem:[%s3387 + $0xb0] sm:$0xf]
    %v3433 = vld [vmem:[%s3387 + $0xb4] sm:$0xf]
    %v3434 = vld [vmem:[%s3387 + $0xb8] sm:$0xf]
    %v3435 = vld [vmem:[%s3387 + $0xbc] sm:$0xf]
    %v3436 = vld [vmem:[#allocation11 + $0x9] sm:$0x1]
    %v3437 = vlaneseq
    %v3438 = vshrl.u32 %v3437, 7
    %v3439 = vsub.s32 0, %v3438
    %v3440 = vrot.slane %v3436, %v3439
    %v3489 = vunpack.c.l.b16 %v3388
    %v3490 = vunpack.c.l.b16 %v3389
    %v3491 = vunpack.c.l.b16 %v3390
    %v3492 = vunpack.c.l.b16 %v3391
    %v3493 = vunpack.c.l.b16 %v3392
    %v3494 = vunpack.c.l.b16 %v3393
    %v3495 = vunpack.c.l.b16 %v3394
    %v3496 = vunpack.c.l.b16 %v3395
    %v3497 = vunpack.c.l.b16 %v3396
    %v3498 = vunpack.c.l.b16 %v3397
    %v3499 = vunpack.c.l.b16 %v3398
    %v3500 = vunpack.c.l.b16 %v3399
    %v3501 = vunpack.c.l.b16 %v3400
    %v3502 = vunpack.c.l.b16 %v3401
    %v3503 = vunpack.c.l.b16 %v3402
    %v3504 = vunpack.c.l.b16 %v3403
    %v3505 = vunpack.c.l.b16 %v3404
    %v3506 = vunpack.c.l.b16 %v3405
    %v3507 = vunpack.c.l.b16 %v3406
    %v3508 = vunpack.c.l.b16 %v3407
    %v3509 = vunpack.c.l.b16 %v3408
    %v3510 = vunpack.c.l.b16 %v3409
    %v3511 = vunpack.c.l.b16 %v3410
    %v3512 = vunpack.c.l.b16 %v3411
    %v3513 = vunpack.c.l.b16 %v3412
    %v3514 = vunpack.c.l.b16 %v3413
    %v3515 = vunpack.c.l.b16 %v3414
    %v3516 = vunpack.c.l.b16 %v3415
    %v3517 = vunpack.c.l.b16 %v3416
    %v3518 = vunpack.c.l.b16 %v3417
    %v3519 = vunpack.c.l.b16 %v3418
    %v3520 = vunpack.c.l.b16 %v3419
    %v3521 = vunpack.c.l.b16 %v3420
    %v3522 = vunpack.c.l.b16 %v3421
    %v3523 = vunpack.c.l.b16 %v3422
    %v3524 = vunpack.c.l.b16 %v3423
    %v3525 = vunpack.c.l.b16 %v3424
    %v3526 = vunpack.c.l.b16 %v3425
    %v3527 = vunpack.c.l.b16 %v3426
    %v3528 = vunpack.c.l.b16 %v3427
    %v3529 = vunpack.c.l.b16 %v3428
    %v3530 = vunpack.c.l.b16 %v3429
    %v3531 = vunpack.c.l.b16 %v3430
    %v3532 = vunpack.c.l.b16 %v3431
    %v3533 = vunpack.c.l.b16 %v3432
    %v3534 = vunpack.c.l.b16 %v3433
    %v3535 = vunpack.c.l.b16 %v3434
    %v3536 = vunpack.c.l.b16 %v3435
    %v3537 = vpack.c.b16 %v3490, %v3489
    %v3538 = vpack.c.b16 %v3492, %v3491
    %v3539 = vpack.c.b16 %v3494, %v3493
    %v3540 = vpack.c.b16 %v3496, %v3495
    %v3541 = vpack.c.b16 %v3498, %v3497
    %v3542 = vpack.c.b16 %v3500, %v3499
    %v3543 = vpack.c.b16 %v3502, %v3501
    %v3544 = vpack.c.b16 %v3504, %v3503
    %v3545 = vpack.c.b16 %v3506, %v3505
    %v3546 = vpack.c.b16 %v3508, %v3507
    %v3547 = vpack.c.b16 %v3510, %v3509
    %v3548 = vpack.c.b16 %v3512, %v3511
    %v3549 = vpack.c.b16 %v3514, %v3513
    %v3550 = vpack.c.b16 %v3516, %v3515
    %v3551 = vpack.c.b16 %v3518, %v3517
    %v3552 = vpack.c.b16 %v3520, %v3519
    %v3553 = vpack.c.b16 %v3522, %v3521
    %v3554 = vpack.c.b16 %v3524, %v3523
    %v3555 = vpack.c.b16 %v3526, %v3525
    %v3556 = vpack.c.b16 %v3528, %v3527
    %v3557 = vpack.c.b16 %v3530, %v3529
    %v3558 = vpack.c.b16 %v3532, %v3531
    %v3559 = vpack.c.b16 %v3534, %v3533
    %v3560 = vpack.c.b16 %v3536, %v3535
    %3585 = vmatprep.subr.bf16.mxu0 0
    %3586 = vmatpush1.bf16.msra.mxu0 %v3537
    %3587 = vmatprep.subr.bf16.mxu0 0
    %3588 = vmatpush1.bf16.msra.mxu0 %v3538
    %3589 = vmatprep.subr.bf16.mxu0 0
    %3590 = vmatpush1.bf16.msra.mxu0 %v3539
    %3591 = vmatprep.subr.bf16.mxu0 0
    %3592 = vmatpush1.bf16.msra.mxu0 %v3540
    %3593 = vmatprep.subr.bf16.mxu0 0
    %3594 = vmatpush1.bf16.msra.mxu0 %v3541
    %3595 = vmatprep.subr.bf16.mxu0 0
    %3596 = vmatpush1.bf16.msra.mxu0 %v3542
    %3597 = vmatprep.subr.bf16.mxu0 0
    %3598 = vmatpush1.bf16.msra.mxu0 %v3543
    %3599 = vmatprep.subr.bf16.mxu0 0
    %3600 = vmatpush1.bf16.msra.mxu0 %v3544
    %3601 = vmatprep.subr.bf16.mxu0 0
    %3602 = vmatpush1.bf16.msra.mxu0 %v3545
    %3603 = vmatprep.subr.bf16.mxu0 0
    %3604 = vmatpush1.bf16.msra.mxu0 %v3546
    %3605 = vmatprep.subr.bf16.mxu0 0
    %3606 = vmatpush1.bf16.msra.mxu0 %v3547
    %3607 = vmatprep.subr.bf16.mxu0 0
    %3608 = vmatpush1.bf16.msra.mxu0 %v3548
    %3609 = vmatprep.subr.bf16.mxu0 0
    %3610 = vmatpush1.bf16.msra.mxu0 %v3549
    %3611 = vmatprep.subr.bf16.mxu0 0
    %3612 = vmatpush1.bf16.msra.mxu0 %v3550
    %3613 = vmatprep.subr.bf16.mxu0 0
    %3614 = vmatpush1.bf16.msra.mxu0 %v3551
    %3615 = vmatprep.subr.bf16.mxu0 0
    %3616 = vmatpush1.bf16.msra.mxu0 %v3552
    %3617 = vmatprep.mubr.bf16.mxu0 %v522
    %3618 = vmatmul.mubr.bf16.gmra.mrb[0].mxu0 %v3383
    %v3619 = vpop.f32.mrb[0].mxu0
    %v3620 = vadd.f32 %v3440, %v3619
    %v3621 = vpop.f32.mrb[0].mxu0
    %v3622 = vpop.f32.mrb[0].mxu0
    %v3623 = vadd.f32 %v3440, %v3622
    %v3624 = vpop.f32.mrb[0].mxu0
    %3625 = vmatprep.mubr.bf16.mxu0 %v523
    %3626 = vmatmul.mubr.bf16.gmra.mrb[0].mxu0 %v3384
    %v3627 = vpop.f32.mrb[0].mxu0
    %v3628 = vadd.f32 %v3440, %v3627
    %v3629 = vpop.f32.mrb[0].mxu0
    %v3630 = vpop.f32.mrb[0].mxu0
    %v3631 = vadd.f32 %v3440, %v3630
    %v3632 = vpop.f32.mrb[0].mxu0
    %3633 = vdwg.mxu0
    %3634 = vmatprep.subr.bf16.mxu0 0
    %3635 = vmatpush1.bf16.msra.mxu0 %v3553
    %3636 = vmatprep.subr.bf16.mxu0 0
    %3637 = vmatpush1.bf16.msra.mxu0 %v3554
    %3638 = vmatprep.subr.bf16.mxu0 0
    %3639 = vmatpush1.bf16.msra.mxu0 %v3555
    %3640 = vmatprep.subr.bf16.mxu0 0
    %3641 = vmatpush1.bf16.msra.mxu0 %v3556
    %3642 = vmatprep.subr.bf16.mxu0 0
    %3643 = vmatpush1.bf16.msra.mxu0 %v3557
    %3644 = vmatprep.subr.bf16.mxu0 0
    %3645 = vmatpush1.bf16.msra.mxu0 %v3558
    %3646 = vmatprep.subr.bf16.mxu0 0
    %3647 = vmatpush1.bf16.msra.mxu0 %v3559
    %3648 = vmatprep.subr.bf16.mxu0 0
    %3649 = vmatpush1.bf16.msra.mxu0 %v3560
    %3650 = vmatprep.subr.bf16.mxu0 0
    %3651 = vmatpush1.bf16.msra.mxu0 0
    %3652 = vmatprep.subr.bf16.mxu0 0
    %3653 = vmatpush1.bf16.msra.mxu0 0
    %3654 = vmatprep.subr.bf16.mxu0 0
    %3655 = vmatpush1.bf16.msra.mxu0 0
    %3656 = vmatprep.subr.bf16.mxu0 0
    %3657 = vmatpush1.bf16.msra.mxu0 0
    %3658 = vmatprep.subr.bf16.mxu0 0
    %3659 = vmatpush1.bf16.msra.mxu0 0
    %3660 = vmatprep.subr.bf16.mxu0 0
    %3661 = vmatpush1.bf16.msra.mxu0 0
    %3662 = vmatprep.subr.bf16.mxu0 0
    %3663 = vmatpush1.bf16.msra.mxu0 0
    %3664 = vmatprep.subr.bf16.mxu0 0
    %3665 = vmatpush1.bf16.msra.mxu0 0
    %3666 = vmatprep.mubr.bf16.mxu0 0
    %3667 = vmatmul.mubr.bf16.gmra.mrb[0].mxu0 %v3385
    %v3668 = vpop.f32.mrb[0].mxu0
    %v3669 = vadd.f32 %v3620, %v3668
    %v3670 = vpop.f32.mrb[0].mxu0
    %v3671 = vpop.f32.mrb[0].mxu0
    %v3672 = vadd.f32 %v3623, %v3671
    %v3673 = vpop.f32.mrb[0].mxu0
    %3674 = vmatprep.mubr.bf16.mxu0 0
    %3675 = vmatmul.mubr.bf16.gmra.mrb[0].mxu0 %v3386
    %v3676 = vpop.f32.mrb[0].mxu0
    %v3677 = vadd.f32 %v3628, %v3676
    %v3678 = vpop.f32.mrb[0].mxu0
    %v3679 = vpop.f32.mrb[0].mxu0
    %v3680 = vadd.f32 %v3631, %v3679
    %v3681 = vpop.f32.mrb[0].mxu0
    %3682 = vdwg.mxu0
    %v3683 = vmax.f32 %v3669, 0.0
    %v3684 = vmax.f32 %v3672, 0.0
    %v3685 = vmax.f32 %v3677, 0.0
    %v3686 = vmax.f32 %v3680, 0.0
    %3687 = vst [vmem:[#allocation2 + $0x8] sm:$0xff] %v3683
    %3688 = vst [vmem:[#allocation2 + $0x10] sm:$0xff] %v3684
    %3689 = vst [vmem:[#allocation2 + $0x28] sm:$0xff] %v3685
    %3690 = vst [vmem:[#allocation2 + $0x30] sm:$0xff] %v3686
    %v3691 = vld [vmem:[#allocation2 + $0x4] sm:$0xff]
    %v3692 = vld [vmem:[#allocation2 + $0xc] sm:$0xff]
    %v3693 = vld [vmem:[#allocation2 + $0x24] sm:$0xff]
    %v3694 = vld [vmem:[#allocation2 + $0x2c] sm:$0xff]
    %v3695 = vld [vmem:[#allocation2 + $0x14] sm:$0xff]
    %v3696 = vld [vmem:[#allocation2 + $0x34] sm:$0xff]
    %v3697 = vpack.c.bf16 %v3692, %v3691
    %v3698 = vpack.c.bf16 %v3694, %v3693
    %v3699 = vpack.c.bf16 %v3684, %v3683
    %v3700 = vpack.c.bf16 %v3686, %v3685
    %v3701 = vpack.c.bf16 %v3695, %v3692
    %v3702 = vpack.c.bf16 %v3696, %v3694
    %s3703 = scalar_lea.vmem [#allocation9], 1920
    %v3704 = vld [vmem:[%s3703] sm:$0xf]
    %v3705 = vld [vmem:[%s3703 + $0x4] sm:$0xf]
    %v3706 = vld [vmem:[%s3703 + $0x8] sm:$0xf]
    %v3707 = vld [vmem:[%s3703 + $0xc] sm:$0xf]
    %v3708 = vld [vmem:[%s3703 + $0x10] sm:$0xf]
    %v3709 = vld [vmem:[%s3703 + $0x14] sm:$0xf]
    %v3710 = vld [vmem:[%s3703 + $0x18] sm:$0xf]
    %v3711 = vld [vmem:[%s3703 + $0x1c] sm:$0xf]
    %v3712 = vld [vmem:[%s3703 + $0x20] sm:$0xf]
    %v3713 = vld [vmem:[%s3703 + $0x24] sm:$0xf]
    %v3714 = vld [vmem:[%s3703 + $0x28] sm:$0xf]
    %v3715 = vld [vmem:[%s3703 + $0x2c] sm:$0xf]
    %v3716 = vld [vmem:[%s3703 + $0x30] sm:$0xf]
    %v3717 = vld [vmem:[%s3703 + $0x34] sm:$0xf]
    %v3718 = vld [vmem:[%s3703 + $0x38] sm:$0xf]
    %v3719 = vld [vmem:[%s3703 + $0x3c] sm:$0xf]
    %v3720 = vld [vmem:[%s3703 + $0x40] sm:$0xf]
    %v3721 = vld [vmem:[%s3703 + $0x44] sm:$0xf]
    %v3722 = vld [vmem:[%s3703 + $0x48] sm:$0xf]
    %v3723 = vld [vmem:[%s3703 + $0x4c] sm:$0xf]
    %v3724 = vld [vmem:[%s3703 + $0x50] sm:$0xf]
    %v3725 = vld [vmem:[%s3703 + $0x54] sm:$0xf]
    %v3726 = vld [vmem:[%s3703 + $0x58] sm:$0xf]
    %v3727 = vld [vmem:[%s3703 + $0x5c] sm:$0xf]
    %v3728 = vld [vmem:[%s3703 + $0x60] sm:$0xf]
    %v3729 = vld [vmem:[%s3703 + $0x64] sm:$0xf]
    %v3730 = vld [vmem:[%s3703 + $0x68] sm:$0xf]
    %v3731 = vld [vmem:[%s3703 + $0x6c] sm:$0xf]
    %v3732 = vld [vmem:[%s3703 + $0x70] sm:$0xf]
    %v3733 = vld [vmem:[%s3703 + $0x74] sm:$0xf]
    %v3734 = vld [vmem:[%s3703 + $0x78] sm:$0xf]
    %v3735 = vld [vmem:[%s3703 + $0x7c] sm:$0xf]
    %v3736 = vld [vmem:[%s3703 + $0x80] sm:$0xf]
    %v3737 = vld [vmem:[%s3703 + $0x84] sm:$0xf]
    %v3738 = vld [vmem:[%s3703 + $0x88] sm:$0xf]
    %v3739 = vld [vmem:[%s3703 + $0x8c] sm:$0xf]
    %v3740 = vld [vmem:[%s3703 + $0x90] sm:$0xf]
    %v3741 = vld [vmem:[%s3703 + $0x94] sm:$0xf]
    %v3742 = vld [vmem:[%s3703 + $0x98] sm:$0xf]
    %v3743 = vld [vmem:[%s3703 + $0x9c] sm:$0xf]
    %v3744 = vld [vmem:[%s3703 + $0xa0] sm:$0xf]
    %v3745 = vld [vmem:[%s3703 + $0xa4] sm:$0xf]
    %v3746 = vld [vmem:[%s3703 + $0xa8] sm:$0xf]
    %v3747 = vld [vmem:[%s3703 + $0xac] sm:$0xf]
    %v3748 = vld [vmem:[%s3703 + $0xb0] sm:$0xf]
    %v3749 = vld [vmem:[%s3703 + $0xb4] sm:$0xf]
    %v3750 = vld [vmem:[%s3703 + $0xb8] sm:$0xf]
    %v3751 = vld [vmem:[%s3703 + $0xbc] sm:$0xf]
    %v3752 = vld [vmem:[#allocation11 + $0xa] sm:$0x1]
    %v3753 = vlaneseq
    %v3754 = vshrl.u32 %v3753, 7
    %v3755 = vsub.s32 0, %v3754
    %v3756 = vrot.slane %v3752, %v3755
    %v3805 = vunpack.c.l.b16 %v3704
    %v3806 = vunpack.c.l.b16 %v3705
    %v3807 = vunpack.c.l.b16 %v3706
    %v3808 = vunpack.c.l.b16 %v3707
    %v3809 = vunpack.c.l.b16 %v3708
    %v3810 = vunpack.c.l.b16 %v3709
    %v3811 = vunpack.c.l.b16 %v3710
    %v3812 = vunpack.c.l.b16 %v3711
    %v3813 = vunpack.c.l.b16 %v3712
    %v3814 = vunpack.c.l.b16 %v3713
    %v3815 = vunpack.c.l.b16 %v3714
    %v3816 = vunpack.c.l.b16 %v3715
    %v3817 = vunpack.c.l.b16 %v3716
    %v3818 = vunpack.c.l.b16 %v3717
    %v3819 = vunpack.c.l.b16 %v3718
    %v3820 = vunpack.c.l.b16 %v3719
    %v3821 = vunpack.c.l.b16 %v3720
    %v3822 = vunpack.c.l.b16 %v3721
    %v3823 = vunpack.c.l.b16 %v3722
    %v3824 = vunpack.c.l.b16 %v3723
    %v3825 = vunpack.c.l.b16 %v3724
    %v3826 = vunpack.c.l.b16 %v3725
    %v3827 = vunpack.c.l.b16 %v3726
    %v3828 = vunpack.c.l.b16 %v3727
    %v3829 = vunpack.c.l.b16 %v3728
    %v3830 = vunpack.c.l.b16 %v3729
    %v3831 = vunpack.c.l.b16 %v3730
    %v3832 = vunpack.c.l.b16 %v3731
    %v3833 = vunpack.c.l.b16 %v3732
    %v3834 = vunpack.c.l.b16 %v3733
    %v3835 = vunpack.c.l.b16 %v3734
    %v3836 = vunpack.c.l.b16 %v3735
    %v3837 = vunpack.c.l.b16 %v3736
    %v3838 = vunpack.c.l.b16 %v3737
    %v3839 = vunpack.c.l.b16 %v3738
    %v3840 = vunpack.c.l.b16 %v3739
    %v3841 = vunpack.c.l.b16 %v3740
    %v3842 = vunpack.c.l.b16 %v3741
    %v3843 = vunpack.c.l.b16 %v3742
    %v3844 = vunpack.c.l.b16 %v3743
    %v3845 = vunpack.c.l.b16 %v3744
    %v3846 = vunpack.c.l.b16 %v3745
    %v3847 = vunpack.c.l.b16 %v3746
    %v3848 = vunpack.c.l.b16 %v3747
    %v3849 = vunpack.c.l.b16 %v3748
    %v3850 = vunpack.c.l.b16 %v3749
    %v3851 = vunpack.c.l.b16 %v3750
    %v3852 = vunpack.c.l.b16 %v3751
    %v3853 = vpack.c.b16 %v3806, %v3805
    %v3854 = vpack.c.b16 %v3808, %v3807
    %v3855 = vpack.c.b16 %v3810, %v3809
    %v3856 = vpack.c.b16 %v3812, %v3811
    %v3857 = vpack.c.b16 %v3814, %v3813
    %v3858 = vpack.c.b16 %v3816, %v3815
    %v3859 = vpack.c.b16 %v3818, %v3817
    %v3860 = vpack.c.b16 %v3820, %v3819
    %v3861 = vpack.c.b16 %v3822, %v3821
    %v3862 = vpack.c.b16 %v3824, %v3823
    %v3863 = vpack.c.b16 %v3826, %v3825
    %v3864 = vpack.c.b16 %v3828, %v3827
    %v3865 = vpack.c.b16 %v3830, %v3829
    %v3866 = vpack.c.b16 %v3832, %v3831
    %v3867 = vpack.c.b16 %v3834, %v3833
    %v3868 = vpack.c.b16 %v3836, %v3835
    %v3869 = vpack.c.b16 %v3838, %v3837
    %v3870 = vpack.c.b16 %v3840, %v3839
    %v3871 = vpack.c.b16 %v3842, %v3841
    %v3872 = vpack.c.b16 %v3844, %v3843
    %v3873 = vpack.c.b16 %v3846, %v3845
    %v3874 = vpack.c.b16 %v3848, %v3847
    %v3875 = vpack.c.b16 %v3850, %v3849
    %v3876 = vpack.c.b16 %v3852, %v3851
    %3901 = vmatprep.subr.bf16.mxu0 0
    %3902 = vmatpush1.bf16.msra.mxu0 %v3853
    %3903 = vmatprep.subr.bf16.mxu0 0
    %3904 = vmatpush1.bf16.msra.mxu0 %v3854
    %3905 = vmatprep.subr.bf16.mxu0 0
    %3906 = vmatpush1.bf16.msra.mxu0 %v3855
    %3907 = vmatprep.subr.bf16.mxu0 0
    %3908 = vmatpush1.bf16.msra.mxu0 %v3856
    %3909 = vmatprep.subr.bf16.mxu0 0
    %3910 = vmatpush1.bf16.msra.mxu0 %v3857
    %3911 = vmatprep.subr.bf16.mxu0 0
    %3912 = vmatpush1.bf16.msra.mxu0 %v3858
    %3913 = vmatprep.subr.bf16.mxu0 0
    %3914 = vmatpush1.bf16.msra.mxu0 %v3859
    %3915 = vmatprep.subr.bf16.mxu0 0
    %3916 = vmatpush1.bf16.msra.mxu0 %v3860
    %3917 = vmatprep.subr.bf16.mxu0 0
    %3918 = vmatpush1.bf16.msra.mxu0 %v3861
    %3919 = vmatprep.subr.bf16.mxu0 0
    %3920 = vmatpush1.bf16.msra.mxu0 %v3862
    %3921 = vmatprep.subr.bf16.mxu0 0
    %3922 = vmatpush1.bf16.msra.mxu0 %v3863
    %3923 = vmatprep.subr.bf16.mxu0 0
    %3924 = vmatpush1.bf16.msra.mxu0 %v3864
    %3925 = vmatprep.subr.bf16.mxu0 0
    %3926 = vmatpush1.bf16.msra.mxu0 %v3865
    %3927 = vmatprep.subr.bf16.mxu0 0
    %3928 = vmatpush1.bf16.msra.mxu0 %v3866
    %3929 = vmatprep.subr.bf16.mxu0 0
    %3930 = vmatpush1.bf16.msra.mxu0 %v3867
    %3931 = vmatprep.subr.bf16.mxu0 0
    %3932 = vmatpush1.bf16.msra.mxu0 %v3868
    %3933 = vmatprep.mubr.bf16.mxu0 %v3699
    %3934 = vmatmul.mubr.bf16.gmra.mrb[0].mxu0 %v3697
    %v3935 = vpop.f32.mrb[0].mxu0
    %v3936 = vadd.f32 %v3756, %v3935
    %v3937 = vpop.f32.mrb[0].mxu0
    %v3938 = vpop.f32.mrb[0].mxu0
    %v3939 = vadd.f32 %v3756, %v3938
    %v3940 = vpop.f32.mrb[0].mxu0
    %3941 = vmatprep.mubr.bf16.mxu0 %v3700
    %3942 = vmatmul.mubr.bf16.gmra.mrb[0].mxu0 %v3698
    %v3943 = vpop.f32.mrb[0].mxu0
    %v3944 = vadd.f32 %v3756, %v3943
    %v3945 = vpop.f32.mrb[0].mxu0
    %v3946 = vpop.f32.mrb[0].mxu0
    %v3947 = vadd.f32 %v3756, %v3946
    %v3948 = vpop.f32.mrb[0].mxu0
    %3949 = vdwg.mxu0
    %3950 = vmatprep.subr.bf16.mxu0 0
    %3951 = vmatpush1.bf16.msra.mxu0 %v3869
    %3952 = vmatprep.subr.bf16.mxu0 0
    %3953 = vmatpush1.bf16.msra.mxu0 %v3870
    %3954 = vmatprep.subr.bf16.mxu0 0
    %3955 = vmatpush1.bf16.msra.mxu0 %v3871
    %3956 = vmatprep.subr.bf16.mxu0 0
    %3957 = vmatpush1.bf16.msra.mxu0 %v3872
    %3958 = vmatprep.subr.bf16.mxu0 0
    %3959 = vmatpush1.bf16.msra.mxu0 %v3873
    %3960 = vmatprep.subr.bf16.mxu0 0
    %3961 = vmatpush1.bf16.msra.mxu0 %v3874
    %3962 = vmatprep.subr.bf16.mxu0 0
    %3963 = vmatpush1.bf16.msra.mxu0 %v3875
    %3964 = vmatprep.subr.bf16.mxu0 0
    %3965 = vmatpush1.bf16.msra.mxu0 %v3876
    %3966 = vmatprep.subr.bf16.mxu0 0
    %3967 = vmatpush1.bf16.msra.mxu0 0
    %3968 = vmatprep.subr.bf16.mxu0 0
    %3969 = vmatpush1.bf16.msra.mxu0 0
    %3970 = vmatprep.subr.bf16.mxu0 0
    %3971 = vmatpush1.bf16.msra.mxu0 0
    %3972 = vmatprep.subr.bf16.mxu0 0
    %3973 = vmatpush1.bf16.msra.mxu0 0
    %3974 = vmatprep.subr.bf16.mxu0 0
    %3975 = vmatpush1.bf16.msra.mxu0 0
    %3976 = vmatprep.subr.bf16.mxu0 0
    %3977 = vmatpush1.bf16.msra.mxu0 0
    %3978 = vmatprep.subr.bf16.mxu0 0
    %3979 = vmatpush1.bf16.msra.mxu0 0
    %3980 = vmatprep.subr.bf16.mxu0 0
    %3981 = vmatpush1.bf16.msra.mxu0 0
    %3982 = vmatprep.mubr.bf16.mxu0 0
    %3983 = vmatmul.mubr.bf16.gmra.mrb[0].mxu0 %v3701
    %v3984 = vpop.f32.mrb[0].mxu0
    %v3985 = vadd.f32 %v3936, %v3984
    %v3986 = vpop.f32.mrb[0].mxu0
    %v3987 = vpop.f32.mrb[0].mxu0
    %v3988 = vadd.f32 %v3939, %v3987
    %v3989 = vpop.f32.mrb[0].mxu0
    %3990 = vmatprep.mubr.bf16.mxu0 0
    %3991 = vmatmul.mubr.bf16.gmra.mrb[0].mxu0 %v3702
    %v3992 = vpop.f32.mrb[0].mxu0
    %v3993 = vadd.f32 %v3944, %v3992
    %v3994 = vpop.f32.mrb[0].mxu0
    %v3995 = vpop.f32.mrb[0].mxu0
    %v3996 = vadd.f32 %v3947, %v3995
    %v3997 = vpop.f32.mrb[0].mxu0
    %3998 = vdwg.mxu0
    %v3999 = vmax.f32 %v3985, 0.0
    %v4000 = vmax.f32 %v3988, 0.0
    %v4001 = vmax.f32 %v3993, 0.0
    %v4002 = vmax.f32 %v3996, 0.0
    %4003 = vst [vmem:[#allocation2 + $0x8] sm:$0xff] %v3999
    %4004 = vst [vmem:[#allocation2 + $0x10] sm:$0xff] %v4000
    %4005 = vst [vmem:[#allocation2 + $0x28] sm:$0xff] %v4001
    %4006 = vst [vmem:[#allocation2 + $0x30] sm:$0xff] %v4002
    %v4007 = vld [vmem:[#allocation2] sm:$0xff]
    %v4008 = vld [vmem:[#allocation2 + $0x8] sm:$0xff]
    %v4009 = vld [vmem:[#allocation2 + $0x20] sm:$0xff]
    %v4010 = vld [vmem:[#allocation2 + $0x28] sm:$0xff]
    %v4011 = vld [vmem:[#allocation2 + $0x10] sm:$0xff]
    %v4012 = vld [vmem:[#allocation2 + $0x18] sm:$0xff]
    %v4013 = vld [vmem:[#allocation2 + $0x30] sm:$0xff]
    %v4014 = vld [vmem:[#allocation2 + $0x38] sm:$0xff]
    %v4015 = vpack.c.bf16 %v4008, %v4007
    %v4016 = vpack.c.bf16 %v4010, %v4009
    %v4017 = vpack.c.bf16 %v4000, %v3999
    %v4018 = vpack.c.bf16 %v4002, %v4001
    %v4019 = vpack.c.bf16 %v4012, %v4011
    %v4020 = vpack.c.bf16 %v4014, %v4013
    %s4021 = scalar_lea.vmem [#allocation9], 2112
    %v4022 = vld [vmem:[%s4021] sm:$0xf]
    %v4023 = vld [vmem:[%s4021 + $0x4] sm:$0xf]
    %v4024 = vld [vmem:[%s4021 + $0x8] sm:$0xf]
    %v4025 = vld [vmem:[%s4021 + $0xc] sm:$0xf]
    %v4026 = vld [vmem:[%s4021 + $0x10] sm:$0xf]
    %v4027 = vld [vmem:[%s4021 + $0x14] sm:$0xf]
    %v4028 = vld [vmem:[%s4021 + $0x18] sm:$0xf]
    %v4029 = vld [vmem:[%s4021 + $0x1c] sm:$0xf]
    %v4030 = vld [vmem:[%s4021 + $0x20] sm:$0xf]
    %v4031 = vld [vmem:[%s4021 + $0x24] sm:$0xf]
    %v4032 = vld [vmem:[%s4021 + $0x28] sm:$0xf]
    %v4033 = vld [vmem:[%s4021 + $0x2c] sm:$0xf]
    %v4034 = vld [vmem:[%s4021 + $0x30] sm:$0xf]
    %v4035 = vld [vmem:[%s4021 + $0x34] sm:$0xf]
    %v4036 = vld [vmem:[%s4021 + $0x38] sm:$0xf]
    %v4037 = vld [vmem:[%s4021 + $0x3c] sm:$0xf]
    %v4038 = vld [vmem:[%s4021 + $0x40] sm:$0xf]
    %v4039 = vld [vmem:[%s4021 + $0x44] sm:$0xf]
    %v4040 = vld [vmem:[%s4021 + $0x48] sm:$0xf]
    %v4041 = vld [vmem:[%s4021 + $0x4c] sm:$0xf]
    %v4042 = vld [vmem:[%s4021 + $0x50] sm:$0xf]
    %v4043 = vld [vmem:[%s4021 + $0x54] sm:$0xf]
    %v4044 = vld [vmem:[%s4021 + $0x58] sm:$0xf]
    %v4045 = vld [vmem:[%s4021 + $0x5c] sm:$0xf]
    %v4046 = vld [vmem:[%s4021 + $0x60] sm:$0xf]
    %v4047 = vld [vmem:[%s4021 + $0x64] sm:$0xf]
    %v4048 = vld [vmem:[%s4021 + $0x68] sm:$0xf]
    %v4049 = vld [vmem:[%s4021 + $0x6c] sm:$0xf]
    %v4050 = vld [vmem:[%s4021 + $0x70] sm:$0xf]
    %v4051 = vld [vmem:[%s4021 + $0x74] sm:$0xf]
    %v4052 = vld [vmem:[%s4021 + $0x78] sm:$0xf]
    %v4053 = vld [vmem:[%s4021 + $0x7c] sm:$0xf]
    %v4054 = vld [vmem:[%s4021 + $0x80] sm:$0xf]
    %v4055 = vld [vmem:[%s4021 + $0x84] sm:$0xf]
    %v4056 = vld [vmem:[%s4021 + $0x88] sm:$0xf]
    %v4057 = vld [vmem:[%s4021 + $0x8c] sm:$0xf]
    %v4058 = vld [vmem:[%s4021 + $0x90] sm:$0xf]
    %v4059 = vld [vmem:[%s4021 + $0x94] sm:$0xf]
    %v4060 = vld [vmem:[%s4021 + $0x98] sm:$0xf]
    %v4061 = vld [vmem:[%s4021 + $0x9c] sm:$0xf]
    %v4062 = vld [vmem:[%s4021 + $0xa0] sm:$0xf]
    %v4063 = vld [vmem:[%s4021 + $0xa4] sm:$0xf]
    %v4064 = vld [vmem:[%s4021 + $0xa8] sm:$0xf]
    %v4065 = vld [vmem:[%s4021 + $0xac] sm:$0xf]
    %v4066 = vld [vmem:[%s4021 + $0xb0] sm:$0xf]
    %v4067 = vld [vmem:[%s4021 + $0xb4] sm:$0xf]
    %v4068 = vld [vmem:[%s4021 + $0xb8] sm:$0xf]
    %v4069 = vld [vmem:[%s4021 + $0xbc] sm:$0xf]
    %v4070 = vld [vmem:[#allocation11 + $0xb] sm:$0x1]
    %v4071 = vlaneseq
    %v4072 = vshrl.u32 %v4071, 7
    %v4073 = vsub.s32 0, %v4072
    %v4074 = vrot.slane %v4070, %v4073
    %v4123 = vunpack.c.l.b16 %v4022
    %v4124 = vunpack.c.l.b16 %v4023
    %v4125 = vunpack.c.l.b16 %v4024
    %v4126 = vunpack.c.l.b16 %v4025
    %v4127 = vunpack.c.l.b16 %v4026
    %v4128 = vunpack.c.l.b16 %v4027
    %v4129 = vunpack.c.l.b16 %v4028
    %v4130 = vunpack.c.l.b16 %v4029
    %v4131 = vunpack.c.l.b16 %v4030
    %v4132 = vunpack.c.l.b16 %v4031
    %v4133 = vunpack.c.l.b16 %v4032
    %v4134 = vunpack.c.l.b16 %v4033
    %v4135 = vunpack.c.l.b16 %v4034
    %v4136 = vunpack.c.l.b16 %v4035
    %v4137 = vunpack.c.l.b16 %v4036
    %v4138 = vunpack.c.l.b16 %v4037
    %v4139 = vunpack.c.l.b16 %v4038
    %v4140 = vunpack.c.l.b16 %v4039
    %v4141 = vunpack.c.l.b16 %v4040
    %v4142 = vunpack.c.l.b16 %v4041
    %v4143 = vunpack.c.l.b16 %v4042
    %v4144 = vunpack.c.l.b16 %v4043
    %v4145 = vunpack.c.l.b16 %v4044
    %v4146 = vunpack.c.l.b16 %v4045
    %v4147 = vunpack.c.l.b16 %v4046
    %v4148 = vunpack.c.l.b16 %v4047
    %v4149 = vunpack.c.l.b16 %v4048
    %v4150 = vunpack.c.l.b16 %v4049
    %v4151 = vunpack.c.l.b16 %v4050
    %v4152 = vunpack.c.l.b16 %v4051
    %v4153 = vunpack.c.l.b16 %v4052
    %v4154 = vunpack.c.l.b16 %v4053
    %v4155 = vunpack.c.l.b16 %v4054
    %v4156 = vunpack.c.l.b16 %v4055
    %v4157 = vunpack.c.l.b16 %v4056
    %v4158 = vunpack.c.l.b16 %v4057
    %v4159 = vunpack.c.l.b16 %v4058
    %v4160 = vunpack.c.l.b16 %v4059
    %v4161 = vunpack.c.l.b16 %v4060
    %v4162 = vunpack.c.l.b16 %v4061
    %v4163 = vunpack.c.l.b16 %v4062
    %v4164 = vunpack.c.l.b16 %v4063
    %v4165 = vunpack.c.l.b16 %v4064
    %v4166 = vunpack.c.l.b16 %v4065
    %v4167 = vunpack.c.l.b16 %v4066
    %v4168 = vunpack.c.l.b16 %v4067
    %v4169 = vunpack.c.l.b16 %v4068
    %v4170 = vunpack.c.l.b16 %v4069
    %v4171 = vpack.c.b16 %v4124, %v4123
    %v4172 = vpack.c.b16 %v4126, %v4125
    %v4173 = vpack.c.b16 %v4128, %v4127
    %v4174 = vpack.c.b16 %v4130, %v4129
    %v4175 = vpack.c.b16 %v4132, %v4131
    %v4176 = vpack.c.b16 %v4134, %v4133
    %v4177 = vpack.c.b16 %v4136, %v4135
    %v4178 = vpack.c.b16 %v4138, %v4137
    %v4179 = vpack.c.b16 %v4140, %v4139
    %v4180 = vpack.c.b16 %v4142, %v4141
    %v4181 = vpack.c.b16 %v4144, %v4143
    %v4182 = vpack.c.b16 %v4146, %v4145
    %v4183 = vpack.c.b16 %v4148, %v4147
    %v4184 = vpack.c.b16 %v4150, %v4149
    %v4185 = vpack.c.b16 %v4152, %v4151
    %v4186 = vpack.c.b16 %v4154, %v4153
    %v4187 = vpack.c.b16 %v4156, %v4155
    %v4188 = vpack.c.b16 %v4158, %v4157
    %v4189 = vpack.c.b16 %v4160, %v4159
    %v4190 = vpack.c.b16 %v4162, %v4161
    %v4191 = vpack.c.b16 %v4164, %v4163
    %v4192 = vpack.c.b16 %v4166, %v4165
    %v4193 = vpack.c.b16 %v4168, %v4167
    %v4194 = vpack.c.b16 %v4170, %v4169
    %4219 = vmatprep.subr.bf16.mxu0 0
    %4220 = vmatpush1.bf16.msra.mxu0 %v4171
    %4221 = vmatprep.subr.bf16.mxu0 0
    %4222 = vmatpush1.bf16.msra.mxu0 %v4172
    %4223 = vmatprep.subr.bf16.mxu0 0
    %4224 = vmatpush1.bf16.msra.mxu0 %v4173
    %4225 = vmatprep.subr.bf16.mxu0 0
    %4226 = vmatpush1.bf16.msra.mxu0 %v4174
    %4227 = vmatprep.subr.bf16.mxu0 0
    %4228 = vmatpush1.bf16.msra.mxu0 %v4175
    %4229 = vmatprep.subr.bf16.mxu0 0
    %4230 = vmatpush1.bf16.msra.mxu0 %v4176
    %4231 = vmatprep.subr.bf16.mxu0 0
    %4232 = vmatpush1.bf16.msra.mxu0 %v4177
    %4233 = vmatprep.subr.bf16.mxu0 0
    %4234 = vmatpush1.bf16.msra.mxu0 %v4178
    %4235 = vmatprep.subr.bf16.mxu0 0
    %4236 = vmatpush1.bf16.msra.mxu0 %v4179
    %4237 = vmatprep.subr.bf16.mxu0 0
    %4238 = vmatpush1.bf16.msra.mxu0 %v4180
    %4239 = vmatprep.subr.bf16.mxu0 0
    %4240 = vmatpush1.bf16.msra.mxu0 %v4181
    %4241 = vmatprep.subr.bf16.mxu0 0
    %4242 = vmatpush1.bf16.msra.mxu0 %v4182
    %4243 = vmatprep.subr.bf16.mxu0 0
    %4244 = vmatpush1.bf16.msra.mxu0 %v4183
    %4245 = vmatprep.subr.bf16.mxu0 0
    %4246 = vmatpush1.bf16.msra.mxu0 %v4184
    %4247 = vmatprep.subr.bf16.mxu0 0
    %4248 = vmatpush1.bf16.msra.mxu0 %v4185
    %4249 = vmatprep.subr.bf16.mxu0 0
    %4250 = vmatpush1.bf16.msra.mxu0 %v4186
    %4251 = vmatprep.mubr.bf16.mxu0 %v4017
    %4252 = vmatmul.mubr.bf16.gmra.mrb[0].mxu0 %v4015
    %v4253 = vpop.f32.mrb[0].mxu0
    %v4254 = vadd.f32 %v4074, %v4253
    %v4255 = vpop.f32.mrb[0].mxu0
    %v4256 = vpop.f32.mrb[0].mxu0
    %v4257 = vadd.f32 %v4074, %v4256
    %v4258 = vpop.f32.mrb[0].mxu0
    %4259 = vmatprep.mubr.bf16.mxu0 %v4018
    %4260 = vmatmul.mubr.bf16.gmra.mrb[0].mxu0 %v4016
    %v4261 = vpop.f32.mrb[0].mxu0
    %v4262 = vadd.f32 %v4074, %v4261
    %v4263 = vpop.f32.mrb[0].mxu0
    %v4264 = vpop.f32.mrb[0].mxu0
    %v4265 = vadd.f32 %v4074, %v4264
    %v4266 = vpop.f32.mrb[0].mxu0
    %4267 = vdwg.mxu0
    %4268 = vmatprep.subr.bf16.mxu0 0
    %4269 = vmatpush1.bf16.msra.mxu0 %v4187
    %4270 = vmatprep.subr.bf16.mxu0 0
    %4271 = vmatpush1.bf16.msra.mxu0 %v4188
    %4272 = vmatprep.subr.bf16.mxu0 0
    %4273 = vmatpush1.bf16.msra.mxu0 %v4189
    %4274 = vmatprep.subr.bf16.mxu0 0
    %4275 = vmatpush1.bf16.msra.mxu0 %v4190
    %4276 = vmatprep.subr.bf16.mxu0 0
    %4277 = vmatpush1.bf16.msra.mxu0 %v4191
    %4278 = vmatprep.subr.bf16.mxu0 0
    %4279 = vmatpush1.bf16.msra.mxu0 %v4192
    %4280 = vmatprep.subr.bf16.mxu0 0
    %4281 = vmatpush1.bf16.msra.mxu0 %v4193
    %4282 = vmatprep.subr.bf16.mxu0 0
    %4283 = vmatpush1.bf16.msra.mxu0 %v4194
    %4284 = vmatprep.subr.bf16.mxu0 0
    %4285 = vmatpush1.bf16.msra.mxu0 0
    %4286 = vmatprep.subr.bf16.mxu0 0
    %4287 = vmatpush1.bf16.msra.mxu0 0
    %4288 = vmatprep.subr.bf16.mxu0 0
    %4289 = vmatpush1.bf16.msra.mxu0 0
    %4290 = vmatprep.subr.bf16.mxu0 0
    %4291 = vmatpush1.bf16.msra.mxu0 0
    %4292 = vmatprep.subr.bf16.mxu0 0
    %4293 = vmatpush1.bf16.msra.mxu0 0
    %4294 = vmatprep.subr.bf16.mxu0 0
    %4295 = vmatpush1.bf16.msra.mxu0 0
    %4296 = vmatprep.subr.bf16.mxu0 0
    %4297 = vmatpush1.bf16.msra.mxu0 0
    %4298 = vmatprep.subr.bf16.mxu0 0
    %4299 = vmatpush1.bf16.msra.mxu0 0
    %4300 = vmatprep.mubr.bf16.mxu0 0
    %4301 = vmatmul.mubr.bf16.gmra.mrb[0].mxu0 %v4019
    %v4302 = vpop.f32.mrb[0].mxu0
    %v4303 = vadd.f32 %v4254, %v4302
    %v4304 = vpop.f32.mrb[0].mxu0
    %v4305 = vpop.f32.mrb[0].mxu0
    %v4306 = vadd.f32 %v4257, %v4305
    %v4307 = vpop.f32.mrb[0].mxu0
    %4308 = vmatprep.mubr.bf16.mxu0 0
    %4309 = vmatmul.mubr.bf16.gmra.mrb[0].mxu0 %v4020
    %v4310 = vpop.f32.mrb[0].mxu0
    %v4311 = vadd.f32 %v4262, %v4310
    %v4312 = vpop.f32.mrb[0].mxu0
    %v4313 = vpop.f32.mrb[0].mxu0
    %v4314 = vadd.f32 %v4265, %v4313
    %v4315 = vpop.f32.mrb[0].mxu0
    %4316 = vdwg.mxu0
    %v4317 = vmax.f32 %v4303, 0.0
    %v4318 = vmax.f32 %v4306, 0.0
    %v4319 = vmax.f32 %v4311, 0.0
    %v4320 = vmax.f32 %v4314, 0.0
    %v4321 = vadd.f32 %v3367, %v4317
    %v4322 = vadd.f32 %v3368, %v4318
    %v4323 = vadd.f32 %v3369, %v4319
    %v4324 = vadd.f32 %v3370, %v4320
    %v4325 = vpack.c.bf16 %v4322, %v4321
    %v4326 = vpack.c.bf16 %v4324, %v4323
    %v4327 = vld [vmem:[#allocation12] sm:$0xff]
    %v4328 = vld [vmem:[#allocation12 + $0x8] sm:$0xff]
    %v4329 = vld [vmem:[#allocation12 + $0x10] sm:$0xff]
    %v4330 = vld [vmem:[#allocation12 + $0x18] sm:$0xff]
    %v4331 = vld [vmem:[#allocation12 + $0x20] sm:$0xff]
    %v4332 = vld [vmem:[#allocation12 + $0x28] sm:$0xff]
    %v4333 = vld [vmem:[#allocation12 + $0x30] sm:$0xff]
    %v4334 = vld [vmem:[#allocation12 + $0x38] sm:$0xff]
    %v4335 = vld [vmem:[#allocation12 + $0x40] sm:$0xff]
    %v4336 = vld [vmem:[#allocation12 + $0x48] sm:$0xff]
    %v4337 = vld [vmem:[#allocation12 + $0x50] sm:$0xff]
    %v4338 = vld [vmem:[#allocation12 + $0x58] sm:$0xff]
    %v4339 = vld [vmem:[#allocation12 + $0x60] sm:$0xff]
    %v4340 = vld [vmem:[#allocation12 + $0x68] sm:$0xff]
    %v4341 = vld [vmem:[#allocation12 + $0x70] sm:$0xff]
    %v4342 = vld [vmem:[#allocation12 + $0x78] sm:$0xff]
    %v4343 = vld [vmem:[#allocation12 + $0x80] sm:$0xff]
    %v4344 = vld [vmem:[#allocation12 + $0x88] sm:$0xff]
    %v4345 = vld [vmem:[#allocation12 + $0x90] sm:$0xff]
    %v4346 = vld [vmem:[#allocation12 + $0x98] sm:$0xff]
    %v4347 = vld [vmem:[#allocation12 + $0xa0] sm:$0xff]
    %v4348 = vld [vmem:[#allocation12 + $0xa8] sm:$0xff]
    %v4349 = vld [vmem:[#allocation12 + $0xb0] sm:$0xff]
    %v4350 = vld [vmem:[#allocation12 + $0xb8] sm:$0xff]
    %v4351 = vld [vmem:[#allocation12 + $0xc0] sm:$0xff]
    %v4352 = vld [vmem:[#allocation12 + $0xc8] sm:$0xff]
    %v4353 = vld [vmem:[#allocation12 + $0xd0] sm:$0xff]
    %v4354 = vld [vmem:[#allocation12 + $0xd8] sm:$0xff]
    %v4355 = vld [vmem:[#allocation12 + $0xe0] sm:$0xff]
    %v4356 = vld [vmem:[#allocation12 + $0xe8] sm:$0xff]
    %v4357 = vld [vmem:[#allocation12 + $0xf0] sm:$0xff]
    %v4358 = vld [vmem:[#allocation12 + $0xf8] sm:$0xff]
    %v4359 = vld [vmem:[#allocation14] sm:$0xf]
    %v4361 = vlaneseq
    %v4362 = vshrl.u32 %v4361, 7
    %v4363 = vsub.s32 0, %v4362
    %v4364 = vrot.slane %v4359, %v4363
    %v4365 = vlaneseq
    %v4366 = vshrl.u32 %v4365, 7
    %v4367 = vsub.s32 1, %v4366
    %v4368 = vrot.slane %v4359, %v4367
    %v4369 = vlaneseq
    %v4370 = vshrl.u32 %v4369, 7
    %v4371 = vsub.s32 2, %v4370
    %v4372 = vrot.slane %v4359, %v4371
    %v4373 = vlaneseq
    %v4374 = vshrl.u32 %v4373, 7
    %v4375 = vsub.s32 3, %v4374
    %v4376 = vrot.slane %v4359, %v4375
    %v4413 = vunpack.c.l.b16 %v4327
    %v4414 = vunpack.c.h.b16 %v4327
    %v4415 = vunpack.c.l.b16 %v4328
    %v4416 = vunpack.c.h.b16 %v4328
    %v4417 = vunpack.c.l.b16 %v4329
    %v4418 = vunpack.c.h.b16 %v4329
    %v4419 = vunpack.c.l.b16 %v4330
    %v4420 = vunpack.c.h.b16 %v4330
    %v4421 = vunpack.c.l.b16 %v4331
    %v4422 = vunpack.c.h.b16 %v4331
    %v4423 = vunpack.c.l.b16 %v4332
    %v4424 = vunpack.c.h.b16 %v4332
    %v4425 = vunpack.c.l.b16 %v4333
    %v4426 = vunpack.c.h.b16 %v4333
    %v4427 = vunpack.c.l.b16 %v4334
    %v4428 = vunpack.c.h.b16 %v4334
    %v4429 = vunpack.c.l.b16 %v4335
    %v4430 = vunpack.c.h.b16 %v4335
    %v4431 = vunpack.c.l.b16 %v4336
    %v4432 = vunpack.c.h.b16 %v4336
    %v4433 = vunpack.c.l.b16 %v4337
    %v4434 = vunpack.c.h.b16 %v4337
    %v4435 = vunpack.c.l.b16 %v4338
    %v4436 = vunpack.c.h.b16 %v4338
    %v4437 = vunpack.c.l.b16 %v4339
    %v4438 = vunpack.c.h.b16 %v4339
    %v4439 = vunpack.c.l.b16 %v4340
    %v4440 = vunpack.c.h.b16 %v4340
    %v4441 = vunpack.c.l.b16 %v4341
    %v4442 = vunpack.c.h.b16 %v4341
    %v4443 = vunpack.c.l.b16 %v4342
    %v4444 = vunpack.c.h.b16 %v4342
    %v4445 = vunpack.c.l.b16 %v4343
    %v4446 = vunpack.c.h.b16 %v4343
    %v4447 = vunpack.c.l.b16 %v4344
    %v4448 = vunpack.c.h.b16 %v4344
    %v4449 = vunpack.c.l.b16 %v4345
    %v4450 = vunpack.c.h.b16 %v4345
    %v4451 = vunpack.c.l.b16 %v4346
    %v4452 = vunpack.c.h.b16 %v4346
    %v4453 = vunpack.c.l.b16 %v4347
    %v4454 = vunpack.c.h.b16 %v4347
    %v4455 = vunpack.c.l.b16 %v4348
    %v4456 = vunpack.c.h.b16 %v4348
    %v4457 = vunpack.c.l.b16 %v4349
    %v4458 = vunpack.c.h.b16 %v4349
    %v4459 = vunpack.c.l.b16 %v4350
    %v4460 = vunpack.c.h.b16 %v4350
    %v4461 = vunpack.c.l.b16 %v4351
    %v4462 = vunpack.c.h.b16 %v4351
    %v4463 = vunpack.c.l.b16 %v4352
    %v4464 = vunpack.c.h.b16 %v4352
    %v4465 = vunpack.c.l.b16 %v4353
    %v4466 = vunpack.c.h.b16 %v4353
    %v4467 = vunpack.c.l.b16 %v4354
    %v4468 = vunpack.c.h.b16 %v4354
    %v4469 = vunpack.c.l.b16 %v4355
    %v4470 = vunpack.c.h.b16 %v4355
    %v4471 = vunpack.c.l.b16 %v4356
    %v4472 = vunpack.c.h.b16 %v4356
    %v4473 = vunpack.c.l.b16 %v4357
    %v4474 = vunpack.c.h.b16 %v4357
    %v4475 = vunpack.c.l.b16 %v4358
    %v4476 = vunpack.c.h.b16 %v4358
    %v4477 = vpack.c.b16 %v4417, %v4413
    %v4478 = vpack.c.b16 %v4418, %v4414
    %v4479 = vpack.c.b16 %v4419, %v4415
    %v4480 = vpack.c.b16 %v4420, %v4416
    %v4481 = vpack.c.b16 %v4425, %v4421
    %v4482 = vpack.c.b16 %v4426, %v4422
    %v4483 = vpack.c.b16 %v4427, %v4423
    %v4484 = vpack.c.b16 %v4428, %v4424
    %v4485 = vpack.c.b16 %v4433, %v4429
    %v4486 = vpack.c.b16 %v4434, %v4430
    %v4487 = vpack.c.b16 %v4435, %v4431
    %v4488 = vpack.c.b16 %v4436, %v4432
    %v4489 = vpack.c.b16 %v4441, %v4437
    %v4490 = vpack.c.b16 %v4442, %v4438
    %v4491 = vpack.c.b16 %v4443, %v4439
    %v4492 = vpack.c.b16 %v4444, %v4440
    %v4493 = vpack.c.b16 %v4449, %v4445
    %v4494 = vpack.c.b16 %v4450, %v4446
    %v4495 = vpack.c.b16 %v4451, %v4447
    %v4496 = vpack.c.b16 %v4452, %v4448
    %v4497 = vpack.c.b16 %v4457, %v4453
    %v4498 = vpack.c.b16 %v4458, %v4454
    %v4499 = vpack.c.b16 %v4459, %v4455
    %v4500 = vpack.c.b16 %v4460, %v4456
    %v4501 = vpack.c.b16 %v4465, %v4461
    %v4502 = vpack.c.b16 %v4466, %v4462
    %v4503 = vpack.c.b16 %v4467, %v4463
    %v4504 = vpack.c.b16 %v4468, %v4464
    %v4505 = vpack.c.b16 %v4473, %v4469
    %v4506 = vpack.c.b16 %v4474, %v4470
    %v4507 = vpack.c.b16 %v4475, %v4471
    %v4508 = vpack.c.b16 %v4476, %v4472
    %4541 = vmatprep.subr.bf16.mxu0 %v4478
    %4542 = vmatpush1.bf16.msra.mxu0 %v4477
    %4543 = vmatprep.subr.bf16.mxu0 %v4482
    %4544 = vmatpush1.bf16.msra.mxu0 %v4481
    %4545 = vmatprep.subr.bf16.mxu0 %v4486
    %4546 = vmatpush1.bf16.msra.mxu0 %v4485
    %4547 = vmatprep.subr.bf16.mxu0 %v4490
    %4548 = vmatpush1.bf16.msra.mxu0 %v4489
    %4549 = vmatprep.subr.bf16.mxu0 %v4494
    %4550 = vmatpush1.bf16.msra.mxu0 %v4493
    %4551 = vmatprep.subr.bf16.mxu0 %v4498
    %4552 = vmatpush1.bf16.msra.mxu0 %v4497
    %4553 = vmatprep.subr.bf16.mxu0 %v4502
    %4554 = vmatpush1.bf16.msra.mxu0 %v4501
    %4555 = vmatprep.subr.bf16.mxu0 %v4506
    %4556 = vmatpush1.bf16.msra.mxu0 %v4505
    %4557 = vmatprep.subr.bf16.mxu0 0
    %4558 = vmatpush1.bf16.msra.mxu0 0
    %4559 = vmatprep.subr.bf16.mxu0 0
    %4560 = vmatpush1.bf16.msra.mxu0 0
    %4561 = vmatprep.subr.bf16.mxu0 0
    %4562 = vmatpush1.bf16.msra.mxu0 0
    %4563 = vmatprep.subr.bf16.mxu0 0
    %4564 = vmatpush1.bf16.msra.mxu0 0
    %4565 = vmatprep.subr.bf16.mxu0 0
    %4566 = vmatpush1.bf16.msra.mxu0 0
    %4567 = vmatprep.subr.bf16.mxu0 0
    %4568 = vmatpush1.bf16.msra.mxu0 0
    %4569 = vmatprep.subr.bf16.mxu0 0
    %4570 = vmatpush1.bf16.msra.mxu0 0
    %4571 = vmatprep.subr.bf16.mxu0 0
    %4572 = vmatpush1.bf16.msra.mxu0 0
    %4573 = vmatprep.mubr.bf16.mxu0 0
    %4574 = vmatmul.mubr.bf16.gmra.mrb[0].mxu0 %v4325
    %v4575 = vpop.f32.mrb[0].mxu0
    %v4576 = vadd.f32 %v4364, %v4575
    %v4577 = vpop.f32.mrb[0].mxu0
    %v4578 = vadd.f32 %v4368, %v4577
    %v4579 = vpop.f32.mrb[0].mxu0
    %v4580 = vadd.f32 %v4364, %v4579
    %v4581 = vpop.f32.mrb[0].mxu0
    %v4582 = vadd.f32 %v4368, %v4581
    %4583 = vmatprep.mubr.bf16.mxu0 0
    %4584 = vmatmul.mubr.bf16.gmra.mrb[0].mxu0 %v4326
    %v4585 = vpop.f32.mrb[0].mxu0
    %v4586 = vadd.f32 %v4364, %v4585
    %v4587 = vpop.f32.mrb[0].mxu0
    %v4588 = vadd.f32 %v4368, %v4587
    %v4589 = vpop.f32.mrb[0].mxu0
    %v4590 = vadd.f32 %v4364, %v4589
    %v4591 = vpop.f32.mrb[0].mxu0
    %v4592 = vadd.f32 %v4368, %v4591
    %4593 = vdwg.mxu0
    %4594 = vmatprep.subr.bf16.mxu0 %v4480
    %4595 = vmatpush1.bf16.msra.mxu0 %v4479
    %4596 = vmatprep.subr.bf16.mxu0 %v4484
    %4597 = vmatpush1.bf16.msra.mxu0 %v4483
    %4598 = vmatprep.subr.bf16.mxu0 %v4488
    %4599 = vmatpush1.bf16.msra.mxu0 %v4487
    %4600 = vmatprep.subr.bf16.mxu0 %v4492
    %4601 = vmatpush1.bf16.msra.mxu0 %v4491
    %4602 = vmatprep.subr.bf16.mxu0 %v4496
    %4603 = vmatpush1.bf16.msra.mxu0 %v4495
    %4604 = vmatprep.subr.bf16.mxu0 %v4500
    %4605 = vmatpush1.bf16.msra.mxu0 %v4499
    %4606 = vmatprep.subr.bf16.mxu0 %v4504
    %4607 = vmatpush1.bf16.msra.mxu0 %v4503
    %4608 = vmatprep.subr.bf16.mxu0 %v4508
    %4609 = vmatpush1.bf16.msra.mxu0 %v4507
    %4610 = vmatprep.subr.bf16.mxu0 0
    %4611 = vmatpush1.bf16.msra.mxu0 0
    %4612 = vmatprep.subr.bf16.mxu0 0
    %4613 = vmatpush1.bf16.msra.mxu0 0
    %4614 = vmatprep.subr.bf16.mxu0 0
    %4615 = vmatpush1.bf16.msra.mxu0 0
    %4616 = vmatprep.subr.bf16.mxu0 0
    %4617 = vmatpush1.bf16.msra.mxu0 0
    %4618 = vmatprep.subr.bf16.mxu0 0
    %4619 = vmatpush1.bf16.msra.mxu0 0
    %4620 = vmatprep.subr.bf16.mxu0 0
    %4621 = vmatpush1.bf16.msra.mxu0 0
    %4622 = vmatprep.subr.bf16.mxu0 0
    %4623 = vmatpush1.bf16.msra.mxu0 0
    %4624 = vmatprep.subr.bf16.mxu0 0
    %4625 = vmatpush1.bf16.msra.mxu0 0
    %4626 = vmatprep.mubr.bf16.mxu0 0
    %4627 = vmatmul.mubr.bf16.gmra.mrb[0].mxu0 %v4325
    %v4628 = vpop.f32.mrb[0].mxu0
    %v4629 = vadd.f32 %v4372, %v4628
    %v4630 = vpop.f32.mrb[0].mxu0
    %v4631 = vadd.f32 %v4376, %v4630
    %v4632 = vpop.f32.mrb[0].mxu0
    %v4633 = vadd.f32 %v4372, %v4632
    %v4634 = vpop.f32.mrb[0].mxu0
    %v4635 = vadd.f32 %v4376, %v4634
    %4636 = vmatprep.mubr.bf16.mxu0 0
    %4637 = vmatmul.mubr.bf16.gmra.mrb[0].mxu0 %v4326
    %v4638 = vpop.f32.mrb[0].mxu0
    %v4639 = vadd.f32 %v4372, %v4638
    %v4640 = vpop.f32.mrb[0].mxu0
    %v4641 = vadd.f32 %v4376, %v4640
    %v4642 = vpop.f32.mrb[0].mxu0
    %v4643 = vadd.f32 %v4372, %v4642
    %v4644 = vpop.f32.mrb[0].mxu0
    %v4645 = vadd.f32 %v4376, %v4644
    %4646 = vdwg.mxu0
    %v4647 = vadd.f32 %v119, %v4576
    %v4648 = vadd.f32 %v120, %v4578
    %v4649 = vadd.f32 %v121, %v4629
    %v4650 = vadd.f32 %v122, %v4631
    %v4651 = vadd.f32 %v123, %v4580
    %v4652 = vadd.f32 %v124, %v4582
    %v4653 = vadd.f32 %v125, %v4633
    %v4654 = vadd.f32 %v126, %v4635
    %v4655 = vadd.f32 %v127, %v4586
    %v4656 = vadd.f32 %v128, %v4588
    %v4657 = vadd.f32 %v129, %v4639
    %v4658 = vadd.f32 %v130, %v4641
    %v4659 = vadd.f32 %v131, %v4590
    %v4660 = vadd.f32 %v132, %v4592
    %v4661 = vadd.f32 %v133, %v4643
    %v4662 = vadd.f32 %v134, %v4645
    %4663 = vst [vmem:[#allocation15] sm:$0xff] %v4647
    %4664 = vst [vmem:[#allocation15 + $0x8] sm:$0xff] %v4648
    %4665 = vst [vmem:[#allocation15 + $0x10] sm:$0xff] %v4649
    %4666 = vst [vmem:[#allocation15 + $0x18] sm:$0xff] %v4650
    %4667 = vst [vmem:[#allocation15 + $0x20] sm:$0xff] %v4651
    %4668 = vst [vmem:[#allocation15 + $0x28] sm:$0xff] %v4652
    %4669 = vst [vmem:[#allocation15 + $0x30] sm:$0xff] %v4653
    %4670 = vst [vmem:[#allocation15 + $0x38] sm:$0xff] %v4654
    %4671 = vst [vmem:[#allocation15 + $0x40] sm:$0xff] %v4655
    %4672 = vst [vmem:[#allocation15 + $0x48] sm:$0xff] %v4656
    %4673 = vst [vmem:[#allocation15 + $0x50] sm:$0xff] %v4657
    %4674 = vst [vmem:[#allocation15 + $0x58] sm:$0xff] %v4658
    %4675 = vst [vmem:[#allocation15 + $0x60] sm:$0xff] %v4659
    %4676 = vst [vmem:[#allocation15 + $0x68] sm:$0xff] %v4660
    %4677 = vst [vmem:[#allocation15 + $0x70] sm:$0xff] %v4661
    %4678 = vst [vmem:[#allocation15 + $0x78] sm:$0xff] %v4662
    // Predicated region
    $region58: #{tpu_custom_call.1} parent=1 // pred_check
      _
    $region59: #{tpu_custom_call.1} parent=1 // pred_check_branch
      %4680 = sbr.rel (0) target = $region61
    $region60: #{tpu_custom_call.1} parent=1 // pred_region
      %s4682 = ssub.s32 2048, 2048
      %4683 = vsyncadd [#allocation5], %s4682
      %s4684 = sshll.u32 [#allocation15], 4
      %s4685 = int_to_ptr.vmem [resolvable:$true] %s4684
      %4690 = dma.vmem_to_hbm [thread:$0]  %s4685, 2048, %s7, [#allocation5], 512, 512, 32
    $region61: #{tpu_custom_call.1} parent=1 // pred_fallthru
      _
    // Predicated region
    $region62: #{tpu_custom_call.1} parent=1 // pred_check
      _
    $region63: #{tpu_custom_call.1} parent=1 // pred_check_branch
      %4692 = sbr.rel (0) target = $region65
    $region64: #{tpu_custom_call.1} parent=1 // pred_region
      %4693 = dma.done [#allocation5], 2048
    $region65: #{tpu_custom_call.1} parent=1 // pred_fallthru
      _
    %4694 = vsyncpa [#allocation4], 1
    %4695 = vsyncpa [#allocation7], 1
    %4696 = vsyncpa [#allocation10], 1
    %4697 = vsyncpa [#allocation13], 1
    %4698 = vsyncpa [#allocation5], 1

</llo_original>
